<compile_context>
chip_gen: v5e
topology: v5e:2x2
jax: 0.10.0
libtpu: 0.0.40
codegen_flags: <defaults>
</compile_context>

<pallas_src>
import functools

import jax
import jax.numpy as jnp
from jax.experimental import pallas as pl
from jax.experimental.pallas import tpu as pltpu

LN_EPS = 1e-5
# ~25-30 MiB resident at the real config (D=1024, tF=1024) after FF tiling; 48 MiB
# leaves headroom and sits below v7x's 64 MiB physical VMEM.
VMEM_LIMIT = 48 * 1024 * 1024


# ------------------------------ shared math -------------------------------- #

def _ln(x, g, b):
    """f32 LayerNorm over the last axis; two-pass (mean, then centered variance)."""
    mean = jnp.mean(x, axis=-1, keepdims=True)
    xc = x - mean
    var = jnp.mean(xc * xc, axis=-1, keepdims=True)
    return xc * jax.lax.rsqrt(var + LN_EPS) * g + b


# --------- fused transformer stack: ln1 + n_layers residual blocks ---------- #

def _make_transformer_kernel(num_heads, head_dim):
    D = num_heads * head_dim
    scale = head_dim ** -0.5

    def kernel(x_ref,                       # (1, L, D)   input (scale_emb ++ x)
               ln0_g_ref, ln0_b_ref,        # (1, D)      module-level ln1
               ln_attn_g_ref, ln_attn_b_ref,  # (1, 1, D)  per-layer pre-attn LN
               w_qkv_ref, b_qkv_ref,        # (1, D, 3D) bf16, (1, 1, 3D) f32
               w_out_ref, b_out_ref,        # (1, D, D)  bf16, (1, 1, D)  f32
               ln_mlp_g_ref, ln_mlp_b_ref,  # (1, 1, D)  per-layer pre-MLP LN
               w_fc_ref, b_fc_ref,          # (1, D, tF) bf16, (1, 1, tF) f32
               w_proj_ref, b_proj_ref,      # (1, tF, D) bf16, (1, 1, D)  f32
               o_ref,                       # (1, L, D)
               h_sc, y2_sc, acc_sc):        # (L,D) f32 / (L,D) bf16 / (L,D) f32
        layer = pl.program_id(1)
        ff = pl.program_id(2)
        last_layer = pl.num_programs(1) - 1
        last_ff = pl.num_programs(2) - 1

        # ---- prologue, once per batch row: module-level ln1 on the input ----
        @pl.when(jnp.logical_and(layer == 0, ff == 0))
        def _():
            x = x_ref[0].astype(jnp.float32)
            h_sc[...] = _ln(x, ln0_g_ref[...], ln0_b_ref[...])

        # ---- attention branch, once per layer (first FF chunk) ----
        @pl.when(ff == 0)
        def _():
            h = h_sc[...]                                           # (L, D) f32
            y = _ln(h, ln_attn_g_ref[0], ln_attn_b_ref[0]).astype(jnp.bfloat16)
            # One fused (L,D)@(D,3D) QKV matmul; columns are [q|k|v], head-major
            # within each, so per-head slices are static & 128-lane aligned.
            qkv = (jnp.dot(y, w_qkv_ref[0], preferred_element_type=jnp.float32)
                   + b_qkv_ref[0]).astype(jnp.bfloat16)             # (L, 3D)
            o_heads = []
            for hh in range(num_heads):
                q = qkv[:, hh * head_dim:(hh + 1) * head_dim]
                k = qkv[:, D + hh * head_dim:D + (hh + 1) * head_dim]
                v = qkv[:, 2 * D + hh * head_dim:2 * D + (hh + 1) * head_dim]
                s = jnp.einsum("qd,kd->qk", q, k,
                               preferred_element_type=jnp.float32) * scale
                s = s - jnp.max(s, axis=-1, keepdims=True)
                p = jnp.exp(s)
                p = p / jnp.sum(p, axis=-1, keepdims=True)          # exact softmax
                o_heads.append(
                    jnp.dot(p.astype(jnp.bfloat16), v,
                            preferred_element_type=jnp.float32).astype(jnp.bfloat16))
            # concat(heads) @ W_out: one K=D MXU matmul (head-sum folded in).
            o_cat = jnp.concatenate(o_heads, axis=-1)               # (L, D) bf16
            attn = jnp.dot(o_cat, w_out_ref[0],
                           preferred_element_type=jnp.float32) + b_out_ref[0]
            h = h + attn
            h_sc[...] = h
            y2_sc[...] = _ln(h, ln_mlp_g_ref[0], ln_mlp_b_ref[0]).astype(jnp.bfloat16)
            acc_sc[...] = jnp.zeros_like(acc_sc)

        # ---- MLP FF chunk (every grid step): acc += proj(QuickGELU(fc(LN2(h)))) ----
        m = jnp.dot(y2_sc[...], w_fc_ref[0],
                    preferred_element_type=jnp.float32) + b_fc_ref[0]   # (L, tF)
        m = m * jax.nn.sigmoid(1.702 * m)                               # QuickGELU (f32)
        acc_sc[...] += jnp.dot(m.astype(jnp.bfloat16), w_proj_ref[0],
                               preferred_element_type=jnp.float32)      # (L, D)

        # ---- finalize layer / write output ----
        @pl.when(ff == last_ff)
        def _():
            h_sc[...] = h_sc[...] + acc_sc[...] + b_proj_ref[0]

        @pl.when(jnp.logical_and(ff == last_ff, layer == last_layer))
        def _():
            o_ref[0] = h_sc[...].astype(o_ref.dtype)

    return kernel


def transformer_stack(h, ln1_g, ln1_b, tf, *, num_heads, ff_tile):
    """h: (B, L, D) f32.  Applies module-level ln1 + all residual blocks."""
    B, L, D = h.shape
    assert D % num_heads == 0
    hd = D // num_heads
    n_layers = tf["w_qkv"].shape[0]
    FF = tf["w_fc"].shape[-1]
    assert ff_tile % 128 == 0 and FF % ff_tile == 0
    n_ff = FF // ff_tile

    def const2(shape):
        return pl.BlockSpec(shape, lambda b, l, f: (0, 0))

    def per_layer(shape_tail):
        nd = len(shape_tail)
        return pl.BlockSpec((1,) + shape_tail,
                            lambda b, l, f, _nd=nd: (l,) + (0,) * _nd)

    grid_spec = pltpu.PrefetchScalarGridSpec(
        num_scalar_prefetch=0,
        grid=(B, n_layers, n_ff),
        in_specs=[
            pl.BlockSpec((1, L, D), lambda b, l, f: (b, 0, 0)),      # x
            const2((1, D)), const2((1, D)),                          # module ln1
            per_layer((1, D)), per_layer((1, D)),                    # pre-attn LN
            per_layer((D, 3 * D)), per_layer((1, 3 * D)),            # fused QKV
            per_layer((D, D)), per_layer((1, D)),                    # out-proj
            per_layer((1, D)), per_layer((1, D)),                    # pre-MLP LN
            pl.BlockSpec((1, D, ff_tile), lambda b, l, f: (l, 0, f)),  # w_fc chunk
            pl.BlockSpec((1, 1, ff_tile), lambda b, l, f: (l, 0, f)),  # b_fc chunk
            pl.BlockSpec((1, ff_tile, D), lambda b, l, f: (l, f, 0)),  # w_proj chunk
            per_layer((1, D)),                                       # b_proj
        ],
        out_specs=pl.BlockSpec((1, L, D), lambda b, l, f: (b, 0, 0)),
        scratch_shapes=[pltpu.VMEM((L, D), jnp.float32),   # residual stream
                        pltpu.VMEM((L, D), jnp.bfloat16),  # LN2(h) for MLP chunks
                        pltpu.VMEM((L, D), jnp.float32)],  # MLP accumulator
    )

    return pl.pallas_call(
        _make_transformer_kernel(num_heads, hd),
        out_shape=jax.ShapeDtypeStruct((B, L, D), h.dtype),
        grid_spec=grid_spec,
        compiler_params=pltpu.CompilerParams(
            # batch "arbitrary": avoids duplicating the (dominant) weight DMA across
            # v7x's two cores; layer/ff carry state so they must be "arbitrary".
            dimension_semantics=("arbitrary", "arbitrary", "arbitrary"),
            vmem_limit_bytes=VMEM_LIMIT),
    )(h, ln1_g, ln1_b,
      tf["ln_attn_g"], tf["ln_attn_b"],
      tf["w_qkv"], tf["b_qkv"],
      tf["w_out"], tf["b_out"],
      tf["ln_mlp_g"], tf["ln_mlp_b"],
      tf["w_fc"], tf["b_fc"],
      tf["w_proj"], tf["b_proj"])


# ---------------- fused output head: LN2 + MLP(32) + Tanh ------------------- #

def _head_kernel(x_ref, g_ref, b_ref, w1_ref, b1_ref, w2_ref, b2_ref, o_ref):
    x = x_ref[...].astype(jnp.float32)                     # (N, D)
    y = _ln(x, g_ref[...], b_ref[...])
    y = jnp.dot(y.astype(jnp.bfloat16), w1_ref[...],
                preferred_element_type=jnp.float32) + b1_ref[...]
    # TODO(synk): PyTorch nn.GELU() defaults to exact erf; tanh approximation used
    # (max abs deviation ~1e-3) since erf is not guaranteed to lower in Mosaic.
    y = jax.nn.gelu(y, approximate=True)
    z = jnp.dot(y.astype(jnp.bfloat16), w2_ref[...],
                preferred_element_type=jnp.float32) + b2_ref[...]
    o_ref[...] = jnp.tanh(z).astype(o_ref.dtype)


def out_head(x, g, b, w1, b1, w2, b2):
    """Fused: LayerNorm -> Linear(D,32) -> GELU -> Linear(32,out_dim) -> Tanh."""
    N, D = x.shape
    H = w1.shape[1]
    O = w2.shape[1]
    return pl.pallas_call(
        _head_kernel,
        out_shape=jax.ShapeDtypeStruct((N, O), x.dtype),
        grid=(1,),
        in_specs=[pl.BlockSpec((N, D), lambda i: (0, 0)),
                  pl.BlockSpec((1, D), lambda i: (0, 0)),
                  pl.BlockSpec((1, D), lambda i: (0, 0)),
                  pl.BlockSpec((D, H), lambda i: (0, 0)),
                  pl.BlockSpec((1, H), lambda i: (0, 0)),
                  pl.BlockSpec((H, O), lambda i: (0, 0)),
                  pl.BlockSpec((1, O), lambda i: (0, 0))],
        out_specs=pl.BlockSpec((N, O), lambda i: (0, 0)),
        compiler_params=pltpu.CompilerParams(vmem_limit_bytes=VMEM_LIMIT),
    )(x, g, b, w1, b1, w2, b2)


# ----------------------------- forward (glue) ------------------------------ #

def scale_encoder_forward(params, x, *, num_tokens, num_heads, ff_tile):
    B, S, D = x.shape
    scale_emb = jnp.broadcast_to(params["scale_emb"], (B, num_tokens, D))
    h = jnp.concatenate([scale_emb, x], axis=1).astype(jnp.float32)   # (B, L, D)

    h = transformer_stack(h, params["ln1_g"], params["ln1_b"], params["tf"],
                          num_heads=num_heads, ff_tile=ff_tile)

    T = num_tokens
    ht = h[:, :T, :].reshape(B * T, D)                     # cheap wrapper-side slice
    o = out_head(ht, params["ln2_g"], params["ln2_b"],
                 params["out_w1"], params["out_b1"],
                 params["out_w2"], params["out_b2"])
    return o.reshape(B, T, -1)


# ------------------------------ param init --------------------------------- #

def init_params(key, *, in_dim, num_tokens, num_heads, n_layers, out_dim, hidden=32):
    D = in_dim
    FF = 4 * D
    keys = iter(jax.random.split(key, 3 + 4 * n_layers))

    def nrm(shape, scale):
        return jax.random.normal(next(keys), shape, jnp.float32) * scale

    params = {
        "scale_emb": nrm((1, num_tokens, D), D ** -0.5),
        "ln1_g": jnp.ones((1, D), jnp.float32), "ln1_b": jnp.zeros((1, D), jnp.float32),
        "ln2_g": jnp.ones((1, D), jnp.float32), "ln2_b": jnp.zeros((1, D), jnp.float32),
        "out_w1": nrm((D, hidden), D ** -0.5).astype(jnp.bfloat16),
        "out_b1": jnp.zeros((1, hidden), jnp.float32),
        "out_w2": nrm((hidden, out_dim), hidden ** -0.5).astype(jnp.bfloat16),
        "out_b2": jnp.zeros((1, out_dim), jnp.float32),
    }
    # Per-layer weights stacked along a leading layer axis (one pallas_call for the
    # whole stack).  w_qkv == torch in_proj_weight.T, i.e. columns [q|k|v] with each
    # block head-major along its columns; w_out == torch out_proj.weight.T, rows
    # head-major — both are exactly what the fused kernel consumes (no rearrange).
    params["tf"] = {
        "ln_attn_g": jnp.ones((n_layers, 1, D), jnp.float32),
        "ln_attn_b": jnp.zeros((n_layers, 1, D), jnp.float32),
        "ln_mlp_g": jnp.ones((n_layers, 1, D), jnp.float32),
        "ln_mlp_b": jnp.zeros((n_layers, 1, D), jnp.float32),
        "w_qkv": jnp.stack([nrm((D, 3 * D), D ** -0.5)
                            for _ in range(n_layers)]).astype(jnp.bfloat16),
        "b_qkv": jnp.zeros((n_layers, 1, 3 * D), jnp.float32),
        "w_out": jnp.stack([nrm((D, D), D ** -0.5)
                            for _ in range(n_layers)]).astype(jnp.bfloat16),
        "b_out": jnp.zeros((n_layers, 1, D), jnp.float32),
        "w_fc": jnp.stack([nrm((D, FF), D ** -0.5)
                           for _ in range(n_layers)]).astype(jnp.bfloat16),
        "b_fc": jnp.zeros((n_layers, 1, FF), jnp.float32),
        "w_proj": jnp.stack([nrm((FF, D), FF ** -0.5)
                             for _ in range(n_layers)]).astype(jnp.bfloat16),
        "b_proj": jnp.zeros((n_layers, 1, D), jnp.float32),
    }
    return params


# --------------------------------- main ------------------------------------ #

if __name__ == "__main__":
    # Small but shape-consistent, lane-dense config (module defaults are
    # in_dim=1024, heads=8, num_tokens=16, n_layers=2, out_dim=1).
    B, S = 2, 8            # batch, input sequence length
    D = 256                # in_dim
    T = 8                  # num_tokens      -> L = 16
    H = 2                  # num_heads       -> head_dim 128 (lane-dense)
    N_LAYERS = 2
    OUT_DIM = 1
    FF_TILE = 512          # 4D = 1024 -> 2 FF chunks (exercises the tiled MLP path)

    key = jax.random.PRNGKey(0)
    kp, kx = jax.random.split(key)
    params = init_params(kp, in_dim=D, num_tokens=T, num_heads=H,
                         n_layers=N_LAYERS, out_dim=OUT_DIM)
    x = jax.random.normal(kx, (B, S, D), jnp.float32)

    fwd = jax.jit(functools.partial(scale_encoder_forward,
                                    num_tokens=T, num_heads=H, ff_tile=FF_TILE))
    y = jax.block_until_ready(fwd(params, x))

    assert y.shape == (B, T, OUT_DIM), y.shape
    assert bool(jnp.all(jnp.isfinite(y)))
    assert bool(jnp.all(jnp.abs(y) <= 1.0))   # tanh output range
    print("KERNEL_OK")
</pallas_src>

<mosaic_0001>
module attributes {stable_mosaic.version = 11 : i64} {
  func.func @kernel(%arg0: i32, %arg1: i32, %arg2: i32, %arg3: memref<1x16x256xf32, #tpu.memory_space<vmem>>, %arg4: memref<1x256xf32, #tpu.memory_space<vmem>>, %arg5: memref<1x256xf32, #tpu.memory_space<vmem>>, %arg6: memref<1x1x256xf32, #tpu.memory_space<vmem>>, %arg7: memref<1x1x256xf32, #tpu.memory_space<vmem>>, %arg8: memref<1x256x768xbf16, #tpu.memory_space<vmem>>, %arg9: memref<1x1x768xf32, #tpu.memory_space<vmem>>, %arg10: memref<1x256x256xbf16, #tpu.memory_space<vmem>>, %arg11: memref<1x1x256xf32, #tpu.memory_space<vmem>>, %arg12: memref<1x1x256xf32, #tpu.memory_space<vmem>>, %arg13: memref<1x1x256xf32, #tpu.memory_space<vmem>>, %arg14: memref<1x256x512xbf16, #tpu.memory_space<vmem>>, %arg15: memref<1x1x512xf32, #tpu.memory_space<vmem>>, %arg16: memref<1x512x256xbf16, #tpu.memory_space<vmem>>, %arg17: memref<1x1x256xf32, #tpu.memory_space<vmem>>, %arg18: memref<1x16x256xf32, #tpu.memory_space<vmem>>, %arg19: memref<16x256xf32, #tpu.memory_space<vmem>>, %arg20: memref<16x256xbf16, #tpu.memory_space<vmem>>, %arg21: memref<16x256xf32, #tpu.memory_space<vmem>>) attributes {dimension_semantics = [#tpu.dimension_semantics<arbitrary>, #tpu.dimension_semantics<arbitrary>, #tpu.dimension_semantics<arbitrary>], iteration_bounds = array<i64: 2, 2, 2>, scalar_prefetch = 0 : i64, scratch_operands = 3 : i64, tpu.core_type = #tpu.core_type<tc>, window_params = [{transform_indices = @transform_0, window_bounds = array<i64: 1, 16, 256>}, {pipeline_mode = #tpu.pipeline_mode<synchronous>, transform_indices = @transform_1, window_bounds = array<i64: 1, 256>}, {pipeline_mode = #tpu.pipeline_mode<synchronous>, transform_indices = @transform_2, window_bounds = array<i64: 1, 256>}, {transform_indices = @transform_3, window_bounds = array<i64: 1, 1, 256>}, {transform_indices = @transform_4, window_bounds = array<i64: 1, 1, 256>}, {transform_indices = @transform_5, window_bounds = array<i64: 1, 256, 768>}, {transform_indices = @transform_6, window_bounds = array<i64: 1, 1, 768>}, {transform_indices = @transform_7, window_bounds = array<i64: 1, 256, 256>}, {transform_indices = @transform_8, window_bounds = array<i64: 1, 1, 256>}, {transform_indices = @transform_9, window_bounds = array<i64: 1, 1, 256>}, {transform_indices = @transform_10, window_bounds = array<i64: 1, 1, 256>}, {transform_indices = @transform_11, window_bounds = array<i64: 1, 256, 512>}, {transform_indices = @transform_12, window_bounds = array<i64: 1, 1, 512>}, {transform_indices = @transform_13, window_bounds = array<i64: 1, 512, 256>}, {transform_indices = @transform_14, window_bounds = array<i64: 1, 1, 256>}, {transform_indices = @transform_15, window_bounds = array<i64: 1, 16, 256>}]} {
    %c0_i32 = arith.constant 0 : i32
    %0 = arith.cmpi eq, %arg1, %c0_i32 : i32
    %c0_i32_0 = arith.constant 0 : i32
    %1 = arith.cmpi eq, %arg2, %c0_i32_0 : i32
    %2 = arith.andi %0, %1 : i1
    %3 = arith.extui %2 : i1 to i32
    %c0_i32_1 = arith.constant 0 : i32
    %4 = arith.cmpi ne, %3, %c0_i32_1 : i32
    scf.if %4 {
      %c0_25 = arith.constant 0 : index
      %c0_26 = arith.constant 0 : index
      %c0_27 = arith.constant 0 : index
      %39 = vector.load %arg3[%c0_25, %c0_26, %c0_27] : memref<1x16x256xf32, #tpu.memory_space<vmem>>, vector<1x16x256xf32>
      %40 = vector.shape_cast %39 : vector<1x16x256xf32> to vector<16x256xf32>
      %c0_28 = arith.constant 0 : index
      %c0_29 = arith.constant 0 : index
      %41 = vector.load %arg4[%c0_28, %c0_29] : memref<1x256xf32, #tpu.memory_space<vmem>>, vector<1x256xf32>
      %c0_30 = arith.constant 0 : index
      %c0_31 = arith.constant 0 : index
      %42 = vector.load %arg5[%c0_30, %c0_31] : memref<1x256xf32, #tpu.memory_space<vmem>>, vector<1x256xf32>
      %cst_32 = arith.constant dense<0.000000e+00> : vector<16xf32>
      %43 = vector.multi_reduction <add>, %40, %cst_32 [1] : vector<16x256xf32> to vector<16xf32>
      %44 = vector.shape_cast %43 : vector<16xf32> to vector<16x1xf32>
      %cst_33 = arith.constant 2.560000e+02 : f32
      %45 = vector.broadcast %cst_33 : f32 to vector<16x1xf32>
      %46 = arith.divf %44, %45 : vector<16x1xf32>
      %47 = vector.broadcast %46 : vector<16x1xf32> to vector<16x256xf32>
      %48 = arith.subf %40, %47 : vector<16x256xf32>
      %49 = arith.mulf %48, %48 : vector<16x256xf32>
      %cst_34 = arith.constant dense<0.000000e+00> : vector<16xf32>
      %50 = vector.multi_reduction <add>, %49, %cst_34 [1] : vector<16x256xf32> to vector<16xf32>
      %51 = vector.shape_cast %50 : vector<16xf32> to vector<16x1xf32>
      %cst_35 = arith.constant 2.560000e+02 : f32
      %52 = vector.broadcast %cst_35 : f32 to vector<16x1xf32>
      %53 = arith.divf %51, %52 : vector<16x1xf32>
      %cst_36 = arith.constant 9.99999974E-6 : f32
      %54 = vector.broadcast %cst_36 : f32 to vector<16x1xf32>
      %55 = arith.addf %53, %54 : vector<16x1xf32>
      %56 = math.rsqrt %55 : vector<16x1xf32>
      %57 = vector.broadcast %56 : vector<16x1xf32> to vector<16x256xf32>
      %58 = arith.mulf %48, %57 : vector<16x256xf32>
      %59 = vector.broadcast %41 : vector<1x256xf32> to vector<16x256xf32>
      %60 = arith.mulf %58, %59 : vector<16x256xf32>
      %61 = vector.broadcast %42 : vector<1x256xf32> to vector<16x256xf32>
      %62 = arith.addf %60, %61 : vector<16x256xf32>
      %c0_37 = arith.constant 0 : index
      %c0_38 = arith.constant 0 : index
      %63 = vector.load %arg19[%c0_37, %c0_38] : memref<16x256xf32, #tpu.memory_space<vmem>>, vector<16x256xf32>
      tpu.vector_store %arg19[%c0_37, %c0_38], %62 {strides = array<i32>} : memref<16x256xf32, #tpu.memory_space<vmem>>, vector<16x256xf32>,
    } else {
    }
    %c0_i32_2 = arith.constant 0 : i32
    %5 = arith.cmpi eq, %arg2, %c0_i32_2 : i32
    %6 = arith.extui %5 : i1 to i32
    %c0_i32_3 = arith.constant 0 : i32
    %7 = arith.cmpi ne, %6, %c0_i32_3 : i32
    scf.if %7 {
      %c0_25 = arith.constant 0 : index
      %c0_26 = arith.constant 0 : index
      %39 = vector.load %arg19[%c0_25, %c0_26] : memref<16x256xf32, #tpu.memory_space<vmem>>, vector<16x256xf32>
      %c0_27 = arith.constant 0 : index
      %c0_28 = arith.constant 0 : index
      %c0_29 = arith.constant 0 : index
      %40 = vector.load %arg6[%c0_27, %c0_28, %c0_29] : memref<1x1x256xf32, #tpu.memory_space<vmem>>, vector<1x1x256xf32>
      %41 = vector.shape_cast %40 : vector<1x1x256xf32> to vector<1x256xf32>
      %c0_30 = arith.constant 0 : index
      %c0_31 = arith.constant 0 : index
      %c0_32 = arith.constant 0 : index
      %42 = vector.load %arg7[%c0_30, %c0_31, %c0_32] : memref<1x1x256xf32, #tpu.memory_space<vmem>>, vector<1x1x256xf32>
      %43 = vector.shape_cast %42 : vector<1x1x256xf32> to vector<1x256xf32>
      %cst_33 = arith.constant dense<0.000000e+00> : vector<16xf32>
      %44 = vector.multi_reduction <add>, %39, %cst_33 [1] : vector<16x256xf32> to vector<16xf32>
      %45 = vector.shape_cast %44 : vector<16xf32> to vector<16x1xf32>
      %cst_34 = arith.constant 2.560000e+02 : f32
      %46 = vector.broadcast %cst_34 : f32 to vector<16x1xf32>
      %47 = arith.divf %45, %46 : vector<16x1xf32>
      %48 = vector.broadcast %47 : vector<16x1xf32> to vector<16x256xf32>
      %49 = arith.subf %39, %48 : vector<16x256xf32>
      %50 = arith.mulf %49, %49 : vector<16x256xf32>
      %cst_35 = arith.constant dense<0.000000e+00> : vector<16xf32>
      %51 = vector.multi_reduction <add>, %50, %cst_35 [1] : vector<16x256xf32> to vector<16xf32>
      %52 = vector.shape_cast %51 : vector<16xf32> to vector<16x1xf32>
      %cst_36 = arith.constant 2.560000e+02 : f32
      %53 = vector.broadcast %cst_36 : f32 to vector<16x1xf32>
      %54 = arith.divf %52, %53 : vector<16x1xf32>
      %cst_37 = arith.constant 9.99999974E-6 : f32
      %55 = vector.broadcast %cst_37 : f32 to vector<16x1xf32>
      %56 = arith.addf %54, %55 : vector<16x1xf32>
      %57 = math.rsqrt %56 : vector<16x1xf32>
      %58 = vector.broadcast %57 : vector<16x1xf32> to vector<16x256xf32>
      %59 = arith.mulf %49, %58 : vector<16x256xf32>
      %60 = vector.broadcast %41 : vector<1x256xf32> to vector<16x256xf32>
      %61 = arith.mulf %59, %60 : vector<16x256xf32>
      %62 = vector.broadcast %43 : vector<1x256xf32> to vector<16x256xf32>
      %63 = arith.addf %61, %62 : vector<16x256xf32>
      %64 = arith.truncf %63 : vector<16x256xf32> to vector<16x256xbf16>
      %c0_38 = arith.constant 0 : index
      %c0_39 = arith.constant 0 : index
      %c0_40 = arith.constant 0 : index
      %65 = vector.load %arg8[%c0_38, %c0_39, %c0_40] : memref<1x256x768xbf16, #tpu.memory_space<vmem>>, vector<1x256x768xbf16>
      %66 = vector.shape_cast %65 : vector<1x256x768xbf16> to vector<256x768xbf16>
      %cst_41 = arith.constant dense<0.000000e+00> : vector<16x768xf32>
      %67 = tpu.matmul %64, %66, %cst_41 {dimension_numbers = #tpu.dot_dimension_numbers<[1], [0], [0], [1], [0, 0, 1, 1], [], []>} : vector<16x256xbf16>, vector<256x768xbf16>, vector<16x768xf32> -> vector<16x768xf32>
      %c0_42 = arith.constant 0 : index
      %c0_43 = arith.constant 0 : index
      %c0_44 = arith.constant 0 : index
      %68 = vector.load %arg9[%c0_42, %c0_43, %c0_44] : memref<1x1x768xf32, #tpu.memory_space<vmem>>, vector<1x1x768xf32>
      %69 = vector.shape_cast %68 : vector<1x1x768xf32> to vector<1x768xf32>
      %70 = vector.broadcast %69 : vector<1x768xf32> to vector<16x768xf32>
      %71 = arith.addf %67, %70 : vector<16x768xf32>
      %72 = arith.truncf %71 : vector<16x768xf32> to vector<16x768xbf16>
      %73 = vector.extract_strided_slice %72 {offsets = [0, 0], sizes = [16, 128], strides = [1, 1]} : vector<16x768xbf16> to vector<16x128xbf16>
      %74 = vector.extract_strided_slice %72 {offsets = [0, 256], sizes = [16, 128], strides = [1, 1]} : vector<16x768xbf16> to vector<16x128xbf16>
      %75 = vector.extract_strided_slice %72 {offsets = [0, 512], sizes = [16, 128], strides = [1, 1]} : vector<16x768xbf16> to vector<16x128xbf16>
      "tpu.trace_start"() <{level = 10 : i32, message = "qd,kd->qk"}> : () -> ()
      %cst_45 = arith.constant dense<0.000000e+00> : vector<16x16xf32>
      %76 = tpu.matmul %73, %74, %cst_45 {dimension_numbers = #tpu.dot_dimension_numbers<[1], [1], [0], [0], [0, 0, 1, 0], [], []>} : vector<16x128xbf16>, vector<16x128xbf16>, vector<16x16xf32> -> vector<16x16xf32>
      "tpu.trace_stop"() : () -> ()
      %cst_46 = arith.constant 0.0883883461 : f32
      %77 = vector.broadcast %cst_46 : f32 to vector<16x16xf32>
      %78 = arith.mulf %76, %77 : vector<16x16xf32>
      %cst_47 = arith.constant dense<0xFF800000> : vector<16xf32>
      %79 = vector.multi_reduction <maximumf>, %78, %cst_47 [1] : vector<16x16xf32> to vector<16xf32>
      %80 = vector.shape_cast %79 : vector<16xf32> to vector<16x1xf32>
      %81 = vector.broadcast %80 : vector<16x1xf32> to vector<16x16xf32>
      %82 = arith.subf %78, %81 : vector<16x16xf32>
      %83 = math.exp %82 : vector<16x16xf32>
      %cst_48 = arith.constant dense<0.000000e+00> : vector<16xf32>
      %84 = vector.multi_reduction <add>, %83, %cst_48 [1] : vector<16x16xf32> to vector<16xf32>
      %85 = vector.shape_cast %84 : vector<16xf32> to vector<16x1xf32>
      %86 = vector.broadcast %85 : vector<16x1xf32> to vector<16x16xf32>
      %87 = arith.divf %83, %86 : vector<16x16xf32>
      %88 = arith.truncf %87 : vector<16x16xf32> to vector<16x16xbf16>
      %cst_49 = arith.constant dense<0.000000e+00> : vector<16x128xf32>
      %89 = tpu.matmul %88, %75, %cst_49 {dimension_numbers = #tpu.dot_dimension_numbers<[1], [0], [0], [1], [0, 0, 1, 1], [], []>} : vector<16x16xbf16>, vector<16x128xbf16>, vector<16x128xf32> -> vector<16x128xf32>
      %90 = arith.truncf %89 : vector<16x128xf32> to vector<16x128xbf16>
      %91 = vector.extract_strided_slice %72 {offsets = [0, 128], sizes = [16, 128], strides = [1, 1]} : vector<16x768xbf16> to vector<16x128xbf16>
      %92 = vector.extract_strided_slice %72 {offsets = [0, 384], sizes = [16, 128], strides = [1, 1]} : vector<16x768xbf16> to vector<16x128xbf16>
      %93 = vector.extract_strided_slice %72 {offsets = [0, 640], sizes = [16, 128], strides = [1, 1]} : vector<16x768xbf16> to vector<16x128xbf16>
      "tpu.trace_start"() <{level = 10 : i32, message = "qd,kd->qk"}> : () -> ()
      %cst_50 = arith.constant dense<0.000000e+00> : vector<16x16xf32>
      %94 = tpu.matmul %91, %92, %cst_50 {dimension_numbers = #tpu.dot_dimension_numbers<[1], [1], [0], [0], [0, 0, 1, 0], [], []>} : vector<16x128xbf16>, vector<16x128xbf16>, vector<16x16xf32> -> vector<16x16xf32>
      "tpu.trace_stop"() : () -> ()
      %cst_51 = arith.constant 0.0883883461 : f32
      %95 = vector.broadcast %cst_51 : f32 to vector<16x16xf32>
      %96 = arith.mulf %94, %95 : vector<16x16xf32>
      %cst_52 = arith.constant dense<0xFF800000> : vector<16xf32>
      %97 = vector.multi_reduction <maximumf>, %96, %cst_52 [1] : vector<16x16xf32> to vector<16xf32>
      %98 = vector.shape_cast %97 : vector<16xf32> to vector<16x1xf32>
      %99 = vector.broadcast %98 : vector<16x1xf32> to vector<16x16xf32>
      %100 = arith.subf %96, %99 : vector<16x16xf32>
      %101 = math.exp %100 : vector<16x16xf32>
      %cst_53 = arith.constant dense<0.000000e+00> : vector<16xf32>
      %102 = vector.multi_reduction <add>, %101, %cst_53 [1] : vector<16x16xf32> to vector<16xf32>
      %103 = vector.shape_cast %102 : vector<16xf32> to vector<16x1xf32>
      %104 = vector.broadcast %103 : vector<16x1xf32> to vector<16x16xf32>
      %105 = arith.divf %101, %104 : vector<16x16xf32>
      %106 = arith.truncf %105 : vector<16x16xf32> to vector<16x16xbf16>
      %cst_54 = arith.constant dense<0.000000e+00> : vector<16x128xf32>
      %107 = tpu.matmul %106, %93, %cst_54 {dimension_numbers = #tpu.dot_dimension_numbers<[1], [0], [0], [1], [0, 0, 1, 1], [], []>} : vector<16x16xbf16>, vector<16x128xbf16>, vector<16x128xf32> -> vector<16x128xf32>
      %108 = arith.truncf %107 : vector<16x128xf32> to vector<16x128xbf16>
      %109 = tpu.concatenate %90, %108 in 1 : vector<16x128xbf16>, vector<16x128xbf16> -> vector<16x256xbf16>
      %c0_55 = arith.constant 0 : index
      %c0_56 = arith.constant 0 : index
      %c0_57 = arith.constant 0 : index
      %110 = vector.load %arg10[%c0_55, %c0_56, %c0_57] : memref<1x256x256xbf16, #tpu.memory_space<vmem>>, vector<1x256x256xbf16>
      %111 = vector.shape_cast %110 : vector<1x256x256xbf16> to vector<256x256xbf16>
      %cst_58 = arith.constant dense<0.000000e+00> : vector<16x256xf32>
      %112 = tpu.matmul %109, %111, %cst_58 {dimension_numbers = #tpu.dot_dimension_numbers<[1], [0], [0], [1], [0, 0, 1, 1], [], []>} : vector<16x256xbf16>, vector<256x256xbf16>, vector<16x256xf32> -> vector<16x256xf32>
      %c0_59 = arith.constant 0 : index
      %c0_60 = arith.constant 0 : index
      %c0_61 = arith.constant 0 : index
      %113 = vector.load %arg11[%c0_59, %c0_60, %c0_61] : memref<1x1x256xf32, #tpu.memory_space<vmem>>, vector<1x1x256xf32>
      %114 = vector.shape_cast %113 : vector<1x1x256xf32> to vector<1x256xf32>
      %115 = vector.broadcast %114 : vector<1x256xf32> to vector<16x256xf32>
      %116 = arith.addf %112, %115 : vector<16x256xf32>
      %117 = arith.addf %39, %116 : vector<16x256xf32>
      %c0_62 = arith.constant 0 : index
      %c0_63 = arith.constant 0 : index
      %118 = vector.load %arg19[%c0_62, %c0_63] : memref<16x256xf32, #tpu.memory_space<vmem>>, vector<16x256xf32>
      tpu.vector_store %arg19[%c0_62, %c0_63], %117 {strides = array<i32>} : memref<16x256xf32, #tpu.memory_space<vmem>>, vector<16x256xf32>,
      %c0_64 = arith.constant 0 : index
      %c0_65 = arith.constant 0 : index
      %c0_66 = arith.constant 0 : index
      %119 = vector.load %arg12[%c0_64, %c0_65, %c0_66] : memref<1x1x256xf32, #tpu.memory_space<vmem>>, vector<1x1x256xf32>
      %120 = vector.shape_cast %119 : vector<1x1x256xf32> to vector<1x256xf32>
      %c0_67 = arith.constant 0 : index
      %c0_68 = arith.constant 0 : index
      %c0_69 = arith.constant 0 : index
      %121 = vector.load %arg13[%c0_67, %c0_68, %c0_69] : memref<1x1x256xf32, #tpu.memory_space<vmem>>, vector<1x1x256xf32>
      %122 = vector.shape_cast %121 : vector<1x1x256xf32> to vector<1x256xf32>
      %cst_70 = arith.constant dense<0.000000e+00> : vector<16xf32>
      %123 = vector.multi_reduction <add>, %117, %cst_70 [1] : vector<16x256xf32> to vector<16xf32>
      %124 = vector.shape_cast %123 : vector<16xf32> to vector<16x1xf32>
      %cst_71 = arith.constant 2.560000e+02 : f32
      %125 = vector.broadcast %cst_71 : f32 to vector<16x1xf32>
      %126 = arith.divf %124, %125 : vector<16x1xf32>
      %127 = vector.broadcast %126 : vector<16x1xf32> to vector<16x256xf32>
      %128 = arith.subf %117, %127 : vector<16x256xf32>
      %129 = arith.mulf %128, %128 : vector<16x256xf32>
      %cst_72 = arith.constant dense<0.000000e+00> : vector<16xf32>
      %130 = vector.multi_reduction <add>, %129, %cst_72 [1] : vector<16x256xf32> to vector<16xf32>
      %131 = vector.shape_cast %130 : vector<16xf32> to vector<16x1xf32>
      %cst_73 = arith.constant 2.560000e+02 : f32
      %132 = vector.broadcast %cst_73 : f32 to vector<16x1xf32>
      %133 = arith.divf %131, %132 : vector<16x1xf32>
      %cst_74 = arith.constant 9.99999974E-6 : f32
      %134 = vector.broadcast %cst_74 : f32 to vector<16x1xf32>
      %135 = arith.addf %133, %134 : vector<16x1xf32>
      %136 = math.rsqrt %135 : vector<16x1xf32>
      %137 = vector.broadcast %136 : vector<16x1xf32> to vector<16x256xf32>
      %138 = arith.mulf %128, %137 : vector<16x256xf32>
      %139 = vector.broadcast %120 : vector<1x256xf32> to vector<16x256xf32>
      %140 = arith.mulf %138, %139 : vector<16x256xf32>
      %141 = vector.broadcast %122 : vector<1x256xf32> to vector<16x256xf32>
      %142 = arith.addf %140, %141 : vector<16x256xf32>
      %143 = arith.truncf %142 : vector<16x256xf32> to vector<16x256xbf16>
      %c0_75 = arith.constant 0 : index
      %c0_76 = arith.constant 0 : index
      %144 = vector.load %arg20[%c0_75, %c0_76] : memref<16x256xbf16, #tpu.memory_space<vmem>>, vector<16x256xbf16>
      tpu.vector_store %arg20[%c0_75, %c0_76], %143 {strides = array<i32>} : memref<16x256xbf16, #tpu.memory_space<vmem>>, vector<16x256xbf16>,
      %cst_77 = arith.constant 0.000000e+00 : f32
      %145 = vector.broadcast %cst_77 : f32 to vector<16x256xf32>
      %c0_78 = arith.constant 0 : index
      %c0_79 = arith.constant 0 : index
      %146 = vector.load %arg21[%c0_78, %c0_79] : memref<16x256xf32, #tpu.memory_space<vmem>>, vector<16x256xf32>
      tpu.vector_store %arg21[%c0_78, %c0_79], %145 {strides = array<i32>} : memref<16x256xf32, #tpu.memory_space<vmem>>, vector<16x256xf32>,
    } else {
    }
    %c0 = arith.constant 0 : index
    %c0_4 = arith.constant 0 : index
    %8 = vector.load %arg20[%c0, %c0_4] : memref<16x256xbf16, #tpu.memory_space<vmem>>, vector<16x256xbf16>
    %c0_5 = arith.constant 0 : index
    %c0_6 = arith.constant 0 : index
    %c0_7 = arith.constant 0 : index
    %9 = vector.load %arg14[%c0_5, %c0_6, %c0_7] : memref<1x256x512xbf16, #tpu.memory_space<vmem>>, vector<1x256x512xbf16>
    %10 = vector.shape_cast %9 : vector<1x256x512xbf16> to vector<256x512xbf16>
    %cst = arith.constant dense<0.000000e+00> : vector<16x512xf32>
    %11 = tpu.matmul %8, %10, %cst {dimension_numbers = #tpu.dot_dimension_numbers<[1], [0], [0], [1], [0, 0, 1, 1], [], []>} : vector<16x256xbf16>, vector<256x512xbf16>, vector<16x512xf32> -> vector<16x512xf32>
    %c0_8 = arith.constant 0 : index
    %c0_9 = arith.constant 0 : index
    %c0_10 = arith.constant 0 : index
    %12 = vector.load %arg15[%c0_8, %c0_9, %c0_10] : memref<1x1x512xf32, #tpu.memory_space<vmem>>, vector<1x1x512xf32>
    %13 = vector.shape_cast %12 : vector<1x1x512xf32> to vector<1x512xf32>
    %14 = vector.broadcast %13 : vector<1x512xf32> to vector<16x512xf32>
    %15 = arith.addf %11, %14 : vector<16x512xf32>
    %cst_11 = arith.constant 1.702000e+00 : f32
    %16 = vector.broadcast %cst_11 : f32 to vector<16x512xf32>
    %17 = arith.mulf %16, %15 : vector<16x512xf32>
    %18 = arith.negf %17 : vector<16x512xf32>
    %19 = math.exp %18 : vector<16x512xf32>
    %cst_12 = arith.constant 1.000000e+00 : f32
    %20 = vector.broadcast %cst_12 : f32 to vector<16x512xf32>
    %21 = arith.addf %20, %19 : vector<16x512xf32>
    %22 = arith.divf %20, %21 : vector<16x512xf32>
    %23 = arith.mulf %15, %22 : vector<16x512xf32>
    %c0_13 = arith.constant 0 : index
    %c0_14 = arith.constant 0 : index
    %24 = vector.load %arg21[%c0_13, %c0_14] : memref<16x256xf32, #tpu.memory_space<vmem>>, vector<16x256xf32>
    %25 = arith.truncf %23 : vector<16x512xf32> to vector<16x512xbf16>
    %c0_15 = arith.constant 0 : index
    %c0_16 = arith.constant 0 : index
    %c0_17 = arith.constant 0 : index
    %26 = vector.load %arg16[%c0_15, %c0_16, %c0_17] : memref<1x512x256xbf16, #tpu.memory_space<vmem>>, vector<1x512x256xbf16>
    %27 = vector.shape_cast %26 : vector<1x512x256xbf16> to vector<512x256xbf16>
    %cst_18 = arith.constant dense<0.000000e+00> : vector<16x256xf32>
    %28 = tpu.matmul %25, %27, %cst_18 {dimension_numbers = #tpu.dot_dimension_numbers<[1], [0], [0], [1], [0, 0, 1, 1], [], []>} : vector<16x512xbf16>, vector<512x256xbf16>, vector<16x256xf32> -> vector<16x256xf32>
    %29 = arith.addf %24, %28 : vector<16x256xf32>
    %c0_19 = arith.constant 0 : index
    %c0_20 = arith.constant 0 : index
    %30 = vector.load %arg21[%c0_19, %c0_20] : memref<16x256xf32, #tpu.memory_space<vmem>>, vector<16x256xf32>
    tpu.vector_store %arg21[%c0_19, %c0_20], %29 {strides = array<i32>} : memref<16x256xf32, #tpu.memory_space<vmem>>, vector<16x256xf32>,
    %c1_i32 = arith.constant 1 : i32
    %31 = arith.cmpi eq, %arg2, %c1_i32 : i32
    %32 = arith.extui %31 : i1 to i32
    %c0_i32_21 = arith.constant 0 : i32
    %33 = arith.cmpi ne, %32, %c0_i32_21 : i32
    scf.if %33 {
      %c0_25 = arith.constant 0 : index
      %c0_26 = arith.constant 0 : index
      %39 = vector.load %arg19[%c0_25, %c0_26] : memref<16x256xf32, #tpu.memory_space<vmem>>, vector<16x256xf32>
      %c0_27 = arith.constant 0 : index
      %c0_28 = arith.constant 0 : index
      %40 = vector.load %arg21[%c0_27, %c0_28] : memref<16x256xf32, #tpu.memory_space<vmem>>, vector<16x256xf32>
      %41 = arith.addf %39, %40 : vector<16x256xf32>
      %c0_29 = arith.constant 0 : index
      %c0_30 = arith.constant 0 : index
      %c0_31 = arith.constant 0 : index
      %42 = vector.load %arg17[%c0_29, %c0_30, %c0_31] : memref<1x1x256xf32, #tpu.memory_space<vmem>>, vector<1x1x256xf32>
      %43 = vector.shape_cast %42 : vector<1x1x256xf32> to vector<1x256xf32>
      %44 = vector.broadcast %43 : vector<1x256xf32> to vector<16x256xf32>
      %45 = arith.addf %41, %44 : vector<16x256xf32>
      %c0_32 = arith.constant 0 : index
      %c0_33 = arith.constant 0 : index
      %46 = vector.load %arg19[%c0_32, %c0_33] : memref<16x256xf32, #tpu.memory_space<vmem>>, vector<16x256xf32>
      tpu.vector_store %arg19[%c0_32, %c0_33], %45 {strides = array<i32>} : memref<16x256xf32, #tpu.memory_space<vmem>>, vector<16x256xf32>,
    } else {
    }
    %c1_i32_22 = arith.constant 1 : i32
    %34 = arith.cmpi eq, %arg2, %c1_i32_22 : i32
    %c1_i32_23 = arith.constant 1 : i32
    %35 = arith.cmpi eq, %arg1, %c1_i32_23 : i32
    %36 = arith.andi %34, %35 : i1
    %37 = arith.extui %36 : i1 to i32
    %c0_i32_24 = arith.constant 0 : i32
    %38 = arith.cmpi ne, %37, %c0_i32_24 : i32
    scf.if %38 {
      %c0_25 = arith.constant 0 : index
      %c0_26 = arith.constant 0 : index
      %39 = vector.load %arg19[%c0_25, %c0_26] : memref<16x256xf32, #tpu.memory_space<vmem>>, vector<16x256xf32>
      %c0_27 = arith.constant 0 : index
      %c0_28 = arith.constant 0 : index
      %c0_29 = arith.constant 0 : index
      %40 = vector.load %arg18[%c0_27, %c0_28, %c0_29] : memref<1x16x256xf32, #tpu.memory_space<vmem>>, vector<1x16x256xf32>
      %41 = vector.shape_cast %40 : vector<1x16x256xf32> to vector<16x256xf32>
      %42 = vector.shape_cast %39 : vector<16x256xf32> to vector<1x16x256xf32>
      tpu.vector_store %arg18[%c0_27, %c0_28, %c0_29], %42 {strides = array<i32>} : memref<1x16x256xf32, #tpu.memory_space<vmem>>, vector<1x16x256xf32>,
    } else {
    }
    return
  }
  func.func @transform_0(%arg0: i32, %arg1: i32, %arg2: i32) -> (i32, i32, i32) {
    %c0_i32 = arith.constant 0 : i32
    %c0_i32_0 = arith.constant 0 : i32
    %c0_i32_1 = arith.constant 0 : i32
    return %arg0, %c0_i32, %c0_i32_0 : i32, i32, i32
  }
  func.func @transform_1(%arg0: i32, %arg1: i32, %arg2: i32) -> (i32, i32) {
    %c0_i32 = arith.constant 0 : i32
    %c0_i32_0 = arith.constant 0 : i32
    %c0_i32_1 = arith.constant 0 : i32
    return %c0_i32, %c0_i32_0 : i32, i32
  }
  func.func @transform_2(%arg0: i32, %arg1: i32, %arg2: i32) -> (i32, i32) {
    %c0_i32 = arith.constant 0 : i32
    %c0_i32_0 = arith.constant 0 : i32
    %c0_i32_1 = arith.constant 0 : i32
    return %c0_i32, %c0_i32_0 : i32, i32
  }
  func.func @transform_3(%arg0: i32, %arg1: i32, %arg2: i32) -> (i32, i32, i32) {
    %c0_i32 = arith.constant 0 : i32
    %c0_i32_0 = arith.constant 0 : i32
    %c0_i32_1 = arith.constant 0 : i32
    return %arg1, %c0_i32, %c0_i32_0 : i32, i32, i32
  }
  func.func @transform_4(%arg0: i32, %arg1: i32, %arg2: i32) -> (i32, i32, i32) {
    %c0_i32 = arith.constant 0 : i32
    %c0_i32_0 = arith.constant 0 : i32
    %c0_i32_1 = arith.constant 0 : i32
    return %arg1, %c0_i32, %c0_i32_0 : i32, i32, i32
  }
  func.func @transform_5(%arg0: i32, %arg1: i32, %arg2: i32) -> (i32, i32, i32) {
    %c0_i32 = arith.constant 0 : i32
    %c0_i32_0 = arith.constant 0 : i32
    %c0_i32_1 = arith.constant 0 : i32
    return %arg1, %c0_i32, %c0_i32_0 : i32, i32, i32
  }
  func.func @transform_6(%arg0: i32, %arg1: i32, %arg2: i32) -> (i32, i32, i32) {
    %c0_i32 = arith.constant 0 : i32
    %c0_i32_0 = arith.constant 0 : i32
    %c0_i32_1 = arith.constant 0 : i32
    return %arg1, %c0_i32, %c0_i32_0 : i32, i32, i32
  }
  func.func @transform_7(%arg0: i32, %arg1: i32, %arg2: i32) -> (i32, i32, i32) {
    %c0_i32 = arith.constant 0 : i32
    %c0_i32_0 = arith.constant 0 : i32
    %c0_i32_1 = arith.constant 0 : i32
    return %arg1, %c0_i32, %c0_i32_0 : i32, i32, i32
  }
  func.func @transform_8(%arg0: i32, %arg1: i32, %arg2: i32) -> (i32, i32, i32) {
    %c0_i32 = arith.constant 0 : i32
    %c0_i32_0 = arith.constant 0 : i32
    %c0_i32_1 = arith.constant 0 : i32
    return %arg1, %c0_i32, %c0_i32_0 : i32, i32, i32
  }
  func.func @transform_9(%arg0: i32, %arg1: i32, %arg2: i32) -> (i32, i32, i32) {
    %c0_i32 = arith.constant 0 : i32
    %c0_i32_0 = arith.constant 0 : i32
    %c0_i32_1 = arith.constant 0 : i32
    return %arg1, %c0_i32, %c0_i32_0 : i32, i32, i32
  }
  func.func @transform_10(%arg0: i32, %arg1: i32, %arg2: i32) -> (i32, i32, i32) {
    %c0_i32 = arith.constant 0 : i32
    %c0_i32_0 = arith.constant 0 : i32
    %c0_i32_1 = arith.constant 0 : i32
    return %arg1, %c0_i32, %c0_i32_0 : i32, i32, i32
  }
  func.func @transform_11(%arg0: i32, %arg1: i32, %arg2: i32) -> (i32, i32, i32) {
    %c0_i32 = arith.constant 0 : i32
    %c0_i32_0 = arith.constant 0 : i32
    return %arg1, %c0_i32, %arg2 : i32, i32, i32
  }
  func.func @transform_12(%arg0: i32, %arg1: i32, %arg2: i32) -> (i32, i32, i32) {
    %c0_i32 = arith.constant 0 : i32
    %c0_i32_0 = arith.constant 0 : i32
    return %arg1, %c0_i32, %arg2 : i32, i32, i32
  }
  func.func @transform_13(%arg0: i32, %arg1: i32, %arg2: i32) -> (i32, i32, i32) {
    %c0_i32 = arith.constant 0 : i32
    %c0_i32_0 = arith.constant 0 : i32
    return %arg1, %arg2, %c0_i32 : i32, i32, i32
  }
  func.func @transform_14(%arg0: i32, %arg1: i32, %arg2: i32) -> (i32, i32, i32) {
    %c0_i32 = arith.constant 0 : i32
    %c0_i32_0 = arith.constant 0 : i32
    %c0_i32_1 = arith.constant 0 : i32
    return %arg1, %c0_i32, %c0_i32_0 : i32, i32, i32
  }
  func.func @transform_15(%arg0: i32, %arg1: i32, %arg2: i32) -> (i32, i32, i32) {
    %c0_i32 = arith.constant 0 : i32
    %c0_i32_0 = arith.constant 0 : i32
    %c0_i32_1 = arith.constant 0 : i32
    return %arg0, %c0_i32, %c0_i32_0 : i32, i32, i32
  }
}

module attributes {stable_mosaic.version = 11 : i64} {
  func.func @_head_kernel(%arg0: i32, %arg1: memref<16x256xf32, #tpu.memory_space<vmem>>, %arg2: memref<1x256xf32, #tpu.memory_space<vmem>>, %arg3: memref<1x256xf32, #tpu.memory_space<vmem>>, %arg4: memref<256x32xbf16, #tpu.memory_space<vmem>>, %arg5: memref<1x32xf32, #tpu.memory_space<vmem>>, %arg6: memref<32x1xbf16, #tpu.memory_space<vmem>>, %arg7: memref<1x1xf32, #tpu.memory_space<vmem>>, %arg8: memref<16x1xf32, #tpu.memory_space<vmem>>) attributes {dimension_semantics = [#tpu.dimension_semantics<arbitrary>], iteration_bounds = array<i64: 1>, scalar_prefetch = 0 : i64, scratch_operands = 0 : i64, tpu.core_type = #tpu.core_type<tc>, window_params = [{pipeline_mode = #tpu.pipeline_mode<synchronous>, transform_indices = @transform_0, window_bounds = array<i64: 16, 256>}, {pipeline_mode = #tpu.pipeline_mode<synchronous>, transform_indices = @transform_1, window_bounds = array<i64: 1, 256>}, {pipeline_mode = #tpu.pipeline_mode<synchronous>, transform_indices = @transform_2, window_bounds = array<i64: 1, 256>}, {pipeline_mode = #tpu.pipeline_mode<synchronous>, transform_indices = @transform_3, window_bounds = array<i64: 256, 32>}, {pipeline_mode = #tpu.pipeline_mode<synchronous>, transform_indices = @transform_4, window_bounds = array<i64: 1, 32>}, {pipeline_mode = #tpu.pipeline_mode<synchronous>, transform_indices = @transform_5, window_bounds = array<i64: 32, 1>}, {pipeline_mode = #tpu.pipeline_mode<synchronous>, transform_indices = @transform_6, window_bounds = array<i64: 1, 1>}, {pipeline_mode = #tpu.pipeline_mode<synchronous>, transform_indices = @transform_7, window_bounds = array<i64: 16, 1>}]} {
    %c0 = arith.constant 0 : index
    %c0_0 = arith.constant 0 : index
    %0 = vector.load %arg1[%c0, %c0_0] : memref<16x256xf32, #tpu.memory_space<vmem>>, vector<16x256xf32>
    %c0_1 = arith.constant 0 : index
    %c0_2 = arith.constant 0 : index
    %1 = vector.load %arg2[%c0_1, %c0_2] : memref<1x256xf32, #tpu.memory_space<vmem>>, vector<1x256xf32>
    %c0_3 = arith.constant 0 : index
    %c0_4 = arith.constant 0 : index
    %2 = vector.load %arg3[%c0_3, %c0_4] : memref<1x256xf32, #tpu.memory_space<vmem>>, vector<1x256xf32>
    %cst = arith.constant dense<0.000000e+00> : vector<16xf32>
    %3 = vector.multi_reduction <add>, %0, %cst [1] : vector<16x256xf32> to vector<16xf32>
    %4 = vector.shape_cast %3 : vector<16xf32> to vector<16x1xf32>
    %cst_5 = arith.constant 2.560000e+02 : f32
    %5 = vector.broadcast %cst_5 : f32 to vector<16x1xf32>
    %6 = arith.divf %4, %5 : vector<16x1xf32>
    %7 = vector.broadcast %6 : vector<16x1xf32> to vector<16x256xf32>
    %8 = arith.subf %0, %7 : vector<16x256xf32>
    %9 = arith.mulf %8, %8 : vector<16x256xf32>
    %cst_6 = arith.constant dense<0.000000e+00> : vector<16xf32>
    %10 = vector.multi_reduction <add>, %9, %cst_6 [1] : vector<16x256xf32> to vector<16xf32>
    %11 = vector.shape_cast %10 : vector<16xf32> to vector<16x1xf32>
    %cst_7 = arith.constant 2.560000e+02 : f32
    %12 = vector.broadcast %cst_7 : f32 to vector<16x1xf32>
    %13 = arith.divf %11, %12 : vector<16x1xf32>
    %cst_8 = arith.constant 9.99999974E-6 : f32
    %14 = vector.broadcast %cst_8 : f32 to vector<16x1xf32>
    %15 = arith.addf %13, %14 : vector<16x1xf32>
    %16 = math.rsqrt %15 : vector<16x1xf32>
    %17 = vector.broadcast %16 : vector<16x1xf32> to vector<16x256xf32>
    %18 = arith.mulf %8, %17 : vector<16x256xf32>
    %19 = vector.broadcast %1 : vector<1x256xf32> to vector<16x256xf32>
    %20 = arith.mulf %18, %19 : vector<16x256xf32>
    %21 = vector.broadcast %2 : vector<1x256xf32> to vector<16x256xf32>
    %22 = arith.addf %20, %21 : vector<16x256xf32>
    %23 = arith.truncf %22 : vector<16x256xf32> to vector<16x256xbf16>
    %c0_9 = arith.constant 0 : index
    %c0_10 = arith.constant 0 : index
    %24 = vector.load %arg4[%c0_9, %c0_10] : memref<256x32xbf16, #tpu.memory_space<vmem>>, vector<256x32xbf16>
    %cst_11 = arith.constant dense<0.000000e+00> : vector<16x32xf32>
    %25 = tpu.matmul %23, %24, %cst_11 {dimension_numbers = #tpu.dot_dimension_numbers<[1], [0], [0], [1], [0, 0, 1, 1], [], []>} : vector<16x256xbf16>, vector<256x32xbf16>, vector<16x32xf32> -> vector<16x32xf32>
    %c0_12 = arith.constant 0 : index
    %c0_13 = arith.constant 0 : index
    %26 = vector.load %arg5[%c0_12, %c0_13] : memref<1x32xf32, #tpu.memory_space<vmem>>, vector<1x32xf32>
    %27 = vector.broadcast %26 : vector<1x32xf32> to vector<16x32xf32>
    %28 = arith.addf %25, %27 : vector<16x32xf32>
    %29 = arith.mulf %28, %28 : vector<16x32xf32>
    %30 = arith.mulf %28, %29 : vector<16x32xf32>
    %cst_14 = arith.constant 4.471500e-02 : f32
    %31 = vector.broadcast %cst_14 : f32 to vector<16x32xf32>
    %32 = arith.mulf %31, %30 : vector<16x32xf32>
    %33 = arith.addf %28, %32 : vector<16x32xf32>
    %cst_15 = arith.constant 0.797884583 : f32
    %34 = vector.broadcast %cst_15 : f32 to vector<16x32xf32>
    %35 = arith.mulf %34, %33 : vector<16x32xf32>
    %36 = math.tanh %35 : vector<16x32xf32>
    %cst_16 = arith.constant 1.000000e+00 : f32
    %37 = vector.broadcast %cst_16 : f32 to vector<16x32xf32>
    %38 = arith.addf %37, %36 : vector<16x32xf32>
    %cst_17 = arith.constant 5.000000e-01 : f32
    %39 = vector.broadcast %cst_17 : f32 to vector<16x32xf32>
    %40 = arith.mulf %39, %38 : vector<16x32xf32>
    %41 = arith.mulf %28, %40 : vector<16x32xf32>
    %42 = arith.truncf %41 : vector<16x32xf32> to vector<16x32xbf16>
    %c0_18 = arith.constant 0 : index
    %c0_19 = arith.constant 0 : index
    %43 = vector.load %arg6[%c0_18, %c0_19] : memref<32x1xbf16, #tpu.memory_space<vmem>>, vector<32x1xbf16>
    %cst_20 = arith.constant dense<0.000000e+00> : vector<16x1xf32>
    %44 = tpu.matmul %42, %43, %cst_20 {dimension_numbers = #tpu.dot_dimension_numbers<[1], [0], [0], [1], [0, 0, 1, 1], [], []>} : vector<16x32xbf16>, vector<32x1xbf16>, vector<16x1xf32> -> vector<16x1xf32>
    %c0_21 = arith.constant 0 : index
    %c0_22 = arith.constant 0 : index
    %45 = vector.load %arg7[%c0_21, %c0_22] : memref<1x1xf32, #tpu.memory_space<vmem>>, vector<1x1xf32>
    %46 = vector.broadcast %45 : vector<1x1xf32> to vector<16x1xf32>
    %47 = arith.addf %44, %46 : vector<16x1xf32>
    %48 = math.tanh %47 : vector<16x1xf32>
    %c0_23 = arith.constant 0 : index
    %c0_24 = arith.constant 0 : index
    %49 = vector.load %arg8[%c0_23, %c0_24] : memref<16x1xf32, #tpu.memory_space<vmem>>, vector<16x1xf32>
    tpu.vector_store %arg8[%c0_23, %c0_24], %48 {strides = array<i32>} : memref<16x1xf32, #tpu.memory_space<vmem>>, vector<16x1xf32>,
    return
  }
  func.func @transform_0(%arg0: i32) -> (i32, i32) {
    %c0_i32 = arith.constant 0 : i32
    %c0_i32_0 = arith.constant 0 : i32
    %c0_i32_1 = arith.constant 0 : i32
    return %c0_i32, %c0_i32_0 : i32, i32
  }
  func.func @transform_1(%arg0: i32) -> (i32, i32) {
    %c0_i32 = arith.constant 0 : i32
    %c0_i32_0 = arith.constant 0 : i32
    %c0_i32_1 = arith.constant 0 : i32
    return %c0_i32, %c0_i32_0 : i32, i32
  }
  func.func @transform_2(%arg0: i32) -> (i32, i32) {
    %c0_i32 = arith.constant 0 : i32
    %c0_i32_0 = arith.constant 0 : i32
    %c0_i32_1 = arith.constant 0 : i32
    return %c0_i32, %c0_i32_0 : i32, i32
  }
  func.func @transform_3(%arg0: i32) -> (i32, i32) {
    %c0_i32 = arith.constant 0 : i32
    %c0_i32_0 = arith.constant 0 : i32
    %c0_i32_1 = arith.constant 0 : i32
    return %c0_i32, %c0_i32_0 : i32, i32
  }
  func.func @transform_4(%arg0: i32) -> (i32, i32) {
    %c0_i32 = arith.constant 0 : i32
    %c0_i32_0 = arith.constant 0 : i32
    %c0_i32_1 = arith.constant 0 : i32
    return %c0_i32, %c0_i32_0 : i32, i32
  }
  func.func @transform_5(%arg0: i32) -> (i32, i32) {
    %c0_i32 = arith.constant 0 : i32
    %c0_i32_0 = arith.constant 0 : i32
    %c0_i32_1 = arith.constant 0 : i32
    return %c0_i32, %c0_i32_0 : i32, i32
  }
  func.func @transform_6(%arg0: i32) -> (i32, i32) {
    %c0_i32 = arith.constant 0 : i32
    %c0_i32_0 = arith.constant 0 : i32
    %c0_i32_1 = arith.constant 0 : i32
    return %c0_i32, %c0_i32_0 : i32, i32
  }
  func.func @transform_7(%arg0: i32) -> (i32, i32) {
    %c0_i32 = arith.constant 0 : i32
    %c0_i32_0 = arith.constant 0 : i32
    %c0_i32_1 = arith.constant 0 : i32
    return %c0_i32, %c0_i32_0 : i32, i32
  }
}

</mosaic_0001>

<llo_original>
// kernel: scale_encoder_forward.3
$region0: #{scale_encoder_forward.3}
  #allocation0 [shape = 'u32[]', space=smem, size = 0x4, offset = 0x4, fixed_abs, tag = 'smem constant byte address 0x4 - core index']
  #allocation1 [shape = 'u32[72,128]{1,0:T(1,128)}', space=vmem, size = 0x9000, scoped, tag = 'internal scratch']
  #allocation2 [shape = 'f32[1,1]{1,0:T(1,128)S(1)}', space=vmem, size = 0x200, scoped, tag = 'scoped memory for scale_encoder_forward.3']
  %s0 = inlined_call_operand.vmem [shape: f32[16,256], index: 0, kind: input, shape index: {}]
  %s1 = inlined_call_operand.vmem [shape: f32[1,256], index: 1, kind: input, shape index: {}]
  %s2 = inlined_call_operand.vmem [shape: f32[1,256], index: 2, kind: input, shape index: {}]
  %s3 = inlined_call_operand.vmem [shape: bf16[256,32], index: 3, kind: input, shape index: {}]
  %s4 = inlined_call_operand.vmem [shape: f32[1,32], index: 4, kind: input, shape index: {}]
  %s5 = inlined_call_operand.vmem [shape: bf16[32,1], index: 5, kind: input, shape index: {}]
  %s6 = inlined_call_operand.<no memory space> [shape: f32[1,1], index: 6, kind: input, shape index: {}]
  %s7 = inlined_call_operand.vmem [shape: f32[16,1], index: 7, kind: output, shape index: {}]
  %s8 = sld [smem:[#allocation0]]
  $region38: #{scale_encoder_forward.3} parent=0
    _
  %s10 = ssub.s32 1, %s8
  %s11 = scalar_select 0, %s10, %s8
  %v12 = vstv %s6
  %13 = vst [vmem:[#allocation2] sm:$0x1] %v12
  // Predicated region
  $region2: #{scale_encoder_forward.3} parent=0 // pred_check
    _
  $region3: #{scale_encoder_forward.3} parent=0 // pred_check_branch
    %15 = sbr.rel (0) target = $region5
  $region4: #{scale_encoder_forward.3} parent=0 // pred_region
    _
  $region5: #{scale_encoder_forward.3} parent=0 // pred_fallthru
    _
  // Predicated region
  $region6: #{scale_encoder_forward.3} parent=0 // pred_check
    _
  $region7: #{scale_encoder_forward.3} parent=0 // pred_check_branch
    %17 = sbr.rel (0) target = $region9
  $region8: #{scale_encoder_forward.3} parent=0 // pred_region
    _
  $region9: #{scale_encoder_forward.3} parent=0 // pred_fallthru
    _
  // Predicated region
  $region10: #{scale_encoder_forward.3} parent=0 // pred_check
    _
  $region11: #{scale_encoder_forward.3} parent=0 // pred_check_branch
    %19 = sbr.rel (0) target = $region13
  $region12: #{scale_encoder_forward.3} parent=0 // pred_region
    _
  $region13: #{scale_encoder_forward.3} parent=0 // pred_fallthru
    _
  // Predicated region
  $region14: #{scale_encoder_forward.3} parent=0 // pred_check
    _
  $region15: #{scale_encoder_forward.3} parent=0 // pred_check_branch
    %21 = sbr.rel (0) target = $region17
  $region16: #{scale_encoder_forward.3} parent=0 // pred_region
    _
  $region17: #{scale_encoder_forward.3} parent=0 // pred_fallthru
    _
  // Predicated region
  $region18: #{scale_encoder_forward.3} parent=0 // pred_check
    _
  $region19: #{scale_encoder_forward.3} parent=0 // pred_check_branch
    %23 = sbr.rel (0) target = $region21
  $region20: #{scale_encoder_forward.3} parent=0 // pred_region
    _
  $region21: #{scale_encoder_forward.3} parent=0 // pred_fallthru
    _
  // Predicated region
  $region22: #{scale_encoder_forward.3} parent=0 // pred_check
    _
  $region23: #{scale_encoder_forward.3} parent=0 // pred_check_branch
    %25 = sbr.rel (0) target = $region25
  $region24: #{scale_encoder_forward.3} parent=0 // pred_region
    _
  $region25: #{scale_encoder_forward.3} parent=0 // pred_fallthru
    _
  // Predicated region
  $region26: #{scale_encoder_forward.3} parent=0 // pred_check
    _
  $region27: #{scale_encoder_forward.3} parent=0 // pred_check_branch
    %27 = sbr.rel (0) target = $region29
  $region28: #{scale_encoder_forward.3} parent=0 // pred_region
    _
  $region29: #{scale_encoder_forward.3} parent=0 // pred_fallthru
    _
  %v29 = vld [vmem:[%s0] sm:$0xff]
  %v30 = vld [vmem:[%s0 + $0x8] sm:$0xff]
  %v31 = vld [vmem:[%s0 + $0x10] sm:$0xff]
  %v32 = vld [vmem:[%s0 + $0x18] sm:$0xff]
  %v33 = vld [vmem:[%s1] sm:$0x3]
  %v34 = vld [vmem:[%s2] sm:$0x3]
  %v35 = vadd.f32 %v29, %v30
  %36 = vadd.xlane.f32.xlu0 %v35
  %v37 = vpop.xlane.xlu0 %36
  %v38 = vadd.f32 %v31, %v32
  %39 = vadd.xlane.f32.xlu0 %v38
  %v40 = vpop.xlane.xlu0 %39
  %v41 = vrcp.pop 256.0
  %v42 = vmul.f32 256.0, %v41
  %v43 = vsub.f32 1.0, %v42
  %v44 = vmul.f32 %v41, %v43
  %v45 = vadd.f32 %v41, %v44
  %vm46 = vweird.f32 %v41
  %v47 = vsel %vm46, %v41, %v45
  %v48 = vmul.f32 %v37, %v47
  %v49 = vmul.f32 %v40, %v47
  %v50 = vsub.f32 %v29, %v48
  %v51 = vsub.f32 %v30, %v48
  %v52 = vsub.f32 %v31, %v49
  %v53 = vsub.f32 %v32, %v49
  %v54 = vmul.f32 %v50, %v50
  %v55 = vmul.f32 %v51, %v51
  %v56 = vmul.f32 %v52, %v52
  %v57 = vmul.f32 %v53, %v53
  %v58 = vadd.f32 %v54, %v55
  %59 = vadd.xlane.f32.xlu0 %v58
  %v60 = vpop.xlane.xlu0 %59
  %v61 = vadd.f32 %v56, %v57
  %62 = vadd.xlane.f32.xlu0 %v61
  %v63 = vpop.xlane.xlu0 %62
  %v64 = vmul.f32 %v60, %v47
  %v65 = vmul.f32 %v63, %v47
  %v66 = vadd.f32 %v64, 1e-05
  %v67 = vadd.f32 %v65, 1e-05
  %v68 = vrsqrt.pop %v66
  %v69 = vmul.f32 %v68, %v66
  %v70 = vmul.f32 %v69, %v68
  %v71 = vmul.f32 0.5, %v70
  %v72 = vsub.f32 1.5, %v71
  %v73 = vmul.f32 %v68, %v72
  %vm74 = vweird.f32 %v66
  %vm75 = vweird.f32 %v68
  %vm76 = vmor %vm74, %vm75
  %v77 = vsel %vm76, %v68, %v73
  %v78 = vrsqrt.pop %v67
  %v79 = vmul.f32 %v78, %v67
  %v80 = vmul.f32 %v79, %v78
  %v81 = vmul.f32 0.5, %v80
  %v82 = vsub.f32 1.5, %v81
  %v83 = vmul.f32 %v78, %v82
  %vm84 = vweird.f32 %v67
  %vm85 = vweird.f32 %v78
  %vm86 = vmor %vm84, %vm85
  %v87 = vsel %vm86, %v78, %v83
  %v88 = vmul.f32 %v50, %v77
  %v89 = vmul.f32 %v51, %v77
  %v90 = vmul.f32 %v52, %v87
  %v91 = vmul.f32 %v53, %v87
  %v93 = vperm.slane %v33, 0
  %v94 = vperm.slane %v33, 1
  %v97 = vmul.f32 %v88, %v93
  %v98 = vmul.f32 %v89, %v94
  %v99 = vmul.f32 %v90, %v93
  %v100 = vmul.f32 %v91, %v94
  %v102 = vperm.slane %v34, 0
  %v103 = vperm.slane %v34, 1
  %v106 = vadd.f32 %v97, %v102
  %v107 = vadd.f32 %v98, %v103
  %v108 = vadd.f32 %v99, %v102
  %v109 = vadd.f32 %v100, %v103
  %v110 = vpack.c.bf16 %v108, %v106
  %v111 = vpack.c.bf16 %v109, %v107
  %v112 = vld [vmem:[%s3] sm:$0xf]
  %v113 = vld [vmem:[%s3 + $0x4] sm:$0xf]
  %v114 = vld [vmem:[%s3 + $0x8] sm:$0xf]
  %v115 = vld [vmem:[%s3 + $0xc] sm:$0xf]
  %v116 = vld [vmem:[%s3 + $0x10] sm:$0xf]
  %v117 = vld [vmem:[%s3 + $0x14] sm:$0xf]
  %v118 = vld [vmem:[%s3 + $0x18] sm:$0xf]
  %v119 = vld [vmem:[%s3 + $0x1c] sm:$0xf]
  %v120 = vld [vmem:[%s3 + $0x20] sm:$0xf]
  %v121 = vld [vmem:[%s3 + $0x24] sm:$0xf]
  %v122 = vld [vmem:[%s3 + $0x28] sm:$0xf]
  %v123 = vld [vmem:[%s3 + $0x2c] sm:$0xf]
  %v124 = vld [vmem:[%s3 + $0x30] sm:$0xf]
  %v125 = vld [vmem:[%s3 + $0x34] sm:$0xf]
  %v126 = vld [vmem:[%s3 + $0x38] sm:$0xf]
  %v127 = vld [vmem:[%s3 + $0x3c] sm:$0xf]
  %v128 = vld [vmem:[%s3 + $0x40] sm:$0xf]
  %v129 = vld [vmem:[%s3 + $0x44] sm:$0xf]
  %v130 = vld [vmem:[%s3 + $0x48] sm:$0xf]
  %v131 = vld [vmem:[%s3 + $0x4c] sm:$0xf]
  %v132 = vld [vmem:[%s3 + $0x50] sm:$0xf]
  %v133 = vld [vmem:[%s3 + $0x54] sm:$0xf]
  %v134 = vld [vmem:[%s3 + $0x58] sm:$0xf]
  %v135 = vld [vmem:[%s3 + $0x5c] sm:$0xf]
  %v136 = vld [vmem:[%s3 + $0x60] sm:$0xf]
  %v137 = vld [vmem:[%s3 + $0x64] sm:$0xf]
  %v138 = vld [vmem:[%s3 + $0x68] sm:$0xf]
  %v139 = vld [vmem:[%s3 + $0x6c] sm:$0xf]
  %v140 = vld [vmem:[%s3 + $0x70] sm:$0xf]
  %v141 = vld [vmem:[%s3 + $0x74] sm:$0xf]
  %v142 = vld [vmem:[%s3 + $0x78] sm:$0xf]
  %v143 = vld [vmem:[%s3 + $0x7c] sm:$0xf]
  %v144 = vld [vmem:[%s4] sm:$0x1]
  %v146 = vperm.slane %v144, 0
  %v180 = vunpack.c.l.b16 %v112
  %v181 = vunpack.c.l.b16 %v113
  %v182 = vunpack.c.l.b16 %v114
  %v183 = vunpack.c.l.b16 %v115
  %v184 = vunpack.c.l.b16 %v116
  %v185 = vunpack.c.l.b16 %v117
  %v186 = vunpack.c.l.b16 %v118
  %v187 = vunpack.c.l.b16 %v119
  %v188 = vunpack.c.l.b16 %v120
  %v189 = vunpack.c.l.b16 %v121
  %v190 = vunpack.c.l.b16 %v122
  %v191 = vunpack.c.l.b16 %v123
  %v192 = vunpack.c.l.b16 %v124
  %v193 = vunpack.c.l.b16 %v125
  %v194 = vunpack.c.l.b16 %v126
  %v195 = vunpack.c.l.b16 %v127
  %v196 = vunpack.c.l.b16 %v128
  %v197 = vunpack.c.l.b16 %v129
  %v198 = vunpack.c.l.b16 %v130
  %v199 = vunpack.c.l.b16 %v131
  %v200 = vunpack.c.l.b16 %v132
  %v201 = vunpack.c.l.b16 %v133
  %v202 = vunpack.c.l.b16 %v134
  %v203 = vunpack.c.l.b16 %v135
  %v204 = vunpack.c.l.b16 %v136
  %v205 = vunpack.c.l.b16 %v137
  %v206 = vunpack.c.l.b16 %v138
  %v207 = vunpack.c.l.b16 %v139
  %v208 = vunpack.c.l.b16 %v140
  %v209 = vunpack.c.l.b16 %v141
  %v210 = vunpack.c.l.b16 %v142
  %v211 = vunpack.c.l.b16 %v143
  %v212 = vpack.c.b16 %v181, %v180
  %v213 = vpack.c.b16 %v183, %v182
  %v214 = vpack.c.b16 %v185, %v184
  %v215 = vpack.c.b16 %v187, %v186
  %v216 = vpack.c.b16 %v189, %v188
  %v217 = vpack.c.b16 %v191, %v190
  %v218 = vpack.c.b16 %v193, %v192
  %v219 = vpack.c.b16 %v195, %v194
  %v220 = vpack.c.b16 %v197, %v196
  %v221 = vpack.c.b16 %v199, %v198
  %v222 = vpack.c.b16 %v201, %v200
  %v223 = vpack.c.b16 %v203, %v202
  %v224 = vpack.c.b16 %v205, %v204
  %v225 = vpack.c.b16 %v207, %v206
  %v226 = vpack.c.b16 %v209, %v208
  %v227 = vpack.c.b16 %v211, %v210
  %244 = vmatpush.bf16.msra.mxu0 %v219
  %245 = vmatpush.bf16.msra.mxu0 %v218
  %246 = vmatpush.bf16.msra.mxu0 %v217
  %247 = vmatpush.bf16.msra.mxu0 %v216
  %248 = vmatpush.bf16.msra.mxu0 %v215
  %249 = vmatpush.bf16.msra.mxu0 %v214
  %250 = vmatpush.bf16.msra.mxu0 %v213
  %251 = vmatpush.bf16.msra.mxu0 %v212
  %252 = vmatmul.bf16.gmra.mxu0 %v110
  %v253 = vpop.f32.mrf.mxu0
  %v254 = vadd.f32 %v146, %v253
  %v255 = vpop.f32.mrf.mxu0
  %v256 = vadd.f32 %v146, %v255
  %257 = vdwg.mxu0
  %258 = vmatpush.bf16.msra.mxu0 %v227
  %259 = vmatpush.bf16.msra.mxu0 %v226
  %260 = vmatpush.bf16.msra.mxu0 %v225
  %261 = vmatpush.bf16.msra.mxu0 %v224
  %262 = vmatpush.bf16.msra.mxu0 %v223
  %263 = vmatpush.bf16.msra.mxu0 %v222
  %264 = vmatpush.bf16.msra.mxu0 %v221
  %265 = vmatpush.bf16.msra.mxu0 %v220
  %266 = vmatmul.bf16.gmra.mxu0 %v111
  %v267 = vpop.f32.mrf.mxu0
  %v268 = vadd.f32 %v254, %v267
  %v269 = vpop.f32.mrf.mxu0
  %v270 = vadd.f32 %v256, %v269
  %271 = vdwg.mxu0
  %v272 = vmul.f32 %v268, %v268
  %v273 = vmul.f32 %v270, %v270
  %v274 = vmul.f32 %v268, %v272
  %v275 = vmul.f32 %v270, %v273
  %v276 = vmul.f32 %v274, 0.044715
  %v277 = vmul.f32 %v275, 0.044715
  %v278 = vadd.f32 %v268, %v276
  %v279 = vadd.f32 %v270, %v277
  %v280 = vmul.f32 %v278, 0.7978846
  %v281 = vmul.f32 %v279, 0.7978846
  %v282 = vtanh.pop %v280
  %v283 = vtanh.pop %v281
  %v284 = vadd.f32 %v282, 1.0
  %v285 = vadd.f32 %v283, 1.0
  %v286 = vmul.f32 %v284, 0.5
  %v287 = vmul.f32 %v285, 0.5
  %v288 = vmul.f32 %v268, %v286
  %v289 = vmul.f32 %v270, %v287
  %v290 = vpack.c.bf16 %v289, %v288
  %v291 = vld [vmem:[%s5] sm:$0xf]
  %v292 = vld [vmem:[%s5 + $0x4] sm:$0xf]
  %v293 = vld [vmem:[%s5 + $0x8] sm:$0xf]
  %v294 = vld [vmem:[%s5 + $0xc] sm:$0xf]
  %v295 = vld [vmem:[#allocation2] sm:$0x1]
  %v297 = vperm.slane %v295, 0
  %v303 = vunpack.c.l.b16 %v291
  %v304 = vunpack.c.l.b16 %v292
  %v305 = vunpack.c.l.b16 %v293
  %v306 = vunpack.c.l.b16 %v294
  %v307 = vpack.c.b16 %v304, %v303
  %v308 = vpack.c.b16 %v306, %v305
  %vm311 = vcmask 261120
  %v313 = vsel %vm311, %v290, 0
  %315 = vmatpush.bf16.msra.mxu0 0
  %316 = vmatpush.bf16.msra.mxu0 0
  %317 = vmatpush.bf16.msra.mxu0 0
  %318 = vmatpush.bf16.msra.mxu0 0
  %319 = vmatpush.bf16.msra.mxu0 0
  %320 = vmatpush.bf16.msra.mxu0 0
  %321 = vmatpush.bf16.msra.mxu0 %v308
  %322 = vmatpush.bf16.msra.mxu0 %v307
  %323 = vmatmul.bf16.gmra.mxu0 %v313
  %v324 = vpop.f32.mrf.mxu0
  %v325 = vadd.f32 %v297, %v324
  %v326 = vpop.f32.mrf.mxu0
  %v327 = vadd.f32 %v297, %v326
  %328 = vdwg.mxu0
  %v329 = vtanh.pop %v325
  %v330 = vtanh.pop %v327
  %vm331 = vcmask 7168
  %332 = vst.msk [vmem:[%s7] sm:$0xff] %vm331, %v329
  %333 = vst.msk [vmem:[%s7 + $0x8] sm:$0xff] %vm331, %v330
  // Predicated region
  $region30: #{scale_encoder_forward.3} parent=0 // pred_check
    _
  $region31: #{scale_encoder_forward.3} parent=0 // pred_check_branch
    %335 = sbr.rel (0) target = $region33
  $region32: #{scale_encoder_forward.3} parent=0 // pred_region
    _
  $region33: #{scale_encoder_forward.3} parent=0 // pred_fallthru
    _
  // Predicated region
  $region34: #{scale_encoder_forward.3} parent=0 // pred_check
    _
  $region35: #{scale_encoder_forward.3} parent=0 // pred_check_branch
    %337 = sbr.rel (0) target = $region37
  $region36: #{scale_encoder_forward.3} parent=0 // pred_region
    _
  $region37: #{scale_encoder_forward.3} parent=0 // pred_fallthru
    _

// kernel: scale_encoder_forward.2
$region0: #{scale_encoder_forward.2}
  #allocation0 [shape = 'u32[]', space=smem, size = 0x4, offset = 0x4, fixed_abs, tag = 'smem constant byte address 0x4 - core index']
  #allocation1 [shape = 'u32[72,128]{1,0:T(1,128)}', space=vmem, size = 0x9000, scoped, tag = 'internal scratch']
  #allocation2 [shape = 'f32[16,256]{1,0:T(8,128)}', space=vmem, size = 0x4000, scoped, tag = 'scratch operand']
  #allocation3 [shape = 'bf16[16,256]{1,0:T(8,128)(2,1)}', space=vmem, size = 0x2000, scoped, tag = 'scratch operand']
  #allocation4 [shape = 'f32[16,256]{1,0:T(8,128)}', space=vmem, size = 0x4000, scoped, tag = 'scratch operand']
  %s0 = inlined_call_operand.vmem [shape: f32[2,16,256], index: 0, kind: input, shape index: {}]
  %s1 = inlined_call_operand.vmem [shape: f32[1,256], index: 1, kind: input, shape index: {}]
  %s2 = inlined_call_operand.vmem [shape: f32[1,256], index: 2, kind: input, shape index: {}]
  %s3 = inlined_call_operand.vmem [shape: f32[2,1,256], index: 3, kind: input, shape index: {}]
  %s4 = inlined_call_operand.vmem [shape: f32[2,1,256], index: 4, kind: input, shape index: {}]
  %s5 = inlined_call_operand.hbm [shape: bf16[2,256,768], index: 5, kind: input, shape index: {}]
  %s6 = inlined_call_operand.vmem [shape: f32[2,1,768], index: 6, kind: input, shape index: {}]
  %s7 = inlined_call_operand.hbm [shape: bf16[2,256,256], index: 7, kind: input, shape index: {}]
  %s8 = inlined_call_operand.vmem [shape: f32[2,1,256], index: 8, kind: input, shape index: {}]
  %s9 = inlined_call_operand.vmem [shape: f32[2,1,256], index: 9, kind: input, shape index: {}]
  %s10 = inlined_call_operand.vmem [shape: f32[2,1,256], index: 10, kind: input, shape index: {}]
  %s11 = inlined_call_operand.hbm [shape: bf16[2,256,1024], index: 11, kind: input, shape index: {}]
  %s12 = inlined_call_operand.vmem [shape: f32[2,1,1024], index: 12, kind: input, shape index: {}]
  %s13 = inlined_call_operand.hbm [shape: bf16[2,1024,256], index: 13, kind: input, shape index: {}]
  %s14 = inlined_call_operand.vmem [shape: f32[2,1,256], index: 14, kind: input, shape index: {}]
  %s15 = inlined_call_operand.vmem [shape: f32[2,16,256], index: 15, kind: output, shape index: {}]
  %s16 = sld [smem:[#allocation0]]
  $region125: #{scale_encoder_forward.2} parent=0
    _
  %s18 = ssub.s32 1, %s16
  %s19 = scalar_select 0, %s18, %s16
  $region1: #{scale_encoder_forward.2} parent=0
    #allocation5 [shape = 'u8[786432]{0}', space=vmem, size = 0xc0000, scoped, tag = 'input window, operand 5']
    #allocation6 [shape = 's32[2]{0}', space=sflag, size = 0x8, scoped, tag = 'scoped memory for scale_encoder_forward.2']
    #allocation7 [shape = 'u8[262144]{0}', space=vmem, size = 0x40000, scoped, tag = 'input window, operand 7']
    #allocation8 [shape = 's32[2]{0}', space=sflag, size = 0x8, scoped, tag = 'scoped memory for scale_encoder_forward.2']
    #allocation9 [shape = 'u8[524288]{0}', space=vmem, size = 0x80000, scoped, tag = 'input window, operand 11']
    #allocation10 [shape = 'u8[524288]{0}', space=vmem, size = 0x80000, scoped, tag = 'input window, operand 13']
    #allocation11 [shape = 's32[2]{0}', space=sflag, size = 0x8, scoped, tag = 'scoped memory for scale_encoder_forward.2']
    %20 = vsyncpa [#allocation6], 0
    %s21 = scalar_lea.sflag [#allocation6], 1
    %22 = vsyncpa %s21, 0
    %23 = vsyncpa [#allocation8], 0
    %s24 = scalar_lea.sflag [#allocation8], 1
    %25 = vsyncpa %s24, 0
    %26 = vsyncpa [#allocation11], 0
    %s27 = scalar_lea.sflag [#allocation11], 1
    %28 = vsyncpa %s27, 0
    loop: start=0, step=1, limit=10
    $region2: #{scale_encoder_forward.2} parent=1 // loop_pre_header
      _
    $region3: #{scale_encoder_forward.2} parent=1 // loop_header
      %s30 = sphi 0, %s34
      %p31 = scmp.ge.s32.totalorder %s30, 10
      %s37 = sphi 0, %s56
      %s38 = sphi 0, %s52
      %s39 = sphi 0, %s48
      %s40 = sphi 0, %s37
      %s41 = sphi 0, %s38
      %s42 = sphi 0, %s39
      %s43 = sphi 0, %s40
      %s44 = sphi 0, %s41
      %s45 = sphi 0, %s42
      %s59 = sphi 0, %s61
      %s62 = sphi 0, %s59
      %s63 = sphi 0, %s62
      %s79 = sphi 0, %s63
      %s83 = sphi 0, %s83
      %s85 = sphi 0, %s83
      %s86 = sphi 0, %s85
      %s100 = sphi 0, %s86
      %s104 = sphi 0, %s104
      %s106 = sphi 0, %s104
      %s107 = sphi 0, %s106
      %s121 = sphi 0, %s107
      %s127 = sphi 0, %s129
      %s130 = sphi 0, %s127
      %s131 = sphi 0, %s130
      %s147 = sphi 0, %s131
      %s153 = sphi 0, %s155
      %s156 = sphi 0, %s153
      %s157 = sphi 0, %s156
      %s173 = sphi 0, %s157
      %s179 = sphi 0, %s181
      %s182 = sphi 0, %s179
      %s183 = sphi 0, %s182
      %s199 = sphi 0, %s183
      %s205 = sphi 0, %s207
      %s208 = sphi 0, %s205
      %s209 = sphi 0, %s208
      %s225 = sphi 0, %s209
      %s231 = sphi 0, %s233
      %s234 = sphi 0, %s231
      %s235 = sphi 0, %s234
      %s251 = sphi 0, %s235
      %s257 = sphi 0, %s259
      %s260 = sphi 0, %s257
      %s261 = sphi 0, %s260
      %s277 = sphi 0, %s261
      %s283 = sphi 0, %s285
      %s286 = sphi 0, %s283
      %s287 = sphi 0, %s286
      %s303 = sphi 0, %s287
      %s309 = sphi 0, %s311
      %s312 = sphi 0, %s309
      %s313 = sphi 0, %s312
      %s329 = sphi 0, %s313
      %s337 = sphi 0, %s339
      %s340 = sphi 0, %s337
      %s341 = sphi 0, %s340
      %s357 = sphi 0, %s341
      %s365 = sphi 0, %s367
      %s368 = sphi 0, %s365
      %s369 = sphi 0, %s368
      %s385 = sphi 0, %s369
      %s393 = sphi 0, %s395
      %s396 = sphi 0, %s393
      %s397 = sphi 0, %s396
      %s413 = sphi 0, %s397
      %s419 = sphi 0, %s421
      %s422 = sphi 0, %s419
      %s423 = sphi 0, %s422
      %s439 = sphi 0, %s423
      %s445 = sphi 0, %s447
      %s448 = sphi 0, %s445
      %s449 = sphi 0, %s448
      %s465 = sphi 0, %s449
    $region4: #{scale_encoder_forward.2} parent=1 // loop_header_branch
      %33 = sbr.rel (%p31) target = $region8
    $region5: #{scale_encoder_forward.2} parent=1 // loop_body
      %s35 = ssub.s32 %s30, 1
      %s36 = ssub.s32 %s30, 2
      %s46 = sadd.s32 1, %s39
      %p47 = scmp.ge.s32.totalorder %s46, 2
      %s48 = scalar_select %p47, 0, %s46
      %s49 = sadd.s32 1, %s38
      %s50 = scalar_select %p47, %s49, %s38
      %p51 = scmp.ge.s32.totalorder %s50, 2
      %s52 = scalar_select %p51, 0, %s50
      %s53 = sadd.s32 1, %s37
      %s54 = scalar_select %p51, %s53, %s37
      %p55 = scmp.ge.s32.totalorder %s54, 2
      %s56 = scalar_select %p55, 0, %s54
      %s57 = ssub.s32 %s37, %s56
      %p58 = scmp.eq.s32.totalorder %s57, 0
      %s60 = sadd.s32 %s59, 1
      %s61 = scalar_select %p58, %s59, %s60
      %p64 = pneg %p58
      %p65 = scmp.eq.s32.totalorder %s30, 7
      %p66 = por %p64, %p65
      %p67 = scmp.ne.s32.totalorder %s59, %s62
      %p68 = scmp.eq.s32.totalorder %s30, 0
      %p69 = por %p67, %p68
      %p70 = scmp.ne.s32.totalorder %s59, %s62
      %p71 = scmp.eq.s32.totalorder %s35, 7
      %p72 = por %p70, %p71
      %p73 = scmp.ne.s32.totalorder %s62, %s63
      %p74 = scmp.eq.s32.totalorder %s35, 0
      %p75 = por %p73, %p74
      %p76 = scmp.ne.s32.totalorder %s62, %s63
      %p77 = scmp.eq.s32.totalorder %s36, 7
      %p78 = por %p76, %p77
      %p80 = scmp.ne.s32.totalorder %s63, %s79
      %p81 = scmp.eq.s32.totalorder %s36, 0
      %p82 = por %p80, %p81
      %s84 = sadd.s32 %s83, 1
      %p87 = scmp.eq.s32.totalorder %s30, 7
      %p88 = scmp.ne.s32.totalorder %s83, %s85
      %p89 = scmp.eq.s32.totalorder %s30, 0
      %p90 = por %p88, %p89
      %p91 = scmp.ne.s32.totalorder %s83, %s85
      %p92 = scmp.eq.s32.totalorder %s35, 7
      %p93 = por %p91, %p92
      %p94 = scmp.ne.s32.totalorder %s85, %s86
      %p95 = scmp.eq.s32.totalorder %s35, 0
      %p96 = por %p94, %p95
      %p97 = scmp.ne.s32.totalorder %s85, %s86
      %p98 = scmp.eq.s32.totalorder %s36, 7
      %p99 = por %p97, %p98
      %p101 = scmp.ne.s32.totalorder %s86, %s100
      %p102 = scmp.eq.s32.totalorder %s36, 0
      %p103 = por %p101, %p102
      %s105 = sadd.s32 %s104, 1
      %p108 = scmp.eq.s32.totalorder %s30, 7
      %p109 = scmp.ne.s32.totalorder %s104, %s106
      %p110 = scmp.eq.s32.totalorder %s30, 0
      %p111 = por %p109, %p110
      %p112 = scmp.ne.s32.totalorder %s104, %s106
      %p113 = scmp.eq.s32.totalorder %s35, 7
      %p114 = por %p112, %p113
      %p115 = scmp.ne.s32.totalorder %s106, %s107
      %p116 = scmp.eq.s32.totalorder %s35, 0
      %p117 = por %p115, %p116
      %p118 = scmp.ne.s32.totalorder %s106, %s107
      %p119 = scmp.eq.s32.totalorder %s36, 7
      %p120 = por %p118, %p119
      %p122 = scmp.ne.s32.totalorder %s107, %s121
      %p123 = scmp.eq.s32.totalorder %s36, 0
      %p124 = por %p122, %p123
      %s125 = ssub.s32 %s38, %s52
      %p126 = scmp.eq.s32.totalorder %s125, 0
      %s128 = sadd.s32 %s127, 1
      %s129 = scalar_select %p126, %s127, %s128
      %p132 = pneg %p126
      %p133 = scmp.eq.s32.totalorder %s30, 7
      %p134 = por %p132, %p133
      %p135 = scmp.ne.s32.totalorder %s127, %s130
      %p136 = scmp.eq.s32.totalorder %s30, 0
      %p137 = por %p135, %p136
      %p138 = scmp.ne.s32.totalorder %s127, %s130
      %p139 = scmp.eq.s32.totalorder %s35, 7
      %p140 = por %p138, %p139
      %p141 = scmp.ne.s32.totalorder %s130, %s131
      %p142 = scmp.eq.s32.totalorder %s35, 0
      %p143 = por %p141, %p142
      %p144 = scmp.ne.s32.totalorder %s130, %s131
      %p145 = scmp.eq.s32.totalorder %s36, 7
      %p146 = por %p144, %p145
      %p148 = scmp.ne.s32.totalorder %s131, %s147
      %p149 = scmp.eq.s32.totalorder %s36, 0
      %p150 = por %p148, %p149
      %s151 = ssub.s32 %s38, %s52
      %p152 = scmp.eq.s32.totalorder %s151, 0
      %s154 = sadd.s32 %s153, 1
      %s155 = scalar_select %p152, %s153, %s154
      %p158 = pneg %p152
      %p159 = scmp.eq.s32.totalorder %s30, 7
      %p160 = por %p158, %p159
      %p161 = scmp.ne.s32.totalorder %s153, %s156
      %p162 = scmp.eq.s32.totalorder %s30, 0
      %p163 = por %p161, %p162
      %p164 = scmp.ne.s32.totalorder %s153, %s156
      %p165 = scmp.eq.s32.totalorder %s35, 7
      %p166 = por %p164, %p165
      %p167 = scmp.ne.s32.totalorder %s156, %s157
      %p168 = scmp.eq.s32.totalorder %s35, 0
      %p169 = por %p167, %p168
      %p170 = scmp.ne.s32.totalorder %s156, %s157
      %p171 = scmp.eq.s32.totalorder %s36, 7
      %p172 = por %p170, %p171
      %p174 = scmp.ne.s32.totalorder %s157, %s173
      %p175 = scmp.eq.s32.totalorder %s36, 0
      %p176 = por %p174, %p175
      %s177 = ssub.s32 %s38, %s52
      %p178 = scmp.eq.s32.totalorder %s177, 0
      %s180 = sadd.s32 %s179, 1
      %s181 = scalar_select %p178, %s179, %s180
      %p184 = pneg %p178
      %p185 = scmp.eq.s32.totalorder %s30, 7
      %p186 = por %p184, %p185
      %p187 = scmp.ne.s32.totalorder %s179, %s182
      %p188 = scmp.eq.s32.totalorder %s30, 0
      %p189 = por %p187, %p188
      %p190 = scmp.ne.s32.totalorder %s179, %s182
      %p191 = scmp.eq.s32.totalorder %s35, 7
      %p192 = por %p190, %p191
      %p193 = scmp.ne.s32.totalorder %s182, %s183
      %p194 = scmp.eq.s32.totalorder %s35, 0
      %p195 = por %p193, %p194
      %p196 = scmp.ne.s32.totalorder %s182, %s183
      %p197 = scmp.eq.s32.totalorder %s36, 7
      %p198 = por %p196, %p197
      %p200 = scmp.ne.s32.totalorder %s183, %s199
      %p201 = scmp.eq.s32.totalorder %s36, 0
      %p202 = por %p200, %p201
      %s203 = ssub.s32 %s38, %s52
      %p204 = scmp.eq.s32.totalorder %s203, 0
      %s206 = sadd.s32 %s205, 1
      %s207 = scalar_select %p204, %s205, %s206
      %p210 = pneg %p204
      %p211 = scmp.eq.s32.totalorder %s30, 7
      %p212 = por %p210, %p211
      %p213 = scmp.ne.s32.totalorder %s205, %s208
      %p214 = scmp.eq.s32.totalorder %s30, 0
      %p215 = por %p213, %p214
      %p216 = scmp.ne.s32.totalorder %s205, %s208
      %p217 = scmp.eq.s32.totalorder %s35, 7
      %p218 = por %p216, %p217
      %p219 = scmp.ne.s32.totalorder %s208, %s209
      %p220 = scmp.eq.s32.totalorder %s35, 0
      %p221 = por %p219, %p220
      %p222 = scmp.ne.s32.totalorder %s208, %s209
      %p223 = scmp.eq.s32.totalorder %s36, 7
      %p224 = por %p222, %p223
      %p226 = scmp.ne.s32.totalorder %s209, %s225
      %p227 = scmp.eq.s32.totalorder %s36, 0
      %p228 = por %p226, %p227
      %s229 = ssub.s32 %s38, %s52
      %p230 = scmp.eq.s32.totalorder %s229, 0
      %s232 = sadd.s32 %s231, 1
      %s233 = scalar_select %p230, %s231, %s232
      %p236 = pneg %p230
      %p237 = scmp.eq.s32.totalorder %s30, 7
      %p238 = por %p236, %p237
      %p239 = scmp.ne.s32.totalorder %s231, %s234
      %p240 = scmp.eq.s32.totalorder %s30, 0
      %p241 = por %p239, %p240
      %p242 = scmp.ne.s32.totalorder %s231, %s234
      %p243 = scmp.eq.s32.totalorder %s35, 7
      %p244 = por %p242, %p243
      %p245 = scmp.ne.s32.totalorder %s234, %s235
      %p246 = scmp.eq.s32.totalorder %s35, 0
      %p247 = por %p245, %p246
      %p248 = scmp.ne.s32.totalorder %s234, %s235
      %p249 = scmp.eq.s32.totalorder %s36, 7
      %p250 = por %p248, %p249
      %p252 = scmp.ne.s32.totalorder %s235, %s251
      %p253 = scmp.eq.s32.totalorder %s36, 0
      %p254 = por %p252, %p253
      %s255 = ssub.s32 %s38, %s52
      %p256 = scmp.eq.s32.totalorder %s255, 0
      %s258 = sadd.s32 %s257, 1
      %s259 = scalar_select %p256, %s257, %s258
      %p262 = pneg %p256
      %p263 = scmp.eq.s32.totalorder %s30, 7
      %p264 = por %p262, %p263
      %p265 = scmp.ne.s32.totalorder %s257, %s260
      %p266 = scmp.eq.s32.totalorder %s30, 0
      %p267 = por %p265, %p266
      %p268 = scmp.ne.s32.totalorder %s257, %s260
      %p269 = scmp.eq.s32.totalorder %s35, 7
      %p270 = por %p268, %p269
      %p271 = scmp.ne.s32.totalorder %s260, %s261
      %p272 = scmp.eq.s32.totalorder %s35, 0
      %p273 = por %p271, %p272
      %p274 = scmp.ne.s32.totalorder %s260, %s261
      %p275 = scmp.eq.s32.totalorder %s36, 7
      %p276 = por %p274, %p275
      %p278 = scmp.ne.s32.totalorder %s261, %s277
      %p279 = scmp.eq.s32.totalorder %s36, 0
      %p280 = por %p278, %p279
      %s281 = ssub.s32 %s38, %s52
      %p282 = scmp.eq.s32.totalorder %s281, 0
      %s284 = sadd.s32 %s283, 1
      %s285 = scalar_select %p282, %s283, %s284
      %p288 = pneg %p282
      %p289 = scmp.eq.s32.totalorder %s30, 7
      %p290 = por %p288, %p289
      %p291 = scmp.ne.s32.totalorder %s283, %s286
      %p292 = scmp.eq.s32.totalorder %s30, 0
      %p293 = por %p291, %p292
      %p294 = scmp.ne.s32.totalorder %s283, %s286
      %p295 = scmp.eq.s32.totalorder %s35, 7
      %p296 = por %p294, %p295
      %p297 = scmp.ne.s32.totalorder %s286, %s287
      %p298 = scmp.eq.s32.totalorder %s35, 0
      %p299 = por %p297, %p298
      %p300 = scmp.ne.s32.totalorder %s286, %s287
      %p301 = scmp.eq.s32.totalorder %s36, 7
      %p302 = por %p300, %p301
      %p304 = scmp.ne.s32.totalorder %s287, %s303
      %p305 = scmp.eq.s32.totalorder %s36, 0
      %p306 = por %p304, %p305
      %s307 = ssub.s32 %s38, %s52
      %p308 = scmp.eq.s32.totalorder %s307, 0
      %s310 = sadd.s32 %s309, 1
      %s311 = scalar_select %p308, %s309, %s310
      %p314 = pneg %p308
      %p315 = scmp.eq.s32.totalorder %s30, 7
      %p316 = por %p314, %p315
      %p317 = scmp.ne.s32.totalorder %s309, %s312
      %p318 = scmp.eq.s32.totalorder %s30, 0
      %p319 = por %p317, %p318
      %p320 = scmp.ne.s32.totalorder %s309, %s312
      %p321 = scmp.eq.s32.totalorder %s35, 7
      %p322 = por %p320, %p321
      %p323 = scmp.ne.s32.totalorder %s312, %s313
      %p324 = scmp.eq.s32.totalorder %s35, 0
      %p325 = por %p323, %p324
      %p326 = scmp.ne.s32.totalorder %s312, %s313
      %p327 = scmp.eq.s32.totalorder %s36, 7
      %p328 = por %p326, %p327
      %p330 = scmp.ne.s32.totalorder %s313, %s329
      %p331 = scmp.eq.s32.totalorder %s36, 0
      %p332 = por %p330, %p331
      %s333 = ssub.s32 %s38, %s52
      %s334 = ssub.s32 %s39, %s48
      %s335 = sor.u32 %s333, %s334
      %p336 = scmp.eq.s32.totalorder %s335, 0
      %s338 = sadd.s32 %s337, 1
      %s339 = scalar_select %p336, %s337, %s338
      %p342 = pneg %p336
      %p343 = scmp.eq.s32.totalorder %s30, 7
      %p344 = por %p342, %p343
      %p345 = scmp.ne.s32.totalorder %s337, %s340
      %p346 = scmp.eq.s32.totalorder %s30, 0
      %p347 = por %p345, %p346
      %p348 = scmp.ne.s32.totalorder %s337, %s340
      %p349 = scmp.eq.s32.totalorder %s35, 7
      %p350 = por %p348, %p349
      %p351 = scmp.ne.s32.totalorder %s340, %s341
      %p352 = scmp.eq.s32.totalorder %s35, 0
      %p353 = por %p351, %p352
      %p354 = scmp.ne.s32.totalorder %s340, %s341
      %p355 = scmp.eq.s32.totalorder %s36, 7
      %p356 = por %p354, %p355
      %p358 = scmp.ne.s32.totalorder %s341, %s357
      %p359 = scmp.eq.s32.totalorder %s36, 0
      %p360 = por %p358, %p359
      %s361 = ssub.s32 %s38, %s52
      %s362 = ssub.s32 %s39, %s48
      %s363 = sor.u32 %s361, %s362
      %p364 = scmp.eq.s32.totalorder %s363, 0
      %s366 = sadd.s32 %s365, 1
      %s367 = scalar_select %p364, %s365, %s366
      %p370 = pneg %p364
      %p371 = scmp.eq.s32.totalorder %s30, 7
      %p372 = por %p370, %p371
      %p373 = scmp.ne.s32.totalorder %s365, %s368
      %p374 = scmp.eq.s32.totalorder %s30, 0
      %p375 = por %p373, %p374
      %p376 = scmp.ne.s32.totalorder %s365, %s368
      %p377 = scmp.eq.s32.totalorder %s35, 7
      %p378 = por %p376, %p377
      %p379 = scmp.ne.s32.totalorder %s368, %s369
      %p380 = scmp.eq.s32.totalorder %s35, 0
      %p381 = por %p379, %p380
      %p382 = scmp.ne.s32.totalorder %s368, %s369
      %p383 = scmp.eq.s32.totalorder %s36, 7
      %p384 = por %p382, %p383
      %p386 = scmp.ne.s32.totalorder %s369, %s385
      %p387 = scmp.eq.s32.totalorder %s36, 0
      %p388 = por %p386, %p387
      %s389 = ssub.s32 %s38, %s52
      %s390 = ssub.s32 %s39, %s48
      %s391 = sor.u32 %s389, %s390
      %p392 = scmp.eq.s32.totalorder %s391, 0
      %s394 = sadd.s32 %s393, 1
      %s395 = scalar_select %p392, %s393, %s394
      %p398 = pneg %p392
      %p399 = scmp.eq.s32.totalorder %s30, 7
      %p400 = por %p398, %p399
      %p401 = scmp.ne.s32.totalorder %s393, %s396
      %p402 = scmp.eq.s32.totalorder %s30, 0
      %p403 = por %p401, %p402
      %p404 = scmp.ne.s32.totalorder %s393, %s396
      %p405 = scmp.eq.s32.totalorder %s35, 7
      %p406 = por %p404, %p405
      %p407 = scmp.ne.s32.totalorder %s396, %s397
      %p408 = scmp.eq.s32.totalorder %s35, 0
      %p409 = por %p407, %p408
      %p410 = scmp.ne.s32.totalorder %s396, %s397
      %p411 = scmp.eq.s32.totalorder %s36, 7
      %p412 = por %p410, %p411
      %p414 = scmp.ne.s32.totalorder %s397, %s413
      %p415 = scmp.eq.s32.totalorder %s36, 0
      %p416 = por %p414, %p415
      %s417 = ssub.s32 %s38, %s52
      %p418 = scmp.eq.s32.totalorder %s417, 0
      %s420 = sadd.s32 %s419, 1
      %s421 = scalar_select %p418, %s419, %s420
      %p424 = pneg %p418
      %p425 = scmp.eq.s32.totalorder %s30, 7
      %p426 = por %p424, %p425
      %p427 = scmp.ne.s32.totalorder %s419, %s422
      %p428 = scmp.eq.s32.totalorder %s30, 0
      %p429 = por %p427, %p428
      %p430 = scmp.ne.s32.totalorder %s419, %s422
      %p431 = scmp.eq.s32.totalorder %s35, 7
      %p432 = por %p430, %p431
      %p433 = scmp.ne.s32.totalorder %s422, %s423
      %p434 = scmp.eq.s32.totalorder %s35, 0
      %p435 = por %p433, %p434
      %p436 = scmp.ne.s32.totalorder %s422, %s423
      %p437 = scmp.eq.s32.totalorder %s36, 7
      %p438 = por %p436, %p437
      %p440 = scmp.ne.s32.totalorder %s423, %s439
      %p441 = scmp.eq.s32.totalorder %s36, 0
      %p442 = por %p440, %p441
      %s443 = ssub.s32 %s37, %s56
      %p444 = scmp.eq.s32.totalorder %s443, 0
      %s446 = sadd.s32 %s445, 1
      %s447 = scalar_select %p444, %s445, %s446
      %p450 = pneg %p444
      %p451 = scmp.eq.s32.totalorder %s30, 7
      %p452 = por %p450, %p451
      %p453 = scmp.ne.s32.totalorder %s445, %s448
      %p454 = scmp.eq.s32.totalorder %s30, 0
      %p455 = por %p453, %p454
      %p456 = scmp.ne.s32.totalorder %s445, %s448
      %p457 = scmp.eq.s32.totalorder %s35, 7
      %p458 = por %p456, %p457
      %p459 = scmp.ne.s32.totalorder %s448, %s449
      %p460 = scmp.eq.s32.totalorder %s35, 0
      %p461 = por %p459, %p460
      %p462 = scmp.ne.s32.totalorder %s448, %s449
      %p463 = scmp.eq.s32.totalorder %s36, 7
      %p464 = por %p462, %p463
      %p466 = scmp.ne.s32.totalorder %s449, %s465
      %p467 = scmp.eq.s32.totalorder %s36, 0
      %p468 = por %p466, %p467
      %p469 = scmp.le.s32.totalorder 1, %s30
      %p470 = scmp.lt.s32.totalorder %s30, 9
      %p471 = pnand %p469, %p470
      %p472 = pneg %p471
      // Predicated region
      $region9: #{scale_encoder_forward.2} parent=5 // pred_check
        _
      $region10: #{scale_encoder_forward.2} parent=5 // pred_check_branch
        %474 = sbr.rel (%p471) target = $region12
      $region11: #{scale_encoder_forward.2} parent=5 // pred_region
        %s475 = ssub.s32 %s30, 1
        // Predicated region
        $region13: #{scale_encoder_forward.2} parent=11 // pred_check
          %p476 = pneg %p96
        $region14: #{scale_encoder_forward.2} parent=11 // pred_check_branch
          %478 = sbr.rel (%p476) target = $region16
        $region15: #{scale_encoder_forward.2} parent=11 // pred_region
          _
        $region16: #{scale_encoder_forward.2} parent=11 // pred_fallthru
          _
        // Predicated region
        $region17: #{scale_encoder_forward.2} parent=11 // pred_check
          %p479 = pneg %p117
        $region18: #{scale_encoder_forward.2} parent=11 // pred_check_branch
          %481 = sbr.rel (%p479) target = $region20
        $region19: #{scale_encoder_forward.2} parent=11 // pred_region
          _
        $region20: #{scale_encoder_forward.2} parent=11 // pred_fallthru
          _
      $region12: #{scale_encoder_forward.2} parent=5 // pred_fallthru
        _
      %p482 = scmp.lt.s32.totalorder %s30, 8
      // Predicated region
      $region21: #{scale_encoder_forward.2} parent=5 // pred_check
        %p483 = pneg %p482
      $region22: #{scale_encoder_forward.2} parent=5 // pred_check_branch
        %485 = sbr.rel (%p483) target = $region24
      $region23: #{scale_encoder_forward.2} parent=5 // pred_region
        // Predicated region
        $region25: #{scale_encoder_forward.2} parent=23 // pred_check
          %p486 = pneg %p69
        $region26: #{scale_encoder_forward.2} parent=23 // pred_check_branch
          %488 = sbr.rel (%p486) target = $region28
        $region27: #{scale_encoder_forward.2} parent=23 // pred_region
          %p489 = scmp.lt.s32.totalorder %s37, 1
          %s490 = scalar_select %p489, %s37, 1
          %s491 = smul.addr %s490, 4
          %s492 = smul.addr %s491, 8
          %s493 = scalar_lea.vmem %s0, %s492
        $region28: #{scale_encoder_forward.2} parent=23 // pred_fallthru
          _
        // Predicated region
        $region29: #{scale_encoder_forward.2} parent=23 // pred_check
          %p494 = pneg %p137
        $region30: #{scale_encoder_forward.2} parent=23 // pred_check_branch
          %496 = sbr.rel (%p494) target = $region32
        $region31: #{scale_encoder_forward.2} parent=23 // pred_region
          %p497 = scmp.lt.s32.totalorder %s38, 1
          %s498 = scalar_select %p497, %s38, 1
          %s499 = smul.addr %s498, 2
          %s500 = scalar_lea.vmem %s3, %s499
        $region32: #{scale_encoder_forward.2} parent=23 // pred_fallthru
          _
        // Predicated region
        $region33: #{scale_encoder_forward.2} parent=23 // pred_check
          %p501 = pneg %p163
        $region34: #{scale_encoder_forward.2} parent=23 // pred_check_branch
          %503 = sbr.rel (%p501) target = $region36
        $region35: #{scale_encoder_forward.2} parent=23 // pred_region
          %p504 = scmp.lt.s32.totalorder %s38, 1
          %s505 = scalar_select %p504, %s38, 1
          %s506 = smul.addr %s505, 2
          %s507 = scalar_lea.vmem %s4, %s506
        $region36: #{scale_encoder_forward.2} parent=23 // pred_fallthru
          _
        // Predicated region
        $region37: #{scale_encoder_forward.2} parent=23 // pred_check
          %p508 = pneg %p189
        $region38: #{scale_encoder_forward.2} parent=23 // pred_check_branch
          %510 = sbr.rel (%p508) target = $region40
        $region39: #{scale_encoder_forward.2} parent=23 // pred_region
          %s511 = sand.u32 %s179, 1
          %s512 = scalar_lea.sflag [#allocation6], %s511
          %s513 = sand.u32 %s179, 1
          %s514 = smul.addr %s513, 768
          %s515 = scalar_lea.vmem [#allocation5], %s514
          %517 = vsyncadd %s512, 0
          %s518 = smul.addr %s38, 192
          %s519 = smul.addr %s518, 4
          %s520 = scalar_lea.hbm %s5, %s519
          %s521 = sshll.u32 %s520, 4
          %s522 = int_to_ptr.hbm [resolvable:$true] %s521
          %s523 = sshll.u32 %s515, 4
          %s524 = int_to_ptr.vmem [resolvable:$true] %s523
          %529 = dma.hbm_to_vmem [thread:$0]  %s522, 12288, %s524, %s512, 384, 384, 24
        $region40: #{scale_encoder_forward.2} parent=23 // pred_fallthru
          _
        // Predicated region
        $region41: #{scale_encoder_forward.2} parent=23 // pred_check
          %p530 = pneg %p215
        $region42: #{scale_encoder_forward.2} parent=23 // pred_check_branch
          %532 = sbr.rel (%p530) target = $region44
        $region43: #{scale_encoder_forward.2} parent=23 // pred_region
          %p533 = scmp.lt.s32.totalorder %s38, 1
          %s534 = scalar_select %p533, %s38, 1
          %s535 = smul.addr %s534, 6
          %s536 = scalar_lea.vmem %s6, %s535
        $region44: #{scale_encoder_forward.2} parent=23 // pred_fallthru
          _
        // Predicated region
        $region45: #{scale_encoder_forward.2} parent=23 // pred_check
          %p537 = pneg %p241
        $region46: #{scale_encoder_forward.2} parent=23 // pred_check_branch
          %539 = sbr.rel (%p537) target = $region48
        $region47: #{scale_encoder_forward.2} parent=23 // pred_region
          %s540 = sand.u32 %s30, 1
          %s541 = scalar_lea.sflag [#allocation8], %s540
          %s542 = sand.u32 %s231, 1
          %s543 = smul.addr %s542, 256
          %s544 = scalar_lea.vmem [#allocation7], %s543
          %546 = vsyncadd %s541, 0
          %s547 = smul.addr %s38, 64
          %s548 = smul.addr %s547, 4
          %s549 = scalar_lea.hbm %s7, %s548
          %s550 = sshll.u32 %s549, 4
          %s551 = int_to_ptr.hbm [resolvable:$true] %s550
          %s552 = sshll.u32 %s544, 4
          %s553 = int_to_ptr.vmem [resolvable:$true] %s552
          %558 = dma.hbm_to_vmem [thread:$0]  %s551, 4096, %s553, %s541, 128, 128, 8
        $region48: #{scale_encoder_forward.2} parent=23 // pred_fallthru
          _
        // Predicated region
        $region49: #{scale_encoder_forward.2} parent=23 // pred_check
          %p559 = pneg %p267
        $region50: #{scale_encoder_forward.2} parent=23 // pred_check_branch
          %561 = sbr.rel (%p559) target = $region52
        $region51: #{scale_encoder_forward.2} parent=23 // pred_region
          %p562 = scmp.lt.s32.totalorder %s38, 1
          %s563 = scalar_select %p562, %s38, 1
          %s564 = smul.addr %s563, 2
          %s565 = scalar_lea.vmem %s8, %s564
        $region52: #{scale_encoder_forward.2} parent=23 // pred_fallthru
          _
        // Predicated region
        $region53: #{scale_encoder_forward.2} parent=23 // pred_check
          %p566 = pneg %p293
        $region54: #{scale_encoder_forward.2} parent=23 // pred_check_branch
          %568 = sbr.rel (%p566) target = $region56
        $region55: #{scale_encoder_forward.2} parent=23 // pred_region
          %p569 = scmp.lt.s32.totalorder %s38, 1
          %s570 = scalar_select %p569, %s38, 1
          %s571 = smul.addr %s570, 2
          %s572 = scalar_lea.vmem %s9, %s571
        $region56: #{scale_encoder_forward.2} parent=23 // pred_fallthru
          _
        // Predicated region
        $region57: #{scale_encoder_forward.2} parent=23 // pred_check
          %p573 = pneg %p319
        $region58: #{scale_encoder_forward.2} parent=23 // pred_check_branch
          %575 = sbr.rel (%p573) target = $region60
        $region59: #{scale_encoder_forward.2} parent=23 // pred_region
          %p576 = scmp.lt.s32.totalorder %s38, 1
          %s577 = scalar_select %p576, %s38, 1
          %s578 = smul.addr %s577, 2
          %s579 = scalar_lea.vmem %s10, %s578
        $region60: #{scale_encoder_forward.2} parent=23 // pred_fallthru
          _
        // Predicated region
        $region61: #{scale_encoder_forward.2} parent=23 // pred_check
          %p580 = pneg %p347
        $region62: #{scale_encoder_forward.2} parent=23 // pred_check_branch
          %582 = sbr.rel (%p580) target = $region64
        $region63: #{scale_encoder_forward.2} parent=23 // pred_region
          %s583 = sand.u32 %s30, 1
          %s584 = scalar_lea.sflag [#allocation8], %s583
          %s585 = sand.u32 %s337, 1
          %s586 = smul.addr %s585, 512
          %s587 = scalar_lea.vmem [#allocation9], %s586
          %s588 = smul.u32 4, %s39
          %590 = vsyncadd %s584, 0
          %s591 = smul.addr %s38, 256
          %s592 = sadd.s32 %s588, %s591
          %s593 = smul.addr %s592, 4
          %s594 = scalar_lea.hbm %s11, %s593
          %s595 = sshll.u32 %s594, 4
          %s596 = int_to_ptr.hbm [resolvable:$true] %s595
          %s597 = sshll.u32 %s587, 4
          %s598 = int_to_ptr.vmem [resolvable:$true] %s597
          %603 = dma.hbm_to_vmem [thread:$0]  %s596, 8192, %s598, %s584, 512, 256, 16
        $region64: #{scale_encoder_forward.2} parent=23 // pred_fallthru
          _
        // Predicated region
        $region65: #{scale_encoder_forward.2} parent=23 // pred_check
          %p604 = pneg %p375
        $region66: #{scale_encoder_forward.2} parent=23 // pred_check_branch
          %606 = sbr.rel (%p604) target = $region68
        $region67: #{scale_encoder_forward.2} parent=23 // pred_region
          %s607 = smul.u32 4, %s39
          %p608 = scmp.lt.s32.totalorder %s38, 1
          %s609 = scalar_select %p608, %s38, 1
          %p610 = scmp.lt.s32.totalorder %s607, 7
          %s611 = scalar_select %p610, %s607, 7
          %s612 = smul.addr %s609, 8
          %s613 = sadd.s32 %s611, %s612
          %s614 = scalar_lea.vmem %s12, %s613
          %s615 = smul.u32 4, %s39
        $region68: #{scale_encoder_forward.2} parent=23 // pred_fallthru
          _
        // Predicated region
        $region69: #{scale_encoder_forward.2} parent=23 // pred_check
          %p616 = pneg %p403
        $region70: #{scale_encoder_forward.2} parent=23 // pred_check_branch
          %618 = sbr.rel (%p616) target = $region72
        $region71: #{scale_encoder_forward.2} parent=23 // pred_region
          %s619 = sand.u32 %s393, 1
          %s620 = scalar_lea.sflag [#allocation11], %s619
          %s621 = sand.u32 %s393, 1
          %s622 = smul.addr %s621, 512
          %s623 = scalar_lea.vmem [#allocation10], %s622
          %s624 = smul.u32 64, %s39
          %626 = vsyncadd %s620, 0
          %s627 = smul.addr %s624, 2
          %s628 = smul.addr %s38, 256
          %s629 = sadd.s32 %s627, %s628
          %s630 = smul.addr %s629, 4
          %s631 = scalar_lea.hbm %s13, %s630
          %s632 = sshll.u32 %s631, 4
          %s633 = int_to_ptr.hbm [resolvable:$true] %s632
          %s634 = sshll.u32 %s623, 4
          %s635 = int_to_ptr.vmem [resolvable:$true] %s634
          %640 = dma.hbm_to_vmem [thread:$0]  %s633, 8192, %s635, %s620, 128, 128, 8
        $region72: #{scale_encoder_forward.2} parent=23 // pred_fallthru
          _
        // Predicated region
        $region73: #{scale_encoder_forward.2} parent=23 // pred_check
          %p641 = pneg %p429
        $region74: #{scale_encoder_forward.2} parent=23 // pred_check_branch
          %643 = sbr.rel (%p641) target = $region76
        $region75: #{scale_encoder_forward.2} parent=23 // pred_region
          %p644 = scmp.lt.s32.totalorder %s38, 1
          %s645 = scalar_select %p644, %s38, 1
          %s646 = smul.addr %s645, 2
          %s647 = scalar_lea.vmem %s14, %s646
        $region76: #{scale_encoder_forward.2} parent=23 // pred_fallthru
          _
      $region24: #{scale_encoder_forward.2} parent=5 // pred_fallthru
        _
      %p648 = scmp.le.s32.totalorder 1, %s30
      %p649 = scmp.lt.s32.totalorder %s30, 9
      %p650 = pnand %p648, %p649
      %p651 = pneg %p650
      // Predicated region
      $region77: #{scale_encoder_forward.2} parent=5 // pred_check
        _
      $region78: #{scale_encoder_forward.2} parent=5 // pred_check_branch
        %653 = sbr.rel (%p650) target = $region80
      $region79: #{scale_encoder_forward.2} parent=5 // pred_region
        %s654 = ssub.s32 %s30, 1
        %s655 = sand.u32 %s182, 1
        %s656 = scalar_lea.sflag [#allocation6], %s655
        %s657 = sand.u32 %s182, 1
        %s658 = smul.addr %s657, 768
        %s659 = scalar_lea.vmem [#allocation5], %s658
        // Predicated region
        $region81: #{scale_encoder_forward.2} parent=79 // pred_check
          %p660 = pneg %p195
        $region82: #{scale_encoder_forward.2} parent=79 // pred_check_branch
          %662 = sbr.rel (%p660) target = $region84
        $region83: #{scale_encoder_forward.2} parent=79 // pred_region
          %664 = dma.done %s656, 12288
        $region84: #{scale_encoder_forward.2} parent=79 // pred_fallthru
          _
        %s665 = sand.u32 %s35, 1
        %s666 = scalar_lea.sflag [#allocation8], %s665
        %s667 = sand.u32 %s234, 1
        %s668 = smul.addr %s667, 256
        %s669 = scalar_lea.vmem [#allocation7], %s668
        // Predicated region
        $region85: #{scale_encoder_forward.2} parent=79 // pred_check
          %p670 = pneg %p247
        $region86: #{scale_encoder_forward.2} parent=79 // pred_check_branch
          %672 = sbr.rel (%p670) target = $region88
        $region87: #{scale_encoder_forward.2} parent=79 // pred_region
          %674 = dma.done %s666, 4096
        $region88: #{scale_encoder_forward.2} parent=79 // pred_fallthru
          _
        %s675 = sand.u32 %s35, 1
        %s676 = scalar_lea.sflag [#allocation8], %s675
        %s677 = sand.u32 %s340, 1
        %s678 = smul.addr %s677, 512
        %s679 = scalar_lea.vmem [#allocation9], %s678
        // Predicated region
        $region89: #{scale_encoder_forward.2} parent=79 // pred_check
          %p680 = pneg %p353
        $region90: #{scale_encoder_forward.2} parent=79 // pred_check_branch
          %682 = sbr.rel (%p680) target = $region92
        $region91: #{scale_encoder_forward.2} parent=79 // pred_region
          %684 = dma.done %s676, 8192
        $region92: #{scale_encoder_forward.2} parent=79 // pred_fallthru
          _
        %s685 = sand.u32 %s396, 1
        %s686 = scalar_lea.sflag [#allocation11], %s685
        %s687 = sand.u32 %s396, 1
        %s688 = smul.addr %s687, 512
        %s689 = scalar_lea.vmem [#allocation10], %s688
        // Predicated region
        $region93: #{scale_encoder_forward.2} parent=79 // pred_check
          %p690 = pneg %p409
        $region94: #{scale_encoder_forward.2} parent=79 // pred_check_branch
          %692 = sbr.rel (%p690) target = $region96
        $region95: #{scale_encoder_forward.2} parent=79 // pred_region
          %694 = dma.done %s686, 8192
        $region96: #{scale_encoder_forward.2} parent=79 // pred_fallthru
          _
        %p695 = scmp.lt.s32.totalorder %s40, 1
        %s696 = scalar_select %p695, %s40, 1
        %s697 = smul.addr %s696, 4
        %s698 = smul.addr %s697, 8
        %s699 = scalar_lea.vmem %s0, %s698
        %p700 = pneg %p75
        %p701 = pneg %p72
        %p702 = pneg %p96
        %p703 = pneg %p93
        %p704 = pneg %p117
        %p705 = pneg %p114
        %p706 = scmp.lt.s32.totalorder %s41, 1
        %s707 = scalar_select %p706, %s41, 1
        %s708 = smul.addr %s707, 2
        %s709 = scalar_lea.vmem %s3, %s708
        %p710 = pneg %p143
        %p711 = pneg %p140
        %p712 = scmp.lt.s32.totalorder %s41, 1
        %s713 = scalar_select %p712, %s41, 1
        %s714 = smul.addr %s713, 2
        %s715 = scalar_lea.vmem %s4, %s714
        %p716 = pneg %p169
        %p717 = pneg %p166
        %s718 = sand.u32 %s182, 1
        %s719 = scalar_lea.sflag [#allocation6], %s718
        %s720 = sand.u32 %s182, 1
        %s721 = smul.addr %s720, 768
        %s722 = scalar_lea.vmem [#allocation5], %s721
        %p723 = pneg %p195
        %p724 = pneg %p192
        %p725 = scmp.lt.s32.totalorder %s41, 1
        %s726 = scalar_select %p725, %s41, 1
        %s727 = smul.addr %s726, 6
        %s728 = scalar_lea.vmem %s6, %s727
        %p729 = pneg %p221
        %p730 = pneg %p218
        %s731 = sand.u32 %s35, 1
        %s732 = scalar_lea.sflag [#allocation8], %s731
        %s733 = sand.u32 %s234, 1
        %s734 = smul.addr %s733, 256
        %s735 = scalar_lea.vmem [#allocation7], %s734
        %p736 = pneg %p247
        %p737 = pneg %p244
        %p738 = scmp.lt.s32.totalorder %s41, 1
        %s739 = scalar_select %p738, %s41, 1
        %s740 = smul.addr %s739, 2
        %s741 = scalar_lea.vmem %s8, %s740
        %p742 = pneg %p273
        %p743 = pneg %p270
        %p744 = scmp.lt.s32.totalorder %s41, 1
        %s745 = scalar_select %p744, %s41, 1
        %s746 = smul.addr %s745, 2
        %s747 = scalar_lea.vmem %s9, %s746
        %p748 = pneg %p299
        %p749 = pneg %p296
        %p750 = scmp.lt.s32.totalorder %s41, 1
        %s751 = scalar_select %p750, %s41, 1
        %s752 = smul.addr %s751, 2
        %s753 = scalar_lea.vmem %s10, %s752
        %p754 = pneg %p325
        %p755 = pneg %p322
        %s756 = sand.u32 %s35, 1
        %s757 = scalar_lea.sflag [#allocation8], %s756
        %s758 = sand.u32 %s340, 1
        %s759 = smul.addr %s758, 512
        %s760 = scalar_lea.vmem [#allocation9], %s759
        %p761 = pneg %p353
        %p762 = pneg %p350
        %s763 = smul.u32 4, %s42
        %p764 = scmp.lt.s32.totalorder %s41, 1
        %s765 = scalar_select %p764, %s41, 1
        %p766 = scmp.lt.s32.totalorder %s763, 7
        %s767 = scalar_select %p766, %s763, 7
        %s768 = smul.addr %s765, 8
        %s769 = sadd.s32 %s767, %s768
        %s770 = scalar_lea.vmem %s12, %s769
        %p771 = pneg %p381
        %p772 = pneg %p378
        %s773 = sand.u32 %s396, 1
        %s774 = scalar_lea.sflag [#allocation11], %s773
        %s775 = sand.u32 %s396, 1
        %s776 = smul.addr %s775, 512
        %s777 = scalar_lea.vmem [#allocation10], %s776
        %p778 = pneg %p409
        %p779 = pneg %p406
        %p780 = scmp.lt.s32.totalorder %s41, 1
        %s781 = scalar_select %p780, %s41, 1
        %s782 = smul.addr %s781, 2
        %s783 = scalar_lea.vmem %s14, %s782
        %p784 = pneg %p435
        %p785 = pneg %p432
        %p786 = pneg %p461
        %p787 = pneg %p458
        %p788 = scmp.lt.s32.totalorder %s40, 1
        %s789 = scalar_select %p788, %s40, 1
        %s790 = smul.addr %s789, 4
        %s791 = smul.addr %s790, 8
        %s792 = scalar_lea.vmem %s15, %s791
        %p793 = scmp.lt.s32.totalorder %s40, 1
        %s794 = scalar_select %p793, %s40, 1
        %s795 = smul.addr %s794, 4
        %s796 = smul.addr %s795, 8
        %s797 = scalar_lea.vmem %s0, %s796
        %p798 = scmp.lt.s32.totalorder %s41, 1
        %s799 = scalar_select %p798, %s41, 1
        %s800 = smul.addr %s799, 2
        %s801 = scalar_lea.vmem %s3, %s800
        %p802 = scmp.lt.s32.totalorder %s41, 1
        %s803 = scalar_select %p802, %s41, 1
        %s804 = smul.addr %s803, 2
        %s805 = scalar_lea.vmem %s4, %s804
        %p806 = scmp.lt.s32.totalorder %s41, 1
        %s807 = scalar_select %p806, %s41, 1
        %s808 = smul.addr %s807, 6
        %s809 = scalar_lea.vmem %s6, %s808
        %p810 = scmp.lt.s32.totalorder %s41, 1
        %s811 = scalar_select %p810, %s41, 1
        %s812 = smul.addr %s811, 2
        %s813 = scalar_lea.vmem %s8, %s812
        %p814 = scmp.lt.s32.totalorder %s41, 1
        %s815 = scalar_select %p814, %s41, 1
        %s816 = smul.addr %s815, 2
        %s817 = scalar_lea.vmem %s9, %s816
        %p818 = scmp.lt.s32.totalorder %s41, 1
        %s819 = scalar_select %p818, %s41, 1
        %s820 = smul.addr %s819, 2
        %s821 = scalar_lea.vmem %s10, %s820
        %s822 = smul.u32 4, %s42
        %s823 = smul.u32 4, %s42
        %p824 = scmp.lt.s32.totalorder %s41, 1
        %s825 = scalar_select %p824, %s41, 1
        %p826 = scmp.lt.s32.totalorder %s823, 7
        %s827 = scalar_select %p826, %s823, 7
        %s828 = smul.addr %s825, 8
        %s829 = sadd.s32 %s827, %s828
        %s830 = scalar_lea.vmem %s12, %s829
        %s831 = smul.u32 4, %s42
        %s832 = smul.u32 64, %s42
        %p833 = scmp.lt.s32.totalorder %s41, 1
        %s834 = scalar_select %p833, %s41, 1
        %s835 = smul.addr %s834, 2
        %s836 = scalar_lea.vmem %s14, %s835
        %p837 = scmp.lt.s32.totalorder %s40, 1
        %s838 = scalar_select %p837, %s40, 1
        %s839 = smul.addr %s838, 4
        %s840 = smul.addr %s839, 8
        %s841 = scalar_lea.vmem %s15, %s840
        %p843 = scmp.eq.s32.totalorder %s41, 0
        %p844 = scmp.eq.s32.totalorder %s42, 0
        %p845 = pnand %p843, %p844
        %p846 = pneg %p845
        // Predicated region
        $region97: #{scale_encoder_forward.2} parent=79 // pred_check
          _
        $region98: #{scale_encoder_forward.2} parent=79 // pred_check_branch
          %848 = sbr.rel (%p845) target = $region100
        $region99: #{scale_encoder_forward.2} parent=79 // pred_region
          %v849 = vld [vmem:[%s797] sm:$0xff]
          %v850 = vld [vmem:[%s797 + $0x8] sm:$0xff]
          %v851 = vld [vmem:[%s797 + $0x10] sm:$0xff]
          %v852 = vld [vmem:[%s797 + $0x18] sm:$0xff]
          %v853 = vld [vmem:[%s1] sm:$0x3]
          %v854 = vld [vmem:[%s2] sm:$0x3]
          %v855 = vadd.f32 %v849, %v850
          %856 = vadd.xlane.f32.xlu0 %v855
          %v857 = vpop.xlane.xlu0 %856
          %v858 = vadd.f32 %v851, %v852
          %859 = vadd.xlane.f32.xlu0 %v858
          %v860 = vpop.xlane.xlu0 %859
          %v861 = vrcp.pop 256.0
          %v862 = vmul.f32 256.0, %v861
          %v863 = vsub.f32 1.0, %v862
          %v864 = vmul.f32 %v861, %v863
          %v865 = vadd.f32 %v861, %v864
          %vm866 = vweird.f32 %v861
          %v867 = vsel %vm866, %v861, %v865
          %v868 = vmul.f32 %v857, %v867
          %v869 = vmul.f32 %v860, %v867
          %v870 = vsub.f32 %v849, %v868
          %v871 = vsub.f32 %v850, %v868
          %v872 = vsub.f32 %v851, %v869
          %v873 = vsub.f32 %v852, %v869
          %v874 = vmul.f32 %v870, %v870
          %v875 = vmul.f32 %v871, %v871
          %v876 = vmul.f32 %v872, %v872
          %v877 = vmul.f32 %v873, %v873
          %v878 = vadd.f32 %v874, %v875
          %879 = vadd.xlane.f32.xlu0 %v878
          %v880 = vpop.xlane.xlu0 %879
          %v881 = vadd.f32 %v876, %v877
          %882 = vadd.xlane.f32.xlu0 %v881
          %v883 = vpop.xlane.xlu0 %882
          %v884 = vmul.f32 %v880, %v867
          %v885 = vmul.f32 %v883, %v867
          %v886 = vadd.f32 %v884, 1e-05
          %v887 = vadd.f32 %v885, 1e-05
          %v888 = vrsqrt.pop %v886
          %v889 = vmul.f32 %v888, %v886
          %v890 = vmul.f32 %v889, %v888
          %v891 = vmul.f32 0.5, %v890
          %v892 = vsub.f32 1.5, %v891
          %v893 = vmul.f32 %v888, %v892
          %vm894 = vweird.f32 %v886
          %vm895 = vweird.f32 %v888
          %vm896 = vmor %vm894, %vm895
          %v897 = vsel %vm896, %v888, %v893
          %v898 = vrsqrt.pop %v887
          %v899 = vmul.f32 %v898, %v887
          %v900 = vmul.f32 %v899, %v898
          %v901 = vmul.f32 0.5, %v900
          %v902 = vsub.f32 1.5, %v901
          %v903 = vmul.f32 %v898, %v902
          %vm904 = vweird.f32 %v887
          %vm905 = vweird.f32 %v898
          %vm906 = vmor %vm904, %vm905
          %v907 = vsel %vm906, %v898, %v903
          %v908 = vmul.f32 %v870, %v897
          %v909 = vmul.f32 %v871, %v897
          %v910 = vmul.f32 %v872, %v907
          %v911 = vmul.f32 %v873, %v907
          %v913 = vperm.slane %v853, 0
          %v914 = vperm.slane %v853, 1
          %v917 = vmul.f32 %v908, %v913
          %v918 = vmul.f32 %v909, %v914
          %v919 = vmul.f32 %v910, %v913
          %v920 = vmul.f32 %v911, %v914
          %v922 = vperm.slane %v854, 0
          %v923 = vperm.slane %v854, 1
          %v926 = vadd.f32 %v917, %v922
          %v927 = vadd.f32 %v918, %v923
          %v928 = vadd.f32 %v919, %v922
          %v929 = vadd.f32 %v920, %v923
          %930 = vst [vmem:[#allocation2] sm:$0xff] %v926
          %931 = vst [vmem:[#allocation2 + $0x8] sm:$0xff] %v927
          %932 = vst [vmem:[#allocation2 + $0x10] sm:$0xff] %v928
          %933 = vst [vmem:[#allocation2 + $0x18] sm:$0xff] %v929
        $region100: #{scale_encoder_forward.2} parent=79 // pred_fallthru
          _
        // Predicated region
        $region101: #{scale_encoder_forward.2} parent=79 // pred_check
          %p934 = pneg %p844
        $region102: #{scale_encoder_forward.2} parent=79 // pred_check_branch
          %936 = sbr.rel (%p934) target = $region104
        $region103: #{scale_encoder_forward.2} parent=79 // pred_region
          %v937 = vld [vmem:[#allocation2] sm:$0xff]
          %v938 = vld [vmem:[#allocation2 + $0x8] sm:$0xff]
          %v939 = vld [vmem:[#allocation2 + $0x10] sm:$0xff]
          %v940 = vld [vmem:[#allocation2 + $0x18] sm:$0xff]
          %v941 = vld [vmem:[%s801] sm:$0x3]
          %v942 = vld [vmem:[%s805] sm:$0x3]
          %v943 = vadd.f32 %v937, %v938
          %944 = vadd.xlane.f32.xlu0 %v943
          %v945 = vpop.xlane.xlu0 %944
          %v946 = vadd.f32 %v939, %v940
          %947 = vadd.xlane.f32.xlu0 %v946
          %v948 = vpop.xlane.xlu0 %947
          %v949 = vrcp.pop 256.0
          %v950 = vmul.f32 256.0, %v949
          %v951 = vsub.f32 1.0, %v950
          %v952 = vmul.f32 %v949, %v951
          %v953 = vadd.f32 %v949, %v952
          %vm954 = vweird.f32 %v949
          %v955 = vsel %vm954, %v949, %v953
          %v956 = vmul.f32 %v945, %v955
          %v957 = vmul.f32 %v948, %v955
          %v958 = vsub.f32 %v937, %v956
          %v959 = vsub.f32 %v938, %v956
          %v960 = vsub.f32 %v939, %v957
          %v961 = vsub.f32 %v940, %v957
          %v962 = vmul.f32 %v958, %v958
          %v963 = vmul.f32 %v959, %v959
          %v964 = vmul.f32 %v960, %v960
          %v965 = vmul.f32 %v961, %v961
          %v966 = vadd.f32 %v962, %v963
          %967 = vadd.xlane.f32.xlu0 %v966
          %v968 = vpop.xlane.xlu0 %967
          %v969 = vadd.f32 %v964, %v965
          %970 = vadd.xlane.f32.xlu0 %v969
          %v971 = vpop.xlane.xlu0 %970
          %v972 = vmul.f32 %v968, %v955
          %v973 = vmul.f32 %v971, %v955
          %v974 = vadd.f32 %v972, 1e-05
          %v975 = vadd.f32 %v973, 1e-05
          %v976 = vrsqrt.pop %v974
          %v977 = vmul.f32 %v976, %v974
          %v978 = vmul.f32 %v977, %v976
          %v979 = vmul.f32 0.5, %v978
          %v980 = vsub.f32 1.5, %v979
          %v981 = vmul.f32 %v976, %v980
          %vm982 = vweird.f32 %v974
          %vm983 = vweird.f32 %v976
          %vm984 = vmor %vm982, %vm983
          %v985 = vsel %vm984, %v976, %v981
          %v986 = vrsqrt.pop %v975
          %v987 = vmul.f32 %v986, %v975
          %v988 = vmul.f32 %v987, %v986
          %v989 = vmul.f32 0.5, %v988
          %v990 = vsub.f32 1.5, %v989
          %v991 = vmul.f32 %v986, %v990
          %vm992 = vweird.f32 %v975
          %vm993 = vweird.f32 %v986
          %vm994 = vmor %vm992, %vm993
          %v995 = vsel %vm994, %v986, %v991
          %v996 = vmul.f32 %v958, %v985
          %v997 = vmul.f32 %v959, %v985
          %v998 = vmul.f32 %v960, %v995
          %v999 = vmul.f32 %v961, %v995
          %v1001 = vperm.slane %v941, 0
          %v1002 = vperm.slane %v941, 1
          %v1005 = vmul.f32 %v996, %v1001
          %v1006 = vmul.f32 %v997, %v1002
          %v1007 = vmul.f32 %v998, %v1001
          %v1008 = vmul.f32 %v999, %v1002
          %v1010 = vperm.slane %v942, 0
          %v1011 = vperm.slane %v942, 1
          %v1014 = vadd.f32 %v1005, %v1010
          %v1015 = vadd.f32 %v1006, %v1011
          %v1016 = vadd.f32 %v1007, %v1010
          %v1017 = vadd.f32 %v1008, %v1011
          %v1018 = vpack.c.bf16 %v1016, %v1014
          %v1019 = vpack.c.bf16 %v1017, %v1015
          %v1020 = vld [vmem:[%s659] sm:$0xff]
          %v1021 = vld [vmem:[%s659 + $0x8] sm:$0xff]
          %v1022 = vld [vmem:[%s659 + $0x10] sm:$0xff]
          %v1023 = vld [vmem:[%s659 + $0x18] sm:$0xff]
          %v1024 = vld [vmem:[%s659 + $0x20] sm:$0xff]
          %v1025 = vld [vmem:[%s659 + $0x28] sm:$0xff]
          %v1026 = vld [vmem:[%s659 + $0x30] sm:$0xff]
          %v1027 = vld [vmem:[%s659 + $0x38] sm:$0xff]
          %v1028 = vld [vmem:[%s659 + $0x40] sm:$0xff]
          %v1029 = vld [vmem:[%s659 + $0x48] sm:$0xff]
          %v1030 = vld [vmem:[%s659 + $0x50] sm:$0xff]
          %v1031 = vld [vmem:[%s659 + $0x58] sm:$0xff]
          %v1032 = vld [vmem:[%s659 + $0x60] sm:$0xff]
          %v1033 = vld [vmem:[%s659 + $0x68] sm:$0xff]
          %v1034 = vld [vmem:[%s659 + $0x70] sm:$0xff]
          %v1035 = vld [vmem:[%s659 + $0x78] sm:$0xff]
          %v1036 = vld [vmem:[%s659 + $0x80] sm:$0xff]
          %v1037 = vld [vmem:[%s659 + $0x88] sm:$0xff]
          %v1038 = vld [vmem:[%s659 + $0x90] sm:$0xff]
          %v1039 = vld [vmem:[%s659 + $0x98] sm:$0xff]
          %v1040 = vld [vmem:[%s659 + $0xa0] sm:$0xff]
          %v1041 = vld [vmem:[%s659 + $0xa8] sm:$0xff]
          %v1042 = vld [vmem:[%s659 + $0xb0] sm:$0xff]
          %v1043 = vld [vmem:[%s659 + $0xb8] sm:$0xff]
          %v1044 = vld [vmem:[%s659 + $0xc0] sm:$0xff]
          %v1045 = vld [vmem:[%s659 + $0xc8] sm:$0xff]
          %v1046 = vld [vmem:[%s659 + $0xd0] sm:$0xff]
          %v1047 = vld [vmem:[%s659 + $0xd8] sm:$0xff]
          %v1048 = vld [vmem:[%s659 + $0xe0] sm:$0xff]
          %v1049 = vld [vmem:[%s659 + $0xe8] sm:$0xff]
          %v1050 = vld [vmem:[%s659 + $0xf0] sm:$0xff]
          %v1051 = vld [vmem:[%s659 + $0xf8] sm:$0xff]
          %v1052 = vld [vmem:[%s659 + $0x100] sm:$0xff]
          %v1053 = vld [vmem:[%s659 + $0x108] sm:$0xff]
          %v1054 = vld [vmem:[%s659 + $0x110] sm:$0xff]
          %v1055 = vld [vmem:[%s659 + $0x118] sm:$0xff]
          %v1056 = vld [vmem:[%s659 + $0x120] sm:$0xff]
          %v1057 = vld [vmem:[%s659 + $0x128] sm:$0xff]
          %v1058 = vld [vmem:[%s659 + $0x130] sm:$0xff]
          %v1059 = vld [vmem:[%s659 + $0x138] sm:$0xff]
          %v1060 = vld [vmem:[%s659 + $0x140] sm:$0xff]
          %v1061 = vld [vmem:[%s659 + $0x148] sm:$0xff]
          %v1062 = vld [vmem:[%s659 + $0x150] sm:$0xff]
          %v1063 = vld [vmem:[%s659 + $0x158] sm:$0xff]
          %v1064 = vld [vmem:[%s659 + $0x160] sm:$0xff]
          %v1065 = vld [vmem:[%s659 + $0x168] sm:$0xff]
          %v1066 = vld [vmem:[%s659 + $0x170] sm:$0xff]
          %v1067 = vld [vmem:[%s659 + $0x178] sm:$0xff]
          %v1068 = vld [vmem:[%s659 + $0x180] sm:$0xff]
          %v1069 = vld [vmem:[%s659 + $0x188] sm:$0xff]
          %v1070 = vld [vmem:[%s659 + $0x190] sm:$0xff]
          %v1071 = vld [vmem:[%s659 + $0x198] sm:$0xff]
          %v1072 = vld [vmem:[%s659 + $0x1a0] sm:$0xff]
          %v1073 = vld [vmem:[%s659 + $0x1a8] sm:$0xff]
          %v1074 = vld [vmem:[%s659 + $0x1b0] sm:$0xff]
          %v1075 = vld [vmem:[%s659 + $0x1b8] sm:$0xff]
          %v1076 = vld [vmem:[%s659 + $0x1c0] sm:$0xff]
          %v1077 = vld [vmem:[%s659 + $0x1c8] sm:$0xff]
          %v1078 = vld [vmem:[%s659 + $0x1d0] sm:$0xff]
          %v1079 = vld [vmem:[%s659 + $0x1d8] sm:$0xff]
          %v1080 = vld [vmem:[%s659 + $0x1e0] sm:$0xff]
          %v1081 = vld [vmem:[%s659 + $0x1e8] sm:$0xff]
          %v1082 = vld [vmem:[%s659 + $0x1f0] sm:$0xff]
          %v1083 = vld [vmem:[%s659 + $0x1f8] sm:$0xff]
          %v1084 = vld [vmem:[%s659 + $0x200] sm:$0xff]
          %v1085 = vld [vmem:[%s659 + $0x208] sm:$0xff]
          %v1086 = vld [vmem:[%s659 + $0x210] sm:$0xff]
          %v1087 = vld [vmem:[%s659 + $0x218] sm:$0xff]
          %v1088 = vld [vmem:[%s659 + $0x220] sm:$0xff]
          %v1089 = vld [vmem:[%s659 + $0x228] sm:$0xff]
          %v1090 = vld [vmem:[%s659 + $0x230] sm:$0xff]
          %v1091 = vld [vmem:[%s659 + $0x238] sm:$0xff]
          %v1092 = vld [vmem:[%s659 + $0x240] sm:$0xff]
          %v1093 = vld [vmem:[%s659 + $0x248] sm:$0xff]
          %v1094 = vld [vmem:[%s659 + $0x250] sm:$0xff]
          %v1095 = vld [vmem:[%s659 + $0x258] sm:$0xff]
          %v1096 = vld [vmem:[%s659 + $0x260] sm:$0xff]
          %v1097 = vld [vmem:[%s659 + $0x268] sm:$0xff]
          %v1098 = vld [vmem:[%s659 + $0x270] sm:$0xff]
          %v1099 = vld [vmem:[%s659 + $0x278] sm:$0xff]
          %v1100 = vld [vmem:[%s659 + $0x280] sm:$0xff]
          %v1101 = vld [vmem:[%s659 + $0x288] sm:$0xff]
          %v1102 = vld [vmem:[%s659 + $0x290] sm:$0xff]
          %v1103 = vld [vmem:[%s659 + $0x298] sm:$0xff]
          %v1104 = vld [vmem:[%s659 + $0x2a0] sm:$0xff]
          %v1105 = vld [vmem:[%s659 + $0x2a8] sm:$0xff]
          %v1106 = vld [vmem:[%s659 + $0x2b0] sm:$0xff]
          %v1107 = vld [vmem:[%s659 + $0x2b8] sm:$0xff]
          %v1108 = vld [vmem:[%s659 + $0x2c0] sm:$0xff]
          %v1109 = vld [vmem:[%s659 + $0x2c8] sm:$0xff]
          %v1110 = vld [vmem:[%s659 + $0x2d0] sm:$0xff]
          %v1111 = vld [vmem:[%s659 + $0x2d8] sm:$0xff]
          %v1112 = vld [vmem:[%s659 + $0x2e0] sm:$0xff]
          %v1113 = vld [vmem:[%s659 + $0x2e8] sm:$0xff]
          %v1114 = vld [vmem:[%s659 + $0x2f0] sm:$0xff]
          %v1115 = vld [vmem:[%s659 + $0x2f8] sm:$0xff]
          %v1116 = vld [vmem:[%s809] sm:$0x3f]
          %v1118 = vperm.slane %v1116, 0
          %v1119 = vperm.slane %v1116, 1
          %v1120 = vperm.slane %v1116, 2
          %v1121 = vperm.slane %v1116, 3
          %v1122 = vperm.slane %v1116, 4
          %v1123 = vperm.slane %v1116, 5
          %v1226 = vunpack.c.l.b16 %v1020
          %v1227 = vunpack.c.h.b16 %v1020
          %v1228 = vunpack.c.l.b16 %v1021
          %v1229 = vunpack.c.h.b16 %v1021
          %v1230 = vunpack.c.l.b16 %v1022
          %v1231 = vunpack.c.h.b16 %v1022
          %v1232 = vunpack.c.l.b16 %v1023
          %v1233 = vunpack.c.h.b16 %v1023
          %v1234 = vunpack.c.l.b16 %v1024
          %v1235 = vunpack.c.h.b16 %v1024
          %v1236 = vunpack.c.l.b16 %v1025
          %v1237 = vunpack.c.h.b16 %v1025
          %v1238 = vunpack.c.l.b16 %v1026
          %v1239 = vunpack.c.h.b16 %v1026
          %v1240 = vunpack.c.l.b16 %v1027
          %v1241 = vunpack.c.h.b16 %v1027
          %v1242 = vunpack.c.l.b16 %v1028
          %v1243 = vunpack.c.h.b16 %v1028
          %v1244 = vunpack.c.l.b16 %v1029
          %v1245 = vunpack.c.h.b16 %v1029
          %v1246 = vunpack.c.l.b16 %v1030
          %v1247 = vunpack.c.h.b16 %v1030
          %v1248 = vunpack.c.l.b16 %v1031
          %v1249 = vunpack.c.h.b16 %v1031
          %v1250 = vunpack.c.l.b16 %v1032
          %v1251 = vunpack.c.h.b16 %v1032
          %v1252 = vunpack.c.l.b16 %v1033
          %v1253 = vunpack.c.h.b16 %v1033
          %v1254 = vunpack.c.l.b16 %v1034
          %v1255 = vunpack.c.h.b16 %v1034
          %v1256 = vunpack.c.l.b16 %v1035
          %v1257 = vunpack.c.h.b16 %v1035
          %v1258 = vunpack.c.l.b16 %v1036
          %v1259 = vunpack.c.h.b16 %v1036
          %v1260 = vunpack.c.l.b16 %v1037
          %v1261 = vunpack.c.h.b16 %v1037
          %v1262 = vunpack.c.l.b16 %v1038
          %v1263 = vunpack.c.h.b16 %v1038
          %v1264 = vunpack.c.l.b16 %v1039
          %v1265 = vunpack.c.h.b16 %v1039
          %v1266 = vunpack.c.l.b16 %v1040
          %v1267 = vunpack.c.h.b16 %v1040
          %v1268 = vunpack.c.l.b16 %v1041
          %v1269 = vunpack.c.h.b16 %v1041
          %v1270 = vunpack.c.l.b16 %v1042
          %v1271 = vunpack.c.h.b16 %v1042
          %v1272 = vunpack.c.l.b16 %v1043
          %v1273 = vunpack.c.h.b16 %v1043
          %v1274 = vunpack.c.l.b16 %v1044
          %v1275 = vunpack.c.h.b16 %v1044
          %v1276 = vunpack.c.l.b16 %v1045
          %v1277 = vunpack.c.h.b16 %v1045
          %v1278 = vunpack.c.l.b16 %v1046
          %v1279 = vunpack.c.h.b16 %v1046
          %v1280 = vunpack.c.l.b16 %v1047
          %v1281 = vunpack.c.h.b16 %v1047
          %v1282 = vunpack.c.l.b16 %v1048
          %v1283 = vunpack.c.h.b16 %v1048
          %v1284 = vunpack.c.l.b16 %v1049
          %v1285 = vunpack.c.h.b16 %v1049
          %v1286 = vunpack.c.l.b16 %v1050
          %v1287 = vunpack.c.h.b16 %v1050
          %v1288 = vunpack.c.l.b16 %v1051
          %v1289 = vunpack.c.h.b16 %v1051
          %v1290 = vunpack.c.l.b16 %v1052
          %v1291 = vunpack.c.h.b16 %v1052
          %v1292 = vunpack.c.l.b16 %v1053
          %v1293 = vunpack.c.h.b16 %v1053
          %v1294 = vunpack.c.l.b16 %v1054
          %v1295 = vunpack.c.h.b16 %v1054
          %v1296 = vunpack.c.l.b16 %v1055
          %v1297 = vunpack.c.h.b16 %v1055
          %v1298 = vunpack.c.l.b16 %v1056
          %v1299 = vunpack.c.h.b16 %v1056
          %v1300 = vunpack.c.l.b16 %v1057
          %v1301 = vunpack.c.h.b16 %v1057
          %v1302 = vunpack.c.l.b16 %v1058
          %v1303 = vunpack.c.h.b16 %v1058
          %v1304 = vunpack.c.l.b16 %v1059
          %v1305 = vunpack.c.h.b16 %v1059
          %v1306 = vunpack.c.l.b16 %v1060
          %v1307 = vunpack.c.h.b16 %v1060
          %v1308 = vunpack.c.l.b16 %v1061
          %v1309 = vunpack.c.h.b16 %v1061
          %v1310 = vunpack.c.l.b16 %v1062
          %v1311 = vunpack.c.h.b16 %v1062
          %v1312 = vunpack.c.l.b16 %v1063
          %v1313 = vunpack.c.h.b16 %v1063
          %v1314 = vunpack.c.l.b16 %v1064
          %v1315 = vunpack.c.h.b16 %v1064
          %v1316 = vunpack.c.l.b16 %v1065
          %v1317 = vunpack.c.h.b16 %v1065
          %v1318 = vunpack.c.l.b16 %v1066
          %v1319 = vunpack.c.h.b16 %v1066
          %v1320 = vunpack.c.l.b16 %v1067
          %v1321 = vunpack.c.h.b16 %v1067
          %v1322 = vunpack.c.l.b16 %v1068
          %v1323 = vunpack.c.h.b16 %v1068
          %v1324 = vunpack.c.l.b16 %v1069
          %v1325 = vunpack.c.h.b16 %v1069
          %v1326 = vunpack.c.l.b16 %v1070
          %v1327 = vunpack.c.h.b16 %v1070
          %v1328 = vunpack.c.l.b16 %v1071
          %v1329 = vunpack.c.h.b16 %v1071
          %v1330 = vunpack.c.l.b16 %v1072
          %v1331 = vunpack.c.h.b16 %v1072
          %v1332 = vunpack.c.l.b16 %v1073
          %v1333 = vunpack.c.h.b16 %v1073
          %v1334 = vunpack.c.l.b16 %v1074
          %v1335 = vunpack.c.h.b16 %v1074
          %v1336 = vunpack.c.l.b16 %v1075
          %v1337 = vunpack.c.h.b16 %v1075
          %v1338 = vunpack.c.l.b16 %v1076
          %v1339 = vunpack.c.h.b16 %v1076
          %v1340 = vunpack.c.l.b16 %v1077
          %v1341 = vunpack.c.h.b16 %v1077
          %v1342 = vunpack.c.l.b16 %v1078
          %v1343 = vunpack.c.h.b16 %v1078
          %v1344 = vunpack.c.l.b16 %v1079
          %v1345 = vunpack.c.h.b16 %v1079
          %v1346 = vunpack.c.l.b16 %v1080
          %v1347 = vunpack.c.h.b16 %v1080
          %v1348 = vunpack.c.l.b16 %v1081
          %v1349 = vunpack.c.h.b16 %v1081
          %v1350 = vunpack.c.l.b16 %v1082
          %v1351 = vunpack.c.h.b16 %v1082
          %v1352 = vunpack.c.l.b16 %v1083
          %v1353 = vunpack.c.h.b16 %v1083
          %v1354 = vunpack.c.l.b16 %v1084
          %v1355 = vunpack.c.h.b16 %v1084
          %v1356 = vunpack.c.l.b16 %v1085
          %v1357 = vunpack.c.h.b16 %v1085
          %v1358 = vunpack.c.l.b16 %v1086
          %v1359 = vunpack.c.h.b16 %v1086
          %v1360 = vunpack.c.l.b16 %v1087
          %v1361 = vunpack.c.h.b16 %v1087
          %v1362 = vunpack.c.l.b16 %v1088
          %v1363 = vunpack.c.h.b16 %v1088
          %v1364 = vunpack.c.l.b16 %v1089
          %v1365 = vunpack.c.h.b16 %v1089
          %v1366 = vunpack.c.l.b16 %v1090
          %v1367 = vunpack.c.h.b16 %v1090
          %v1368 = vunpack.c.l.b16 %v1091
          %v1369 = vunpack.c.h.b16 %v1091
          %v1370 = vunpack.c.l.b16 %v1092
          %v1371 = vunpack.c.h.b16 %v1092
          %v1372 = vunpack.c.l.b16 %v1093
          %v1373 = vunpack.c.h.b16 %v1093
          %v1374 = vunpack.c.l.b16 %v1094
          %v1375 = vunpack.c.h.b16 %v1094
          %v1376 = vunpack.c.l.b16 %v1095
          %v1377 = vunpack.c.h.b16 %v1095
          %v1378 = vunpack.c.l.b16 %v1096
          %v1379 = vunpack.c.h.b16 %v1096
          %v1380 = vunpack.c.l.b16 %v1097
          %v1381 = vunpack.c.h.b16 %v1097
          %v1382 = vunpack.c.l.b16 %v1098
          %v1383 = vunpack.c.h.b16 %v1098
          %v1384 = vunpack.c.l.b16 %v1099
          %v1385 = vunpack.c.h.b16 %v1099
          %v1386 = vunpack.c.l.b16 %v1100
          %v1387 = vunpack.c.h.b16 %v1100
          %v1388 = vunpack.c.l.b16 %v1101
          %v1389 = vunpack.c.h.b16 %v1101
          %v1390 = vunpack.c.l.b16 %v1102
          %v1391 = vunpack.c.h.b16 %v1102
          %v1392 = vunpack.c.l.b16 %v1103
          %v1393 = vunpack.c.h.b16 %v1103
          %v1394 = vunpack.c.l.b16 %v1104
          %v1395 = vunpack.c.h.b16 %v1104
          %v1396 = vunpack.c.l.b16 %v1105
          %v1397 = vunpack.c.h.b16 %v1105
          %v1398 = vunpack.c.l.b16 %v1106
          %v1399 = vunpack.c.h.b16 %v1106
          %v1400 = vunpack.c.l.b16 %v1107
          %v1401 = vunpack.c.h.b16 %v1107
          %v1402 = vunpack.c.l.b16 %v1108
          %v1403 = vunpack.c.h.b16 %v1108
          %v1404 = vunpack.c.l.b16 %v1109
          %v1405 = vunpack.c.h.b16 %v1109
          %v1406 = vunpack.c.l.b16 %v1110
          %v1407 = vunpack.c.h.b16 %v1110
          %v1408 = vunpack.c.l.b16 %v1111
          %v1409 = vunpack.c.h.b16 %v1111
          %v1410 = vunpack.c.l.b16 %v1112
          %v1411 = vunpack.c.h.b16 %v1112
          %v1412 = vunpack.c.l.b16 %v1113
          %v1413 = vunpack.c.h.b16 %v1113
          %v1414 = vunpack.c.l.b16 %v1114
          %v1415 = vunpack.c.h.b16 %v1114
          %v1416 = vunpack.c.l.b16 %v1115
          %v1417 = vunpack.c.h.b16 %v1115
          %v1418 = vpack.c.b16 %v1232, %v1226
          %v1419 = vpack.c.b16 %v1233, %v1227
          %v1420 = vpack.c.b16 %v1234, %v1228
          %v1421 = vpack.c.b16 %v1235, %v1229
          %v1422 = vpack.c.b16 %v1236, %v1230
          %v1423 = vpack.c.b16 %v1237, %v1231
          %v1424 = vpack.c.b16 %v1244, %v1238
          %v1425 = vpack.c.b16 %v1245, %v1239
          %v1426 = vpack.c.b16 %v1246, %v1240
          %v1427 = vpack.c.b16 %v1247, %v1241
          %v1428 = vpack.c.b16 %v1248, %v1242
          %v1429 = vpack.c.b16 %v1249, %v1243
          %v1430 = vpack.c.b16 %v1256, %v1250
          %v1431 = vpack.c.b16 %v1257, %v1251
          %v1432 = vpack.c.b16 %v1258, %v1252
          %v1433 = vpack.c.b16 %v1259, %v1253
          %v1434 = vpack.c.b16 %v1260, %v1254
          %v1435 = vpack.c.b16 %v1261, %v1255
          %v1436 = vpack.c.b16 %v1268, %v1262
          %v1437 = vpack.c.b16 %v1269, %v1263
          %v1438 = vpack.c.b16 %v1270, %v1264
          %v1439 = vpack.c.b16 %v1271, %v1265
          %v1440 = vpack.c.b16 %v1272, %v1266
          %v1441 = vpack.c.b16 %v1273, %v1267
          %v1442 = vpack.c.b16 %v1280, %v1274
          %v1443 = vpack.c.b16 %v1281, %v1275
          %v1444 = vpack.c.b16 %v1282, %v1276
          %v1445 = vpack.c.b16 %v1283, %v1277
          %v1446 = vpack.c.b16 %v1284, %v1278
          %v1447 = vpack.c.b16 %v1285, %v1279
          %v1448 = vpack.c.b16 %v1292, %v1286
          %v1449 = vpack.c.b16 %v1293, %v1287
          %v1450 = vpack.c.b16 %v1294, %v1288
          %v1451 = vpack.c.b16 %v1295, %v1289
          %v1452 = vpack.c.b16 %v1296, %v1290
          %v1453 = vpack.c.b16 %v1297, %v1291
          %v1454 = vpack.c.b16 %v1304, %v1298
          %v1455 = vpack.c.b16 %v1305, %v1299
          %v1456 = vpack.c.b16 %v1306, %v1300
          %v1457 = vpack.c.b16 %v1307, %v1301
          %v1458 = vpack.c.b16 %v1308, %v1302
          %v1459 = vpack.c.b16 %v1309, %v1303
          %v1460 = vpack.c.b16 %v1316, %v1310
          %v1461 = vpack.c.b16 %v1317, %v1311
          %v1462 = vpack.c.b16 %v1318, %v1312
          %v1463 = vpack.c.b16 %v1319, %v1313
          %v1464 = vpack.c.b16 %v1320, %v1314
          %v1465 = vpack.c.b16 %v1321, %v1315
          %v1466 = vpack.c.b16 %v1328, %v1322
          %v1467 = vpack.c.b16 %v1329, %v1323
          %v1468 = vpack.c.b16 %v1330, %v1324
          %v1469 = vpack.c.b16 %v1331, %v1325
          %v1470 = vpack.c.b16 %v1332, %v1326
          %v1471 = vpack.c.b16 %v1333, %v1327
          %v1472 = vpack.c.b16 %v1340, %v1334
          %v1473 = vpack.c.b16 %v1341, %v1335
          %v1474 = vpack.c.b16 %v1342, %v1336
          %v1475 = vpack.c.b16 %v1343, %v1337
          %v1476 = vpack.c.b16 %v1344, %v1338
          %v1477 = vpack.c.b16 %v1345, %v1339
          %v1478 = vpack.c.b16 %v1352, %v1346
          %v1479 = vpack.c.b16 %v1353, %v1347
          %v1480 = vpack.c.b16 %v1354, %v1348
          %v1481 = vpack.c.b16 %v1355, %v1349
          %v1482 = vpack.c.b16 %v1356, %v1350
          %v1483 = vpack.c.b16 %v1357, %v1351
          %v1484 = vpack.c.b16 %v1364, %v1358
          %v1485 = vpack.c.b16 %v1365, %v1359
          %v1486 = vpack.c.b16 %v1366, %v1360
          %v1487 = vpack.c.b16 %v1367, %v1361
          %v1488 = vpack.c.b16 %v1368, %v1362
          %v1489 = vpack.c.b16 %v1369, %v1363
          %v1490 = vpack.c.b16 %v1376, %v1370
          %v1491 = vpack.c.b16 %v1377, %v1371
          %v1492 = vpack.c.b16 %v1378, %v1372
          %v1493 = vpack.c.b16 %v1379, %v1373
          %v1494 = vpack.c.b16 %v1380, %v1374
          %v1495 = vpack.c.b16 %v1381, %v1375
          %v1496 = vpack.c.b16 %v1388, %v1382
          %v1497 = vpack.c.b16 %v1389, %v1383
          %v1498 = vpack.c.b16 %v1390, %v1384
          %v1499 = vpack.c.b16 %v1391, %v1385
          %v1500 = vpack.c.b16 %v1392, %v1386
          %v1501 = vpack.c.b16 %v1393, %v1387
          %v1502 = vpack.c.b16 %v1400, %v1394
          %v1503 = vpack.c.b16 %v1401, %v1395
          %v1504 = vpack.c.b16 %v1402, %v1396
          %v1505 = vpack.c.b16 %v1403, %v1397
          %v1506 = vpack.c.b16 %v1404, %v1398
          %v1507 = vpack.c.b16 %v1405, %v1399
          %v1508 = vpack.c.b16 %v1412, %v1406
          %v1509 = vpack.c.b16 %v1413, %v1407
          %v1510 = vpack.c.b16 %v1414, %v1408
          %v1511 = vpack.c.b16 %v1415, %v1409
          %v1512 = vpack.c.b16 %v1416, %v1410
          %v1513 = vpack.c.b16 %v1417, %v1411
          %1610 = vmatpush.bf16.msra.mxu0 %v1460
          %1611 = vmatpush.bf16.msra.mxu0 %v1454
          %1612 = vmatpush.bf16.msra.mxu0 %v1448
          %1613 = vmatpush.bf16.msra.mxu0 %v1442
          %1614 = vmatpush.bf16.msra.mxu0 %v1436
          %1615 = vmatpush.bf16.msra.mxu0 %v1430
          %1616 = vmatpush.bf16.msra.mxu0 %v1424
          %1617 = vmatpush.bf16.msra.mxu0 %v1418
          %1618 = vmatmul.bf16.gmra.mxu0 %v1018
          %v1619 = vpop.f32.mrf.mxu0
          %v1620 = vadd.f32 %v1118, %v1619
          %v1621 = vpop.f32.mrf.mxu0
          %v1622 = vadd.f32 %v1118, %v1621
          %1623 = vdwg.mxu0
          %1624 = vmatpush.bf16.msra.mxu0 %v1508
          %1625 = vmatpush.bf16.msra.mxu0 %v1502
          %1626 = vmatpush.bf16.msra.mxu0 %v1496
          %1627 = vmatpush.bf16.msra.mxu0 %v1490
          %1628 = vmatpush.bf16.msra.mxu0 %v1484
          %1629 = vmatpush.bf16.msra.mxu0 %v1478
          %1630 = vmatpush.bf16.msra.mxu0 %v1472
          %1631 = vmatpush.bf16.msra.mxu0 %v1466
          %1632 = vmatmul.bf16.gmra.mxu0 %v1019
          %v1633 = vpop.f32.mrf.mxu0
          %v1634 = vadd.f32 %v1620, %v1633
          %v1635 = vpop.f32.mrf.mxu0
          %v1636 = vadd.f32 %v1622, %v1635
          %1637 = vdwg.mxu0
          %1638 = vmatpush.bf16.msra.mxu0 %v1461
          %1639 = vmatpush.bf16.msra.mxu0 %v1455
          %1640 = vmatpush.bf16.msra.mxu0 %v1449
          %1641 = vmatpush.bf16.msra.mxu0 %v1443
          %1642 = vmatpush.bf16.msra.mxu0 %v1437
          %1643 = vmatpush.bf16.msra.mxu0 %v1431
          %1644 = vmatpush.bf16.msra.mxu0 %v1425
          %1645 = vmatpush.bf16.msra.mxu0 %v1419
          %1646 = vmatmul.bf16.gmra.mxu0 %v1018
          %v1647 = vpop.f32.mrf.mxu0
          %v1648 = vadd.f32 %v1119, %v1647
          %v1649 = vpop.f32.mrf.mxu0
          %v1650 = vadd.f32 %v1119, %v1649
          %1651 = vdwg.mxu0
          %1652 = vmatpush.bf16.msra.mxu0 %v1509
          %1653 = vmatpush.bf16.msra.mxu0 %v1503
          %1654 = vmatpush.bf16.msra.mxu0 %v1497
          %1655 = vmatpush.bf16.msra.mxu0 %v1491
          %1656 = vmatpush.bf16.msra.mxu0 %v1485
          %1657 = vmatpush.bf16.msra.mxu0 %v1479
          %1658 = vmatpush.bf16.msra.mxu0 %v1473
          %1659 = vmatpush.bf16.msra.mxu0 %v1467
          %1660 = vmatmul.bf16.gmra.mxu0 %v1019
          %v1661 = vpop.f32.mrf.mxu0
          %v1662 = vadd.f32 %v1648, %v1661
          %v1663 = vpop.f32.mrf.mxu0
          %v1664 = vadd.f32 %v1650, %v1663
          %1665 = vdwg.mxu0
          %1666 = vmatpush.bf16.msra.mxu0 %v1462
          %1667 = vmatpush.bf16.msra.mxu0 %v1456
          %1668 = vmatpush.bf16.msra.mxu0 %v1450
          %1669 = vmatpush.bf16.msra.mxu0 %v1444
          %1670 = vmatpush.bf16.msra.mxu0 %v1438
          %1671 = vmatpush.bf16.msra.mxu0 %v1432
          %1672 = vmatpush.bf16.msra.mxu0 %v1426
          %1673 = vmatpush.bf16.msra.mxu0 %v1420
          %1674 = vmatmul.bf16.gmra.mxu0 %v1018
          %v1675 = vpop.f32.mrf.mxu0
          %v1676 = vadd.f32 %v1120, %v1675
          %v1677 = vpop.f32.mrf.mxu0
          %v1678 = vadd.f32 %v1120, %v1677
          %1679 = vdwg.mxu0
          %1680 = vmatpush.bf16.msra.mxu0 %v1510
          %1681 = vmatpush.bf16.msra.mxu0 %v1504
          %1682 = vmatpush.bf16.msra.mxu0 %v1498
          %1683 = vmatpush.bf16.msra.mxu0 %v1492
          %1684 = vmatpush.bf16.msra.mxu0 %v1486
          %1685 = vmatpush.bf16.msra.mxu0 %v1480
          %1686 = vmatpush.bf16.msra.mxu0 %v1474
          %1687 = vmatpush.bf16.msra.mxu0 %v1468
          %1688 = vmatmul.bf16.gmra.mxu0 %v1019
          %v1689 = vpop.f32.mrf.mxu0
          %v1690 = vadd.f32 %v1676, %v1689
          %v1691 = vpop.f32.mrf.mxu0
          %v1692 = vadd.f32 %v1678, %v1691
          %1693 = vdwg.mxu0
          %1694 = vmatpush.bf16.msra.mxu0 %v1463
          %1695 = vmatpush.bf16.msra.mxu0 %v1457
          %1696 = vmatpush.bf16.msra.mxu0 %v1451
          %1697 = vmatpush.bf16.msra.mxu0 %v1445
          %1698 = vmatpush.bf16.msra.mxu0 %v1439
          %1699 = vmatpush.bf16.msra.mxu0 %v1433
          %1700 = vmatpush.bf16.msra.mxu0 %v1427
          %1701 = vmatpush.bf16.msra.mxu0 %v1421
          %1702 = vmatmul.bf16.gmra.mxu0 %v1018
          %v1703 = vpop.f32.mrf.mxu0
          %v1704 = vadd.f32 %v1121, %v1703
          %v1705 = vpop.f32.mrf.mxu0
          %v1706 = vadd.f32 %v1121, %v1705
          %1707 = vdwg.mxu0
          %1708 = vmatpush.bf16.msra.mxu0 %v1511
          %1709 = vmatpush.bf16.msra.mxu0 %v1505
          %1710 = vmatpush.bf16.msra.mxu0 %v1499
          %1711 = vmatpush.bf16.msra.mxu0 %v1493
          %1712 = vmatpush.bf16.msra.mxu0 %v1487
          %1713 = vmatpush.bf16.msra.mxu0 %v1481
          %1714 = vmatpush.bf16.msra.mxu0 %v1475
          %1715 = vmatpush.bf16.msra.mxu0 %v1469
          %1716 = vmatmul.bf16.gmra.mxu0 %v1019
          %v1717 = vpop.f32.mrf.mxu0
          %v1718 = vadd.f32 %v1704, %v1717
          %v1719 = vpop.f32.mrf.mxu0
          %v1720 = vadd.f32 %v1706, %v1719
          %1721 = vdwg.mxu0
          %1722 = vmatpush.bf16.msra.mxu0 %v1464
          %1723 = vmatpush.bf16.msra.mxu0 %v1458
          %1724 = vmatpush.bf16.msra.mxu0 %v1452
          %1725 = vmatpush.bf16.msra.mxu0 %v1446
          %1726 = vmatpush.bf16.msra.mxu0 %v1440
          %1727 = vmatpush.bf16.msra.mxu0 %v1434
          %1728 = vmatpush.bf16.msra.mxu0 %v1428
          %1729 = vmatpush.bf16.msra.mxu0 %v1422
          %1730 = vmatmul.bf16.gmra.mxu0 %v1018
          %v1731 = vpop.f32.mrf.mxu0
          %v1732 = vadd.f32 %v1122, %v1731
          %v1733 = vpop.f32.mrf.mxu0
          %v1734 = vadd.f32 %v1122, %v1733
          %1735 = vdwg.mxu0
          %1736 = vmatpush.bf16.msra.mxu0 %v1512
          %1737 = vmatpush.bf16.msra.mxu0 %v1506
          %1738 = vmatpush.bf16.msra.mxu0 %v1500
          %1739 = vmatpush.bf16.msra.mxu0 %v1494
          %1740 = vmatpush.bf16.msra.mxu0 %v1488
          %1741 = vmatpush.bf16.msra.mxu0 %v1482
          %1742 = vmatpush.bf16.msra.mxu0 %v1476
          %1743 = vmatpush.bf16.msra.mxu0 %v1470
          %1744 = vmatmul.bf16.gmra.mxu0 %v1019
          %v1745 = vpop.f32.mrf.mxu0
          %v1746 = vadd.f32 %v1732, %v1745
          %v1747 = vpop.f32.mrf.mxu0
          %v1748 = vadd.f32 %v1734, %v1747
          %1749 = vdwg.mxu0
          %1750 = vmatpush.bf16.msra.mxu0 %v1465
          %1751 = vmatpush.bf16.msra.mxu0 %v1459
          %1752 = vmatpush.bf16.msra.mxu0 %v1453
          %1753 = vmatpush.bf16.msra.mxu0 %v1447
          %1754 = vmatpush.bf16.msra.mxu0 %v1441
          %1755 = vmatpush.bf16.msra.mxu0 %v1435
          %1756 = vmatpush.bf16.msra.mxu0 %v1429
          %1757 = vmatpush.bf16.msra.mxu0 %v1423
          %1758 = vmatmul.bf16.gmra.mxu0 %v1018
          %v1759 = vpop.f32.mrf.mxu0
          %v1760 = vadd.f32 %v1123, %v1759
          %v1761 = vpop.f32.mrf.mxu0
          %v1762 = vadd.f32 %v1123, %v1761
          %1763 = vdwg.mxu0
          %1764 = vmatpush.bf16.msra.mxu0 %v1513
          %1765 = vmatpush.bf16.msra.mxu0 %v1507
          %1766 = vmatpush.bf16.msra.mxu0 %v1501
          %1767 = vmatpush.bf16.msra.mxu0 %v1495
          %1768 = vmatpush.bf16.msra.mxu0 %v1489
          %1769 = vmatpush.bf16.msra.mxu0 %v1483
          %1770 = vmatpush.bf16.msra.mxu0 %v1477
          %1771 = vmatpush.bf16.msra.mxu0 %v1471
          %1772 = vmatmul.bf16.gmra.mxu0 %v1019
          %v1773 = vpop.f32.mrf.mxu0
          %v1774 = vadd.f32 %v1760, %v1773
          %v1775 = vpop.f32.mrf.mxu0
          %v1776 = vadd.f32 %v1762, %v1775
          %1777 = vdwg.mxu0
          %v1778 = vpack.c.bf16 %v1662, %v1634
          %v1779 = vpack.c.bf16 %v1718, %v1690
          %v1780 = vpack.c.bf16 %v1774, %v1746
          %v1781 = vpack.c.bf16 %v1664, %v1636
          %v1782 = vpack.c.bf16 %v1720, %v1692
          %v1783 = vpack.c.bf16 %v1776, %v1748
          %v1786 = vunpack.c.l.b16 %v1778
          %v1787 = vunpack.c.l.b16 %v1781
          %v1788 = vpack.c.b16 %v1787, %v1786
          %v1792 = vunpack.c.l.b16 %v1779
          %v1793 = vunpack.c.l.b16 %v1782
          %v1794 = vpack.c.b16 %v1793, %v1792
          %1796 = vmatpush.bf16.xpose.msra.mxu0 0
          %1797 = vmatpush.bf16.xpose.msra.mxu0 0
          %1798 = vmatpush.bf16.xpose.msra.mxu0 0
          %1799 = vmatpush.bf16.xpose.msra.mxu0 0
          %1800 = vmatpush.bf16.xpose.msra.mxu0 0
          %1801 = vmatpush.bf16.xpose.msra.mxu0 0
          %1802 = vmatpush.bf16.xpose.msra.mxu0 0
          %1803 = vmatpush.bf16.xpose.msra.mxu0 %v1794
          %1804 = vmatmul.bf16.gmra.mxu0 %v1788
          %v1805 = vpop.f32.mrf.mxu0
          %v1806 = vadd.f32 0.0, %v1805
          %v1807 = vpop.f32.mrf.mxu0
          %v1808 = vadd.f32 0.0, %v1807
          %1809 = vdwg.mxu0
          %v1810 = vmul.f32 %v1806, 0.088388346
          %v1811 = vmul.f32 %v1808, 0.088388346
          %vm1812 = vcmask 130048
          %v1813 = vsel %vm1812, %v1810, -inf
          %1814 = vmax.xlane.f32.xlu0 %v1813
          %v1815 = vpop.xlane.xlu0 %1814
          %v1816 = vsel %vm1812, %v1811, -inf
          %1817 = vmax.xlane.f32.xlu0 %v1816
          %v1818 = vpop.xlane.xlu0 %1817
          %v1819 = vsub.f32 %v1810, %v1815
          %v1820 = vsub.f32 %v1811, %v1818
          %v1821 = vmul.f32 %v1819, 1.442695
          %v1822 = vpow.pop %v1821
          %v1823 = vmul.f32 %v1820, 1.442695
          %v1824 = vpow.pop %v1823
          %v1825 = vsel %vm1812, %v1822, 0.0
          %1826 = vadd.xlane.f32.xlu0 %v1825
          %v1827 = vpop.xlane.xlu0 %1826
          %v1828 = vsel %vm1812, %v1824, 0.0
          %1829 = vadd.xlane.f32.xlu0 %v1828
          %v1830 = vpop.xlane.xlu0 %1829
          %v1831 = vrcp.pop %v1827
          %v1832 = vmul.f32 %v1827, %v1831
          %v1833 = vsub.f32 1.0, %v1832
          %v1834 = vmul.f32 %v1831, %v1833
          %v1835 = vadd.f32 %v1831, %v1834
          %vm1836 = vweird.f32 %v1827
          %vm1837 = vweird.f32 %v1831
          %vm1838 = vmor %vm1836, %vm1837
          %v1839 = vsel %vm1838, %v1831, %v1835
          %v1840 = vand.u32 2147483647, %v1827
          %vm1841 = vcmp.eq.f32.partialorder %v1840, 8.507059e+37
          %v1842 = vand.u32 %v1827, 2147483648
          %v1843 = vor.u32 1.1754944e-38, %v1842
          %v1844 = vsel %vm1841, %v1843, %v1839
          %v1845 = vmul.f32 %v1822, %v1844
          %v1846 = vrcp.pop %v1830
          %v1847 = vmul.f32 %v1830, %v1846
          %v1848 = vsub.f32 1.0, %v1847
          %v1849 = vmul.f32 %v1846, %v1848
          %v1850 = vadd.f32 %v1846, %v1849
          %vm1851 = vweird.f32 %v1830
          %vm1852 = vweird.f32 %v1846
          %vm1853 = vmor %vm1851, %vm1852
          %v1854 = vsel %vm1853, %v1846, %v1850
          %v1855 = vand.u32 2147483647, %v1830
          %vm1856 = vcmp.eq.f32.partialorder %v1855, 8.507059e+37
          %v1857 = vand.u32 %v1830, 2147483648
          %v1858 = vor.u32 1.1754944e-38, %v1857
          %v1859 = vsel %vm1856, %v1858, %v1854
          %v1860 = vmul.f32 %v1824, %v1859
          %v1861 = vpack.c.bf16 %v1860, %v1845
          %v1864 = vunpack.c.l.b16 %v1780
          %v1865 = vunpack.c.l.b16 %v1783
          %v1866 = vpack.c.b16 %v1865, %v1864
          %v1869 = vsel %vm1812, %v1861, 0
          %1871 = vmatpush.bf16.msra.mxu0 0
          %1872 = vmatpush.bf16.msra.mxu0 0
          %1873 = vmatpush.bf16.msra.mxu0 0
          %1874 = vmatpush.bf16.msra.mxu0 0
          %1875 = vmatpush.bf16.msra.mxu0 0
          %1876 = vmatpush.bf16.msra.mxu0 0
          %1877 = vmatpush.bf16.msra.mxu0 0
          %1878 = vmatpush.bf16.msra.mxu0 %v1866
          %1879 = vmatmul.bf16.gmra.mxu0 %v1869
          %v1880 = vpop.f32.mrf.mxu0
          %v1881 = vadd.f32 0.0, %v1880
          %v1882 = vpop.f32.mrf.mxu0
          %v1883 = vadd.f32 0.0, %v1882
          %1884 = vdwg.mxu0
          %v1885 = vpack.c.bf16 %v1881, %v1881
          %v1886 = vpack.c.bf16 %v1883, %v1883
          %v1887 = vunpack.c.h.b16 %v1778
          %v1888 = vunpack.c.h.b16 %v1781
          %v1889 = vpack.c.b16 %v1888, %v1887
          %v1891 = vunpack.c.h.b16 %v1779
          %v1892 = vunpack.c.h.b16 %v1782
          %v1893 = vpack.c.b16 %v1892, %v1891
          %1895 = vmatpush.bf16.xpose.msra.mxu0 0
          %1896 = vmatpush.bf16.xpose.msra.mxu0 0
          %1897 = vmatpush.bf16.xpose.msra.mxu0 0
          %1898 = vmatpush.bf16.xpose.msra.mxu0 0
          %1899 = vmatpush.bf16.xpose.msra.mxu0 0
          %1900 = vmatpush.bf16.xpose.msra.mxu0 0
          %1901 = vmatpush.bf16.xpose.msra.mxu0 0
          %1902 = vmatpush.bf16.xpose.msra.mxu0 %v1893
          %1903 = vmatmul.bf16.gmra.mxu0 %v1889
          %v1904 = vpop.f32.mrf.mxu0
          %v1905 = vadd.f32 0.0, %v1904
          %v1906 = vpop.f32.mrf.mxu0
          %v1907 = vadd.f32 0.0, %v1906
          %1908 = vdwg.mxu0
          %v1909 = vmul.f32 %v1905, 0.088388346
          %v1910 = vmul.f32 %v1907, 0.088388346
          %v1911 = vsel %vm1812, %v1909, -inf
          %1912 = vmax.xlane.f32.xlu0 %v1911
          %v1913 = vpop.xlane.xlu0 %1912
          %v1914 = vsel %vm1812, %v1910, -inf
          %1915 = vmax.xlane.f32.xlu0 %v1914
          %v1916 = vpop.xlane.xlu0 %1915
          %v1917 = vsub.f32 %v1909, %v1913
          %v1918 = vsub.f32 %v1910, %v1916
          %v1919 = vmul.f32 %v1917, 1.442695
          %v1920 = vpow.pop %v1919
          %v1921 = vmul.f32 %v1918, 1.442695
          %v1922 = vpow.pop %v1921
          %v1923 = vsel %vm1812, %v1920, 0.0
          %1924 = vadd.xlane.f32.xlu0 %v1923
          %v1925 = vpop.xlane.xlu0 %1924
          %v1926 = vsel %vm1812, %v1922, 0.0
          %1927 = vadd.xlane.f32.xlu0 %v1926
          %v1928 = vpop.xlane.xlu0 %1927
          %v1929 = vrcp.pop %v1925
          %v1930 = vmul.f32 %v1925, %v1929
          %v1931 = vsub.f32 1.0, %v1930
          %v1932 = vmul.f32 %v1929, %v1931
          %v1933 = vadd.f32 %v1929, %v1932
          %vm1934 = vweird.f32 %v1925
          %vm1935 = vweird.f32 %v1929
          %vm1936 = vmor %vm1934, %vm1935
          %v1937 = vsel %vm1936, %v1929, %v1933
          %v1938 = vand.u32 2147483647, %v1925
          %vm1939 = vcmp.eq.f32.partialorder %v1938, 8.507059e+37
          %v1940 = vand.u32 %v1925, 2147483648
          %v1941 = vor.u32 1.1754944e-38, %v1940
          %v1942 = vsel %vm1939, %v1941, %v1937
          %v1943 = vmul.f32 %v1920, %v1942
          %v1944 = vrcp.pop %v1928
          %v1945 = vmul.f32 %v1928, %v1944
          %v1946 = vsub.f32 1.0, %v1945
          %v1947 = vmul.f32 %v1944, %v1946
          %v1948 = vadd.f32 %v1944, %v1947
          %vm1949 = vweird.f32 %v1928
          %vm1950 = vweird.f32 %v1944
          %vm1951 = vmor %vm1949, %vm1950
          %v1952 = vsel %vm1951, %v1944, %v1948
          %v1953 = vand.u32 2147483647, %v1928
          %vm1954 = vcmp.eq.f32.partialorder %v1953, 8.507059e+37
          %v1955 = vand.u32 %v1928, 2147483648
          %v1956 = vor.u32 1.1754944e-38, %v1955
          %v1957 = vsel %vm1954, %v1956, %v1952
          %v1958 = vmul.f32 %v1922, %v1957
          %v1959 = vpack.c.bf16 %v1958, %v1943
          %v1960 = vunpack.c.h.b16 %v1780
          %v1961 = vunpack.c.h.b16 %v1783
          %v1962 = vpack.c.b16 %v1961, %v1960
          %v1965 = vsel %vm1812, %v1959, 0
          %1967 = vmatpush.bf16.msra.mxu0 0
          %1968 = vmatpush.bf16.msra.mxu0 0
          %1969 = vmatpush.bf16.msra.mxu0 0
          %1970 = vmatpush.bf16.msra.mxu0 0
          %1971 = vmatpush.bf16.msra.mxu0 0
          %1972 = vmatpush.bf16.msra.mxu0 0
          %1973 = vmatpush.bf16.msra.mxu0 0
          %1974 = vmatpush.bf16.msra.mxu0 %v1962
          %1975 = vmatmul.bf16.gmra.mxu0 %v1965
          %v1976 = vpop.f32.mrf.mxu0
          %v1977 = vadd.f32 0.0, %v1976
          %v1978 = vpop.f32.mrf.mxu0
          %v1979 = vadd.f32 0.0, %v1978
          %1980 = vdwg.mxu0
          %v1981 = vpack.c.bf16 %v1977, %v1977
          %v1982 = vpack.c.bf16 %v1979, %v1979
          %v1985 = vunpack.c.l.b16 %v1885
          %v1986 = vunpack.c.l.b16 %v1886
          %v1987 = vpack.c.b16 %v1986, %v1985
          %v1991 = vunpack.c.l.b16 %v1981
          %v1992 = vunpack.c.l.b16 %v1982
          %v1993 = vpack.c.b16 %v1992, %v1991
          %v1995 = vld [vmem:[%s669] sm:$0xff]
          %v1996 = vld [vmem:[%s669 + $0x8] sm:$0xff]
          %v1997 = vld [vmem:[%s669 + $0x10] sm:$0xff]
          %v1998 = vld [vmem:[%s669 + $0x18] sm:$0xff]
          %v1999 = vld [vmem:[%s669 + $0x20] sm:$0xff]
          %v2000 = vld [vmem:[%s669 + $0x28] sm:$0xff]
          %v2001 = vld [vmem:[%s669 + $0x30] sm:$0xff]
          %v2002 = vld [vmem:[%s669 + $0x38] sm:$0xff]
          %v2003 = vld [vmem:[%s669 + $0x40] sm:$0xff]
          %v2004 = vld [vmem:[%s669 + $0x48] sm:$0xff]
          %v2005 = vld [vmem:[%s669 + $0x50] sm:$0xff]
          %v2006 = vld [vmem:[%s669 + $0x58] sm:$0xff]
          %v2007 = vld [vmem:[%s669 + $0x60] sm:$0xff]
          %v2008 = vld [vmem:[%s669 + $0x68] sm:$0xff]
          %v2009 = vld [vmem:[%s669 + $0x70] sm:$0xff]
          %v2010 = vld [vmem:[%s669 + $0x78] sm:$0xff]
          %v2011 = vld [vmem:[%s669 + $0x80] sm:$0xff]
          %v2012 = vld [vmem:[%s669 + $0x88] sm:$0xff]
          %v2013 = vld [vmem:[%s669 + $0x90] sm:$0xff]
          %v2014 = vld [vmem:[%s669 + $0x98] sm:$0xff]
          %v2015 = vld [vmem:[%s669 + $0xa0] sm:$0xff]
          %v2016 = vld [vmem:[%s669 + $0xa8] sm:$0xff]
          %v2017 = vld [vmem:[%s669 + $0xb0] sm:$0xff]
          %v2018 = vld [vmem:[%s669 + $0xb8] sm:$0xff]
          %v2019 = vld [vmem:[%s669 + $0xc0] sm:$0xff]
          %v2020 = vld [vmem:[%s669 + $0xc8] sm:$0xff]
          %v2021 = vld [vmem:[%s669 + $0xd0] sm:$0xff]
          %v2022 = vld [vmem:[%s669 + $0xd8] sm:$0xff]
          %v2023 = vld [vmem:[%s669 + $0xe0] sm:$0xff]
          %v2024 = vld [vmem:[%s669 + $0xe8] sm:$0xff]
          %v2025 = vld [vmem:[%s669 + $0xf0] sm:$0xff]
          %v2026 = vld [vmem:[%s669 + $0xf8] sm:$0xff]
          %v2027 = vld [vmem:[%s813] sm:$0x3]
          %v2029 = vperm.slane %v2027, 0
          %v2030 = vperm.slane %v2027, 1
          %v2065 = vunpack.c.l.b16 %v1995
          %v2066 = vunpack.c.h.b16 %v1995
          %v2067 = vunpack.c.l.b16 %v1996
          %v2068 = vunpack.c.h.b16 %v1996
          %v2069 = vunpack.c.l.b16 %v1997
          %v2070 = vunpack.c.h.b16 %v1997
          %v2071 = vunpack.c.l.b16 %v1998
          %v2072 = vunpack.c.h.b16 %v1998
          %v2073 = vunpack.c.l.b16 %v1999
          %v2074 = vunpack.c.h.b16 %v1999
          %v2075 = vunpack.c.l.b16 %v2000
          %v2076 = vunpack.c.h.b16 %v2000
          %v2077 = vunpack.c.l.b16 %v2001
          %v2078 = vunpack.c.h.b16 %v2001
          %v2079 = vunpack.c.l.b16 %v2002
          %v2080 = vunpack.c.h.b16 %v2002
          %v2081 = vunpack.c.l.b16 %v2003
          %v2082 = vunpack.c.h.b16 %v2003
          %v2083 = vunpack.c.l.b16 %v2004
          %v2084 = vunpack.c.h.b16 %v2004
          %v2085 = vunpack.c.l.b16 %v2005
          %v2086 = vunpack.c.h.b16 %v2005
          %v2087 = vunpack.c.l.b16 %v2006
          %v2088 = vunpack.c.h.b16 %v2006
          %v2089 = vunpack.c.l.b16 %v2007
          %v2090 = vunpack.c.h.b16 %v2007
          %v2091 = vunpack.c.l.b16 %v2008
          %v2092 = vunpack.c.h.b16 %v2008
          %v2093 = vunpack.c.l.b16 %v2009
          %v2094 = vunpack.c.h.b16 %v2009
          %v2095 = vunpack.c.l.b16 %v2010
          %v2096 = vunpack.c.h.b16 %v2010
          %v2097 = vunpack.c.l.b16 %v2011
          %v2098 = vunpack.c.h.b16 %v2011
          %v2099 = vunpack.c.l.b16 %v2012
          %v2100 = vunpack.c.h.b16 %v2012
          %v2101 = vunpack.c.l.b16 %v2013
          %v2102 = vunpack.c.h.b16 %v2013
          %v2103 = vunpack.c.l.b16 %v2014
          %v2104 = vunpack.c.h.b16 %v2014
          %v2105 = vunpack.c.l.b16 %v2015
          %v2106 = vunpack.c.h.b16 %v2015
          %v2107 = vunpack.c.l.b16 %v2016
          %v2108 = vunpack.c.h.b16 %v2016
          %v2109 = vunpack.c.l.b16 %v2017
          %v2110 = vunpack.c.h.b16 %v2017
          %v2111 = vunpack.c.l.b16 %v2018
          %v2112 = vunpack.c.h.b16 %v2018
          %v2113 = vunpack.c.l.b16 %v2019
          %v2114 = vunpack.c.h.b16 %v2019
          %v2115 = vunpack.c.l.b16 %v2020
          %v2116 = vunpack.c.h.b16 %v2020
          %v2117 = vunpack.c.l.b16 %v2021
          %v2118 = vunpack.c.h.b16 %v2021
          %v2119 = vunpack.c.l.b16 %v2022
          %v2120 = vunpack.c.h.b16 %v2022
          %v2121 = vunpack.c.l.b16 %v2023
          %v2122 = vunpack.c.h.b16 %v2023
          %v2123 = vunpack.c.l.b16 %v2024
          %v2124 = vunpack.c.h.b16 %v2024
          %v2125 = vunpack.c.l.b16 %v2025
          %v2126 = vunpack.c.h.b16 %v2025
          %v2127 = vunpack.c.l.b16 %v2026
          %v2128 = vunpack.c.h.b16 %v2026
          %v2129 = vpack.c.b16 %v2067, %v2065
          %v2130 = vpack.c.b16 %v2068, %v2066
          %v2131 = vpack.c.b16 %v2071, %v2069
          %v2132 = vpack.c.b16 %v2072, %v2070
          %v2133 = vpack.c.b16 %v2075, %v2073
          %v2134 = vpack.c.b16 %v2076, %v2074
          %v2135 = vpack.c.b16 %v2079, %v2077
          %v2136 = vpack.c.b16 %v2080, %v2078
          %v2137 = vpack.c.b16 %v2083, %v2081
          %v2138 = vpack.c.b16 %v2084, %v2082
          %v2139 = vpack.c.b16 %v2087, %v2085
          %v2140 = vpack.c.b16 %v2088, %v2086
          %v2141 = vpack.c.b16 %v2091, %v2089
          %v2142 = vpack.c.b16 %v2092, %v2090
          %v2143 = vpack.c.b16 %v2095, %v2093
          %v2144 = vpack.c.b16 %v2096, %v2094
          %v2145 = vpack.c.b16 %v2099, %v2097
          %v2146 = vpack.c.b16 %v2100, %v2098
          %v2147 = vpack.c.b16 %v2103, %v2101
          %v2148 = vpack.c.b16 %v2104, %v2102
          %v2149 = vpack.c.b16 %v2107, %v2105
          %v2150 = vpack.c.b16 %v2108, %v2106
          %v2151 = vpack.c.b16 %v2111, %v2109
          %v2152 = vpack.c.b16 %v2112, %v2110
          %v2153 = vpack.c.b16 %v2115, %v2113
          %v2154 = vpack.c.b16 %v2116, %v2114
          %v2155 = vpack.c.b16 %v2119, %v2117
          %v2156 = vpack.c.b16 %v2120, %v2118
          %v2157 = vpack.c.b16 %v2123, %v2121
          %v2158 = vpack.c.b16 %v2124, %v2122
          %v2159 = vpack.c.b16 %v2127, %v2125
          %v2160 = vpack.c.b16 %v2128, %v2126
          %2193 = vmatpush.bf16.msra.mxu0 %v2143
          %2194 = vmatpush.bf16.msra.mxu0 %v2141
          %2195 = vmatpush.bf16.msra.mxu0 %v2139
          %2196 = vmatpush.bf16.msra.mxu0 %v2137
          %2197 = vmatpush.bf16.msra.mxu0 %v2135
          %2198 = vmatpush.bf16.msra.mxu0 %v2133
          %2199 = vmatpush.bf16.msra.mxu0 %v2131
          %2200 = vmatpush.bf16.msra.mxu0 %v2129
          %2201 = vmatmul.bf16.gmra.mxu0 %v1987
          %v2202 = vpop.f32.mrf.mxu0
          %v2203 = vadd.f32 %v2029, %v2202
          %v2204 = vpop.f32.mrf.mxu0
          %v2205 = vadd.f32 %v2029, %v2204
          %2206 = vdwg.mxu0
          %2207 = vmatpush.bf16.msra.mxu0 %v2159
          %2208 = vmatpush.bf16.msra.mxu0 %v2157
          %2209 = vmatpush.bf16.msra.mxu0 %v2155
          %2210 = vmatpush.bf16.msra.mxu0 %v2153
          %2211 = vmatpush.bf16.msra.mxu0 %v2151
          %2212 = vmatpush.bf16.msra.mxu0 %v2149
          %2213 = vmatpush.bf16.msra.mxu0 %v2147
          %2214 = vmatpush.bf16.msra.mxu0 %v2145
          %2215 = vmatmul.bf16.gmra.mxu0 %v1993
          %v2216 = vpop.f32.mrf.mxu0
          %v2217 = vadd.f32 %v2203, %v2216
          %v2218 = vpop.f32.mrf.mxu0
          %v2219 = vadd.f32 %v2205, %v2218
          %2220 = vdwg.mxu0
          %2221 = vmatpush.bf16.msra.mxu0 %v2144
          %2222 = vmatpush.bf16.msra.mxu0 %v2142
          %2223 = vmatpush.bf16.msra.mxu0 %v2140
          %2224 = vmatpush.bf16.msra.mxu0 %v2138
          %2225 = vmatpush.bf16.msra.mxu0 %v2136
          %2226 = vmatpush.bf16.msra.mxu0 %v2134
          %2227 = vmatpush.bf16.msra.mxu0 %v2132
          %2228 = vmatpush.bf16.msra.mxu0 %v2130
          %2229 = vmatmul.bf16.gmra.mxu0 %v1987
          %v2230 = vpop.f32.mrf.mxu0
          %v2231 = vadd.f32 %v2030, %v2230
          %v2232 = vpop.f32.mrf.mxu0
          %v2233 = vadd.f32 %v2030, %v2232
          %2234 = vdwg.mxu0
          %2235 = vmatpush.bf16.msra.mxu0 %v2160
          %2236 = vmatpush.bf16.msra.mxu0 %v2158
          %2237 = vmatpush.bf16.msra.mxu0 %v2156
          %2238 = vmatpush.bf16.msra.mxu0 %v2154
          %2239 = vmatpush.bf16.msra.mxu0 %v2152
          %2240 = vmatpush.bf16.msra.mxu0 %v2150
          %2241 = vmatpush.bf16.msra.mxu0 %v2148
          %2242 = vmatpush.bf16.msra.mxu0 %v2146
          %2243 = vmatmul.bf16.gmra.mxu0 %v1993
          %v2244 = vpop.f32.mrf.mxu0
          %v2245 = vadd.f32 %v2231, %v2244
          %v2246 = vpop.f32.mrf.mxu0
          %v2247 = vadd.f32 %v2233, %v2246
          %2248 = vdwg.mxu0
          %v2249 = vadd.f32 %v937, %v2217
          %v2250 = vadd.f32 %v938, %v2245
          %v2251 = vadd.f32 %v939, %v2219
          %v2252 = vadd.f32 %v940, %v2247
          %2253 = vst [vmem:[#allocation2] sm:$0xff] %v2249
          %2254 = vst [vmem:[#allocation2 + $0x8] sm:$0xff] %v2250
          %2255 = vst [vmem:[#allocation2 + $0x10] sm:$0xff] %v2251
          %2256 = vst [vmem:[#allocation2 + $0x18] sm:$0xff] %v2252
          %v2257 = vld [vmem:[%s817] sm:$0x3]
          %v2258 = vld [vmem:[%s821] sm:$0x3]
          %v2259 = vadd.f32 %v2249, %v2250
          %2260 = vadd.xlane.f32.xlu0 %v2259
          %v2261 = vpop.xlane.xlu0 %2260
          %v2262 = vadd.f32 %v2251, %v2252
          %2263 = vadd.xlane.f32.xlu0 %v2262
          %v2264 = vpop.xlane.xlu0 %2263
          %v2265 = vmul.f32 %v2261, %v955
          %v2266 = vmul.f32 %v2264, %v955
          %v2267 = vsub.f32 %v2249, %v2265
          %v2268 = vsub.f32 %v2250, %v2265
          %v2269 = vsub.f32 %v2251, %v2266
          %v2270 = vsub.f32 %v2252, %v2266
          %v2271 = vmul.f32 %v2267, %v2267
          %v2272 = vmul.f32 %v2268, %v2268
          %v2273 = vmul.f32 %v2269, %v2269
          %v2274 = vmul.f32 %v2270, %v2270
          %v2275 = vadd.f32 %v2271, %v2272
          %2276 = vadd.xlane.f32.xlu0 %v2275
          %v2277 = vpop.xlane.xlu0 %2276
          %v2278 = vadd.f32 %v2273, %v2274
          %2279 = vadd.xlane.f32.xlu0 %v2278
          %v2280 = vpop.xlane.xlu0 %2279
          %v2281 = vmul.f32 %v2277, %v955
          %v2282 = vmul.f32 %v2280, %v955
          %v2283 = vadd.f32 %v2281, 1e-05
          %v2284 = vadd.f32 %v2282, 1e-05
          %v2285 = vrsqrt.pop %v2283
          %v2286 = vmul.f32 %v2285, %v2283
          %v2287 = vmul.f32 %v2286, %v2285
          %v2288 = vmul.f32 0.5, %v2287
          %v2289 = vsub.f32 1.5, %v2288
          %v2290 = vmul.f32 %v2285, %v2289
          %vm2291 = vweird.f32 %v2283
          %vm2292 = vweird.f32 %v2285
          %vm2293 = vmor %vm2291, %vm2292
          %v2294 = vsel %vm2293, %v2285, %v2290
          %v2295 = vrsqrt.pop %v2284
          %v2296 = vmul.f32 %v2295, %v2284
          %v2297 = vmul.f32 %v2296, %v2295
          %v2298 = vmul.f32 0.5, %v2297
          %v2299 = vsub.f32 1.5, %v2298
          %v2300 = vmul.f32 %v2295, %v2299
          %vm2301 = vweird.f32 %v2284
          %vm2302 = vweird.f32 %v2295
          %vm2303 = vmor %vm2301, %vm2302
          %v2304 = vsel %vm2303, %v2295, %v2300
          %v2305 = vmul.f32 %v2267, %v2294
          %v2306 = vmul.f32 %v2268, %v2294
          %v2307 = vmul.f32 %v2269, %v2304
          %v2308 = vmul.f32 %v2270, %v2304
          %v2310 = vperm.slane %v2257, 0
          %v2311 = vperm.slane %v2257, 1
          %v2314 = vmul.f32 %v2305, %v2310
          %v2315 = vmul.f32 %v2306, %v2311
          %v2316 = vmul.f32 %v2307, %v2310
          %v2317 = vmul.f32 %v2308, %v2311
          %v2319 = vperm.slane %v2258, 0
          %v2320 = vperm.slane %v2258, 1
          %v2323 = vadd.f32 %v2314, %v2319
          %v2324 = vadd.f32 %v2315, %v2320
          %v2325 = vadd.f32 %v2316, %v2319
          %v2326 = vadd.f32 %v2317, %v2320
          %v2327 = vpack.c.bf16 %v2324, %v2323
          %v2328 = vpack.c.bf16 %v2326, %v2325
          %2329 = vst [vmem:[#allocation3] sm:$0xff] %v2327
          %2330 = vst [vmem:[#allocation3 + $0x8] sm:$0xff] %v2328
          %2331 = vst [vmem:[#allocation4] sm:$0xff] 0.0
          %2332 = vst [vmem:[#allocation4 + $0x8] sm:$0xff] 0.0
          %2333 = vst [vmem:[#allocation4 + $0x10] sm:$0xff] 0.0
          %2334 = vst [vmem:[#allocation4 + $0x18] sm:$0xff] 0.0
        $region104: #{scale_encoder_forward.2} parent=79 // pred_fallthru
          _
        %v2335 = vld [vmem:[#allocation3] sm:$0xff]
        %v2336 = vld [vmem:[#allocation3 + $0x8] sm:$0xff]
        %v2337 = vld [vmem:[%s679] sm:$0xff]
        %v2338 = vld [vmem:[%s679 + $0x8] sm:$0xff]
        %v2339 = vld [vmem:[%s679 + $0x10] sm:$0xff]
        %v2340 = vld [vmem:[%s679 + $0x18] sm:$0xff]
        %v2341 = vld [vmem:[%s679 + $0x20] sm:$0xff]
        %v2342 = vld [vmem:[%s679 + $0x28] sm:$0xff]
        %v2343 = vld [vmem:[%s679 + $0x30] sm:$0xff]
        %v2344 = vld [vmem:[%s679 + $0x38] sm:$0xff]
        %v2345 = vld [vmem:[%s679 + $0x40] sm:$0xff]
        %v2346 = vld [vmem:[%s679 + $0x48] sm:$0xff]
        %v2347 = vld [vmem:[%s679 + $0x50] sm:$0xff]
        %v2348 = vld [vmem:[%s679 + $0x58] sm:$0xff]
        %v2349 = vld [vmem:[%s679 + $0x60] sm:$0xff]
        %v2350 = vld [vmem:[%s679 + $0x68] sm:$0xff]
        %v2351 = vld [vmem:[%s679 + $0x70] sm:$0xff]
        %v2352 = vld [vmem:[%s679 + $0x78] sm:$0xff]
        %v2353 = vld [vmem:[%s679 + $0x80] sm:$0xff]
        %v2354 = vld [vmem:[%s679 + $0x88] sm:$0xff]
        %v2355 = vld [vmem:[%s679 + $0x90] sm:$0xff]
        %v2356 = vld [vmem:[%s679 + $0x98] sm:$0xff]
        %v2357 = vld [vmem:[%s679 + $0xa0] sm:$0xff]
        %v2358 = vld [vmem:[%s679 + $0xa8] sm:$0xff]
        %v2359 = vld [vmem:[%s679 + $0xb0] sm:$0xff]
        %v2360 = vld [vmem:[%s679 + $0xb8] sm:$0xff]
        %v2361 = vld [vmem:[%s679 + $0xc0] sm:$0xff]
        %v2362 = vld [vmem:[%s679 + $0xc8] sm:$0xff]
        %v2363 = vld [vmem:[%s679 + $0xd0] sm:$0xff]
        %v2364 = vld [vmem:[%s679 + $0xd8] sm:$0xff]
        %v2365 = vld [vmem:[%s679 + $0xe0] sm:$0xff]
        %v2366 = vld [vmem:[%s679 + $0xe8] sm:$0xff]
        %v2367 = vld [vmem:[%s679 + $0xf0] sm:$0xff]
        %v2368 = vld [vmem:[%s679 + $0xf8] sm:$0xff]
        %v2369 = vld [vmem:[%s679 + $0x100] sm:$0xff]
        %v2370 = vld [vmem:[%s679 + $0x108] sm:$0xff]
        %v2371 = vld [vmem:[%s679 + $0x110] sm:$0xff]
        %v2372 = vld [vmem:[%s679 + $0x118] sm:$0xff]
        %v2373 = vld [vmem:[%s679 + $0x120] sm:$0xff]
        %v2374 = vld [vmem:[%s679 + $0x128] sm:$0xff]
        %v2375 = vld [vmem:[%s679 + $0x130] sm:$0xff]
        %v2376 = vld [vmem:[%s679 + $0x138] sm:$0xff]
        %v2377 = vld [vmem:[%s679 + $0x140] sm:$0xff]
        %v2378 = vld [vmem:[%s679 + $0x148] sm:$0xff]
        %v2379 = vld [vmem:[%s679 + $0x150] sm:$0xff]
        %v2380 = vld [vmem:[%s679 + $0x158] sm:$0xff]
        %v2381 = vld [vmem:[%s679 + $0x160] sm:$0xff]
        %v2382 = vld [vmem:[%s679 + $0x168] sm:$0xff]
        %v2383 = vld [vmem:[%s679 + $0x170] sm:$0xff]
        %v2384 = vld [vmem:[%s679 + $0x178] sm:$0xff]
        %v2385 = vld [vmem:[%s679 + $0x180] sm:$0xff]
        %v2386 = vld [vmem:[%s679 + $0x188] sm:$0xff]
        %v2387 = vld [vmem:[%s679 + $0x190] sm:$0xff]
        %v2388 = vld [vmem:[%s679 + $0x198] sm:$0xff]
        %v2389 = vld [vmem:[%s679 + $0x1a0] sm:$0xff]
        %v2390 = vld [vmem:[%s679 + $0x1a8] sm:$0xff]
        %v2391 = vld [vmem:[%s679 + $0x1b0] sm:$0xff]
        %v2392 = vld [vmem:[%s679 + $0x1b8] sm:$0xff]
        %v2393 = vld [vmem:[%s679 + $0x1c0] sm:$0xff]
        %v2394 = vld [vmem:[%s679 + $0x1c8] sm:$0xff]
        %v2395 = vld [vmem:[%s679 + $0x1d0] sm:$0xff]
        %v2396 = vld [vmem:[%s679 + $0x1d8] sm:$0xff]
        %v2397 = vld [vmem:[%s679 + $0x1e0] sm:$0xff]
        %v2398 = vld [vmem:[%s679 + $0x1e8] sm:$0xff]
        %v2399 = vld [vmem:[%s679 + $0x1f0] sm:$0xff]
        %v2400 = vld [vmem:[%s679 + $0x1f8] sm:$0xff]
        %v2401 = vld [vmem:[%s830] sm:$0xf]
        %v2403 = vperm.slane %v2401, 0
        %v2404 = vperm.slane %v2401, 1
        %v2405 = vperm.slane %v2401, 2
        %v2406 = vperm.slane %v2401, 3
        %v2413 = vunpack.c.l.b16 %v2335
        %v2414 = vunpack.c.h.b16 %v2335
        %v2415 = vunpack.c.l.b16 %v2336
        %v2416 = vunpack.c.h.b16 %v2336
        %v2417 = vpack.c.b16 %v2415, %v2413
        %v2418 = vpack.c.b16 %v2416, %v2414
        %v2485 = vunpack.c.l.b16 %v2337
        %v2486 = vunpack.c.h.b16 %v2337
        %v2487 = vunpack.c.l.b16 %v2338
        %v2488 = vunpack.c.h.b16 %v2338
        %v2489 = vunpack.c.l.b16 %v2339
        %v2490 = vunpack.c.h.b16 %v2339
        %v2491 = vunpack.c.l.b16 %v2340
        %v2492 = vunpack.c.h.b16 %v2340
        %v2493 = vunpack.c.l.b16 %v2341
        %v2494 = vunpack.c.h.b16 %v2341
        %v2495 = vunpack.c.l.b16 %v2342
        %v2496 = vunpack.c.h.b16 %v2342
        %v2497 = vunpack.c.l.b16 %v2343
        %v2498 = vunpack.c.h.b16 %v2343
        %v2499 = vunpack.c.l.b16 %v2344
        %v2500 = vunpack.c.h.b16 %v2344
        %v2501 = vunpack.c.l.b16 %v2345
        %v2502 = vunpack.c.h.b16 %v2345
        %v2503 = vunpack.c.l.b16 %v2346
        %v2504 = vunpack.c.h.b16 %v2346
        %v2505 = vunpack.c.l.b16 %v2347
        %v2506 = vunpack.c.h.b16 %v2347
        %v2507 = vunpack.c.l.b16 %v2348
        %v2508 = vunpack.c.h.b16 %v2348
        %v2509 = vunpack.c.l.b16 %v2349
        %v2510 = vunpack.c.h.b16 %v2349
        %v2511 = vunpack.c.l.b16 %v2350
        %v2512 = vunpack.c.h.b16 %v2350
        %v2513 = vunpack.c.l.b16 %v2351
        %v2514 = vunpack.c.h.b16 %v2351
        %v2515 = vunpack.c.l.b16 %v2352
        %v2516 = vunpack.c.h.b16 %v2352
        %v2517 = vunpack.c.l.b16 %v2353
        %v2518 = vunpack.c.h.b16 %v2353
        %v2519 = vunpack.c.l.b16 %v2354
        %v2520 = vunpack.c.h.b16 %v2354
        %v2521 = vunpack.c.l.b16 %v2355
        %v2522 = vunpack.c.h.b16 %v2355
        %v2523 = vunpack.c.l.b16 %v2356
        %v2524 = vunpack.c.h.b16 %v2356
        %v2525 = vunpack.c.l.b16 %v2357
        %v2526 = vunpack.c.h.b16 %v2357
        %v2527 = vunpack.c.l.b16 %v2358
        %v2528 = vunpack.c.h.b16 %v2358
        %v2529 = vunpack.c.l.b16 %v2359
        %v2530 = vunpack.c.h.b16 %v2359
        %v2531 = vunpack.c.l.b16 %v2360
        %v2532 = vunpack.c.h.b16 %v2360
        %v2533 = vunpack.c.l.b16 %v2361
        %v2534 = vunpack.c.h.b16 %v2361
        %v2535 = vunpack.c.l.b16 %v2362
        %v2536 = vunpack.c.h.b16 %v2362
        %v2537 = vunpack.c.l.b16 %v2363
        %v2538 = vunpack.c.h.b16 %v2363
        %v2539 = vunpack.c.l.b16 %v2364
        %v2540 = vunpack.c.h.b16 %v2364
        %v2541 = vunpack.c.l.b16 %v2365
        %v2542 = vunpack.c.h.b16 %v2365
        %v2543 = vunpack.c.l.b16 %v2366
        %v2544 = vunpack.c.h.b16 %v2366
        %v2545 = vunpack.c.l.b16 %v2367
        %v2546 = vunpack.c.h.b16 %v2367
        %v2547 = vunpack.c.l.b16 %v2368
        %v2548 = vunpack.c.h.b16 %v2368
        %v2549 = vunpack.c.l.b16 %v2369
        %v2550 = vunpack.c.h.b16 %v2369
        %v2551 = vunpack.c.l.b16 %v2370
        %v2552 = vunpack.c.h.b16 %v2370
        %v2553 = vunpack.c.l.b16 %v2371
        %v2554 = vunpack.c.h.b16 %v2371
        %v2555 = vunpack.c.l.b16 %v2372
        %v2556 = vunpack.c.h.b16 %v2372
        %v2557 = vunpack.c.l.b16 %v2373
        %v2558 = vunpack.c.h.b16 %v2373
        %v2559 = vunpack.c.l.b16 %v2374
        %v2560 = vunpack.c.h.b16 %v2374
        %v2561 = vunpack.c.l.b16 %v2375
        %v2562 = vunpack.c.h.b16 %v2375
        %v2563 = vunpack.c.l.b16 %v2376
        %v2564 = vunpack.c.h.b16 %v2376
        %v2565 = vunpack.c.l.b16 %v2377
        %v2566 = vunpack.c.h.b16 %v2377
        %v2567 = vunpack.c.l.b16 %v2378
        %v2568 = vunpack.c.h.b16 %v2378
        %v2569 = vunpack.c.l.b16 %v2379
        %v2570 = vunpack.c.h.b16 %v2379
        %v2571 = vunpack.c.l.b16 %v2380
        %v2572 = vunpack.c.h.b16 %v2380
        %v2573 = vunpack.c.l.b16 %v2381
        %v2574 = vunpack.c.h.b16 %v2381
        %v2575 = vunpack.c.l.b16 %v2382
        %v2576 = vunpack.c.h.b16 %v2382
        %v2577 = vunpack.c.l.b16 %v2383
        %v2578 = vunpack.c.h.b16 %v2383
        %v2579 = vunpack.c.l.b16 %v2384
        %v2580 = vunpack.c.h.b16 %v2384
        %v2581 = vunpack.c.l.b16 %v2385
        %v2582 = vunpack.c.h.b16 %v2385
        %v2583 = vunpack.c.l.b16 %v2386
        %v2584 = vunpack.c.h.b16 %v2386
        %v2585 = vunpack.c.l.b16 %v2387
        %v2586 = vunpack.c.h.b16 %v2387
        %v2587 = vunpack.c.l.b16 %v2388
        %v2588 = vunpack.c.h.b16 %v2388
        %v2589 = vunpack.c.l.b16 %v2389
        %v2590 = vunpack.c.h.b16 %v2389
        %v2591 = vunpack.c.l.b16 %v2390
        %v2592 = vunpack.c.h.b16 %v2390
        %v2593 = vunpack.c.l.b16 %v2391
        %v2594 = vunpack.c.h.b16 %v2391
        %v2595 = vunpack.c.l.b16 %v2392
        %v2596 = vunpack.c.h.b16 %v2392
        %v2597 = vunpack.c.l.b16 %v2393
        %v2598 = vunpack.c.h.b16 %v2393
        %v2599 = vunpack.c.l.b16 %v2394
        %v2600 = vunpack.c.h.b16 %v2394
        %v2601 = vunpack.c.l.b16 %v2395
        %v2602 = vunpack.c.h.b16 %v2395
        %v2603 = vunpack.c.l.b16 %v2396
        %v2604 = vunpack.c.h.b16 %v2396
        %v2605 = vunpack.c.l.b16 %v2397
        %v2606 = vunpack.c.h.b16 %v2397
        %v2607 = vunpack.c.l.b16 %v2398
        %v2608 = vunpack.c.h.b16 %v2398
        %v2609 = vunpack.c.l.b16 %v2399
        %v2610 = vunpack.c.h.b16 %v2399
        %v2611 = vunpack.c.l.b16 %v2400
        %v2612 = vunpack.c.h.b16 %v2400
        %v2613 = vpack.c.b16 %v2489, %v2485
        %v2614 = vpack.c.b16 %v2490, %v2486
        %v2615 = vpack.c.b16 %v2491, %v2487
        %v2616 = vpack.c.b16 %v2492, %v2488
        %v2617 = vpack.c.b16 %v2497, %v2493
        %v2618 = vpack.c.b16 %v2498, %v2494
        %v2619 = vpack.c.b16 %v2499, %v2495
        %v2620 = vpack.c.b16 %v2500, %v2496
        %v2621 = vpack.c.b16 %v2505, %v2501
        %v2622 = vpack.c.b16 %v2506, %v2502
        %v2623 = vpack.c.b16 %v2507, %v2503
        %v2624 = vpack.c.b16 %v2508, %v2504
        %v2625 = vpack.c.b16 %v2513, %v2509
        %v2626 = vpack.c.b16 %v2514, %v2510
        %v2627 = vpack.c.b16 %v2515, %v2511
        %v2628 = vpack.c.b16 %v2516, %v2512
        %v2629 = vpack.c.b16 %v2521, %v2517
        %v2630 = vpack.c.b16 %v2522, %v2518
        %v2631 = vpack.c.b16 %v2523, %v2519
        %v2632 = vpack.c.b16 %v2524, %v2520
        %v2633 = vpack.c.b16 %v2529, %v2525
        %v2634 = vpack.c.b16 %v2530, %v2526
        %v2635 = vpack.c.b16 %v2531, %v2527
        %v2636 = vpack.c.b16 %v2532, %v2528
        %v2637 = vpack.c.b16 %v2537, %v2533
        %v2638 = vpack.c.b16 %v2538, %v2534
        %v2639 = vpack.c.b16 %v2539, %v2535
        %v2640 = vpack.c.b16 %v2540, %v2536
        %v2641 = vpack.c.b16 %v2545, %v2541
        %v2642 = vpack.c.b16 %v2546, %v2542
        %v2643 = vpack.c.b16 %v2547, %v2543
        %v2644 = vpack.c.b16 %v2548, %v2544
        %v2645 = vpack.c.b16 %v2553, %v2549
        %v2646 = vpack.c.b16 %v2554, %v2550
        %v2647 = vpack.c.b16 %v2555, %v2551
        %v2648 = vpack.c.b16 %v2556, %v2552
        %v2649 = vpack.c.b16 %v2561, %v2557
        %v2650 = vpack.c.b16 %v2562, %v2558
        %v2651 = vpack.c.b16 %v2563, %v2559
        %v2652 = vpack.c.b16 %v2564, %v2560
        %v2653 = vpack.c.b16 %v2569, %v2565
        %v2654 = vpack.c.b16 %v2570, %v2566
        %v2655 = vpack.c.b16 %v2571, %v2567
        %v2656 = vpack.c.b16 %v2572, %v2568
        %v2657 = vpack.c.b16 %v2577, %v2573
        %v2658 = vpack.c.b16 %v2578, %v2574
        %v2659 = vpack.c.b16 %v2579, %v2575
        %v2660 = vpack.c.b16 %v2580, %v2576
        %v2661 = vpack.c.b16 %v2585, %v2581
        %v2662 = vpack.c.b16 %v2586, %v2582
        %v2663 = vpack.c.b16 %v2587, %v2583
        %v2664 = vpack.c.b16 %v2588, %v2584
        %v2665 = vpack.c.b16 %v2593, %v2589
        %v2666 = vpack.c.b16 %v2594, %v2590
        %v2667 = vpack.c.b16 %v2595, %v2591
        %v2668 = vpack.c.b16 %v2596, %v2592
        %v2669 = vpack.c.b16 %v2601, %v2597
        %v2670 = vpack.c.b16 %v2602, %v2598
        %v2671 = vpack.c.b16 %v2603, %v2599
        %v2672 = vpack.c.b16 %v2604, %v2600
        %v2673 = vpack.c.b16 %v2609, %v2605
        %v2674 = vpack.c.b16 %v2610, %v2606
        %v2675 = vpack.c.b16 %v2611, %v2607
        %v2676 = vpack.c.b16 %v2612, %v2608
        %2741 = vmatpush.bf16.msra.mxu0 %v2641
        %2742 = vmatpush.bf16.msra.mxu0 %v2637
        %2743 = vmatpush.bf16.msra.mxu0 %v2633
        %2744 = vmatpush.bf16.msra.mxu0 %v2629
        %2745 = vmatpush.bf16.msra.mxu0 %v2625
        %2746 = vmatpush.bf16.msra.mxu0 %v2621
        %2747 = vmatpush.bf16.msra.mxu0 %v2617
        %2748 = vmatpush.bf16.msra.mxu0 %v2613
        %2749 = vmatmul.bf16.gmra.mxu0 %v2417
        %v2750 = vpop.f32.mrf.mxu0
        %v2751 = vadd.f32 %v2403, %v2750
        %v2752 = vpop.f32.mrf.mxu0
        %v2753 = vadd.f32 %v2403, %v2752
        %2754 = vdwg.mxu0
        %2755 = vmatpush.bf16.msra.mxu0 %v2673
        %2756 = vmatpush.bf16.msra.mxu0 %v2669
        %2757 = vmatpush.bf16.msra.mxu0 %v2665
        %2758 = vmatpush.bf16.msra.mxu0 %v2661
        %2759 = vmatpush.bf16.msra.mxu0 %v2657
        %2760 = vmatpush.bf16.msra.mxu0 %v2653
        %2761 = vmatpush.bf16.msra.mxu0 %v2649
        %2762 = vmatpush.bf16.msra.mxu0 %v2645
        %2763 = vmatmul.bf16.gmra.mxu0 %v2418
        %v2764 = vpop.f32.mrf.mxu0
        %v2765 = vadd.f32 %v2751, %v2764
        %v2766 = vpop.f32.mrf.mxu0
        %v2767 = vadd.f32 %v2753, %v2766
        %2768 = vdwg.mxu0
        %2769 = vmatpush.bf16.msra.mxu0 %v2642
        %2770 = vmatpush.bf16.msra.mxu0 %v2638
        %2771 = vmatpush.bf16.msra.mxu0 %v2634
        %2772 = vmatpush.bf16.msra.mxu0 %v2630
        %2773 = vmatpush.bf16.msra.mxu0 %v2626
        %2774 = vmatpush.bf16.msra.mxu0 %v2622
        %2775 = vmatpush.bf16.msra.mxu0 %v2618
        %2776 = vmatpush.bf16.msra.mxu0 %v2614
        %2777 = vmatmul.bf16.gmra.mxu0 %v2417
        %v2778 = vpop.f32.mrf.mxu0
        %v2779 = vadd.f32 %v2404, %v2778
        %v2780 = vpop.f32.mrf.mxu0
        %v2781 = vadd.f32 %v2404, %v2780
        %2782 = vdwg.mxu0
        %2783 = vmatpush.bf16.msra.mxu0 %v2674
        %2784 = vmatpush.bf16.msra.mxu0 %v2670
        %2785 = vmatpush.bf16.msra.mxu0 %v2666
        %2786 = vmatpush.bf16.msra.mxu0 %v2662
        %2787 = vmatpush.bf16.msra.mxu0 %v2658
        %2788 = vmatpush.bf16.msra.mxu0 %v2654
        %2789 = vmatpush.bf16.msra.mxu0 %v2650
        %2790 = vmatpush.bf16.msra.mxu0 %v2646
        %2791 = vmatmul.bf16.gmra.mxu0 %v2418
        %v2792 = vpop.f32.mrf.mxu0
        %v2793 = vadd.f32 %v2779, %v2792
        %v2794 = vpop.f32.mrf.mxu0
        %v2795 = vadd.f32 %v2781, %v2794
        %2796 = vdwg.mxu0
        %2797 = vmatpush.bf16.msra.mxu0 %v2643
        %2798 = vmatpush.bf16.msra.mxu0 %v2639
        %2799 = vmatpush.bf16.msra.mxu0 %v2635
        %2800 = vmatpush.bf16.msra.mxu0 %v2631
        %2801 = vmatpush.bf16.msra.mxu0 %v2627
        %2802 = vmatpush.bf16.msra.mxu0 %v2623
        %2803 = vmatpush.bf16.msra.mxu0 %v2619
        %2804 = vmatpush.bf16.msra.mxu0 %v2615
        %2805 = vmatmul.bf16.gmra.mxu0 %v2417
        %v2806 = vpop.f32.mrf.mxu0
        %v2807 = vadd.f32 %v2405, %v2806
        %v2808 = vpop.f32.mrf.mxu0
        %v2809 = vadd.f32 %v2405, %v2808
        %2810 = vdwg.mxu0
        %2811 = vmatpush.bf16.msra.mxu0 %v2675
        %2812 = vmatpush.bf16.msra.mxu0 %v2671
        %2813 = vmatpush.bf16.msra.mxu0 %v2667
        %2814 = vmatpush.bf16.msra.mxu0 %v2663
        %2815 = vmatpush.bf16.msra.mxu0 %v2659
        %2816 = vmatpush.bf16.msra.mxu0 %v2655
        %2817 = vmatpush.bf16.msra.mxu0 %v2651
        %2818 = vmatpush.bf16.msra.mxu0 %v2647
        %2819 = vmatmul.bf16.gmra.mxu0 %v2418
        %v2820 = vpop.f32.mrf.mxu0
        %v2821 = vadd.f32 %v2807, %v2820
        %v2822 = vpop.f32.mrf.mxu0
        %v2823 = vadd.f32 %v2809, %v2822
        %2824 = vdwg.mxu0
        %2825 = vmatpush.bf16.msra.mxu0 %v2644
        %2826 = vmatpush.bf16.msra.mxu0 %v2640
        %2827 = vmatpush.bf16.msra.mxu0 %v2636
        %2828 = vmatpush.bf16.msra.mxu0 %v2632
        %2829 = vmatpush.bf16.msra.mxu0 %v2628
        %2830 = vmatpush.bf16.msra.mxu0 %v2624
        %2831 = vmatpush.bf16.msra.mxu0 %v2620
        %2832 = vmatpush.bf16.msra.mxu0 %v2616
        %2833 = vmatmul.bf16.gmra.mxu0 %v2417
        %v2834 = vpop.f32.mrf.mxu0
        %v2835 = vadd.f32 %v2406, %v2834
        %v2836 = vpop.f32.mrf.mxu0
        %v2837 = vadd.f32 %v2406, %v2836
        %2838 = vdwg.mxu0
        %2839 = vmatpush.bf16.msra.mxu0 %v2676
        %2840 = vmatpush.bf16.msra.mxu0 %v2672
        %2841 = vmatpush.bf16.msra.mxu0 %v2668
        %2842 = vmatpush.bf16.msra.mxu0 %v2664
        %2843 = vmatpush.bf16.msra.mxu0 %v2660
        %2844 = vmatpush.bf16.msra.mxu0 %v2656
        %2845 = vmatpush.bf16.msra.mxu0 %v2652
        %2846 = vmatpush.bf16.msra.mxu0 %v2648
        %2847 = vmatmul.bf16.gmra.mxu0 %v2418
        %v2848 = vpop.f32.mrf.mxu0
        %v2849 = vadd.f32 %v2835, %v2848
        %v2850 = vpop.f32.mrf.mxu0
        %v2851 = vadd.f32 %v2837, %v2850
        %2852 = vdwg.mxu0
        %v2853 = vmul.f32 %v2765, 1.702
        %v2854 = vmul.f32 %v2793, 1.702
        %v2855 = vmul.f32 %v2821, 1.702
        %v2856 = vmul.f32 %v2849, 1.702
        %v2857 = vmul.f32 %v2767, 1.702
        %v2858 = vmul.f32 %v2795, 1.702
        %v2859 = vmul.f32 %v2823, 1.702
        %v2860 = vmul.f32 %v2851, 1.702
        %v2861 = vxor.u32 %v2853, 2147483648
        %v2862 = vxor.u32 %v2854, 2147483648
        %v2863 = vxor.u32 %v2855, 2147483648
        %v2864 = vxor.u32 %v2856, 2147483648
        %v2865 = vxor.u32 %v2857, 2147483648
        %v2866 = vxor.u32 %v2858, 2147483648
        %v2867 = vxor.u32 %v2859, 2147483648
        %v2868 = vxor.u32 %v2860, 2147483648
        %v2869 = vmul.f32 %v2861, 1.442695
        %v2870 = vpow.pop %v2869
        %v2871 = vmul.f32 %v2862, 1.442695
        %v2872 = vpow.pop %v2871
        %v2873 = vmul.f32 %v2863, 1.442695
        %v2874 = vpow.pop %v2873
        %v2875 = vmul.f32 %v2864, 1.442695
        %v2876 = vpow.pop %v2875
        %v2877 = vmul.f32 %v2865, 1.442695
        %v2878 = vpow.pop %v2877
        %v2879 = vmul.f32 %v2866, 1.442695
        %v2880 = vpow.pop %v2879
        %v2881 = vmul.f32 %v2867, 1.442695
        %v2882 = vpow.pop %v2881
        %v2883 = vmul.f32 %v2868, 1.442695
        %v2884 = vpow.pop %v2883
        %v2885 = vadd.f32 %v2870, 1.0
        %v2886 = vadd.f32 %v2872, 1.0
        %v2887 = vadd.f32 %v2874, 1.0
        %v2888 = vadd.f32 %v2876, 1.0
        %v2889 = vadd.f32 %v2878, 1.0
        %v2890 = vadd.f32 %v2880, 1.0
        %v2891 = vadd.f32 %v2882, 1.0
        %v2892 = vadd.f32 %v2884, 1.0
        %v2893 = vrcp.pop %v2885
        %v2894 = vmul.f32 %v2885, %v2893
        %v2895 = vsub.f32 1.0, %v2894
        %v2896 = vmul.f32 %v2893, %v2895
        %v2897 = vadd.f32 %v2893, %v2896
        %vm2898 = vweird.f32 %v2885
        %vm2899 = vweird.f32 %v2893
        %vm2900 = vmor %vm2898, %vm2899
        %v2901 = vsel %vm2900, %v2893, %v2897
        %v2902 = vand.u32 2147483647, %v2885
        %vm2903 = vcmp.eq.f32.partialorder %v2902, 8.507059e+37
        %v2904 = vand.u32 %v2885, 2147483648
        %v2905 = vor.u32 1.1754944e-38, %v2904
        %v2906 = vsel %vm2903, %v2905, %v2901
        %v2907 = vmul.f32 1.0, %v2906
        %v2908 = vrcp.pop %v2886
        %v2909 = vmul.f32 %v2886, %v2908
        %v2910 = vsub.f32 1.0, %v2909
        %v2911 = vmul.f32 %v2908, %v2910
        %v2912 = vadd.f32 %v2908, %v2911
        %vm2913 = vweird.f32 %v2886
        %vm2914 = vweird.f32 %v2908
        %vm2915 = vmor %vm2913, %vm2914
        %v2916 = vsel %vm2915, %v2908, %v2912
        %v2917 = vand.u32 2147483647, %v2886
        %vm2918 = vcmp.eq.f32.partialorder %v2917, 8.507059e+37
        %v2919 = vand.u32 %v2886, 2147483648
        %v2920 = vor.u32 1.1754944e-38, %v2919
        %v2921 = vsel %vm2918, %v2920, %v2916
        %v2922 = vmul.f32 1.0, %v2921
        %v2923 = vrcp.pop %v2887
        %v2924 = vmul.f32 %v2887, %v2923
        %v2925 = vsub.f32 1.0, %v2924
        %v2926 = vmul.f32 %v2923, %v2925
        %v2927 = vadd.f32 %v2923, %v2926
        %vm2928 = vweird.f32 %v2887
        %vm2929 = vweird.f32 %v2923
        %vm2930 = vmor %vm2928, %vm2929
        %v2931 = vsel %vm2930, %v2923, %v2927
        %v2932 = vand.u32 2147483647, %v2887
        %vm2933 = vcmp.eq.f32.partialorder %v2932, 8.507059e+37
        %v2934 = vand.u32 %v2887, 2147483648
        %v2935 = vor.u32 1.1754944e-38, %v2934
        %v2936 = vsel %vm2933, %v2935, %v2931
        %v2937 = vmul.f32 1.0, %v2936
        %v2938 = vrcp.pop %v2888
        %v2939 = vmul.f32 %v2888, %v2938
        %v2940 = vsub.f32 1.0, %v2939
        %v2941 = vmul.f32 %v2938, %v2940
        %v2942 = vadd.f32 %v2938, %v2941
        %vm2943 = vweird.f32 %v2888
        %vm2944 = vweird.f32 %v2938
        %vm2945 = vmor %vm2943, %vm2944
        %v2946 = vsel %vm2945, %v2938, %v2942
        %v2947 = vand.u32 2147483647, %v2888
        %vm2948 = vcmp.eq.f32.partialorder %v2947, 8.507059e+37
        %v2949 = vand.u32 %v2888, 2147483648
        %v2950 = vor.u32 1.1754944e-38, %v2949
        %v2951 = vsel %vm2948, %v2950, %v2946
        %v2952 = vmul.f32 1.0, %v2951
        %v2953 = vrcp.pop %v2889
        %v2954 = vmul.f32 %v2889, %v2953
        %v2955 = vsub.f32 1.0, %v2954
        %v2956 = vmul.f32 %v2953, %v2955
        %v2957 = vadd.f32 %v2953, %v2956
        %vm2958 = vweird.f32 %v2889
        %vm2959 = vweird.f32 %v2953
        %vm2960 = vmor %vm2958, %vm2959
        %v2961 = vsel %vm2960, %v2953, %v2957
        %v2962 = vand.u32 2147483647, %v2889
        %vm2963 = vcmp.eq.f32.partialorder %v2962, 8.507059e+37
        %v2964 = vand.u32 %v2889, 2147483648
        %v2965 = vor.u32 1.1754944e-38, %v2964
        %v2966 = vsel %vm2963, %v2965, %v2961
        %v2967 = vmul.f32 1.0, %v2966
        %v2968 = vrcp.pop %v2890
        %v2969 = vmul.f32 %v2890, %v2968
        %v2970 = vsub.f32 1.0, %v2969
        %v2971 = vmul.f32 %v2968, %v2970
        %v2972 = vadd.f32 %v2968, %v2971
        %vm2973 = vweird.f32 %v2890
        %vm2974 = vweird.f32 %v2968
        %vm2975 = vmor %vm2973, %vm2974
        %v2976 = vsel %vm2975, %v2968, %v2972
        %v2977 = vand.u32 2147483647, %v2890
        %vm2978 = vcmp.eq.f32.partialorder %v2977, 8.507059e+37
        %v2979 = vand.u32 %v2890, 2147483648
        %v2980 = vor.u32 1.1754944e-38, %v2979
        %v2981 = vsel %vm2978, %v2980, %v2976
        %v2982 = vmul.f32 1.0, %v2981
        %v2983 = vrcp.pop %v2891
        %v2984 = vmul.f32 %v2891, %v2983
        %v2985 = vsub.f32 1.0, %v2984
        %v2986 = vmul.f32 %v2983, %v2985
        %v2987 = vadd.f32 %v2983, %v2986
        %vm2988 = vweird.f32 %v2891
        %vm2989 = vweird.f32 %v2983
        %vm2990 = vmor %vm2988, %vm2989
        %v2991 = vsel %vm2990, %v2983, %v2987
        %v2992 = vand.u32 2147483647, %v2891
        %vm2993 = vcmp.eq.f32.partialorder %v2992, 8.507059e+37
        %v2994 = vand.u32 %v2891, 2147483648
        %v2995 = vor.u32 1.1754944e-38, %v2994
        %v2996 = vsel %vm2993, %v2995, %v2991
        %v2997 = vmul.f32 1.0, %v2996
        %v2998 = vrcp.pop %v2892
        %v2999 = vmul.f32 %v2892, %v2998
        %v3000 = vsub.f32 1.0, %v2999
        %v3001 = vmul.f32 %v2998, %v3000
        %v3002 = vadd.f32 %v2998, %v3001
        %vm3003 = vweird.f32 %v2892
        %vm3004 = vweird.f32 %v2998
        %vm3005 = vmor %vm3003, %vm3004
        %v3006 = vsel %vm3005, %v2998, %v3002
        %v3007 = vand.u32 2147483647, %v2892
        %vm3008 = vcmp.eq.f32.partialorder %v3007, 8.507059e+37
        %v3009 = vand.u32 %v2892, 2147483648
        %v3010 = vor.u32 1.1754944e-38, %v3009
        %v3011 = vsel %vm3008, %v3010, %v3006
        %v3012 = vmul.f32 1.0, %v3011
        %v3013 = vmul.f32 %v2765, %v2907
        %v3014 = vmul.f32 %v2793, %v2922
        %v3015 = vmul.f32 %v2821, %v2937
        %v3016 = vmul.f32 %v2849, %v2952
        %v3017 = vmul.f32 %v2767, %v2967
        %v3018 = vmul.f32 %v2795, %v2982
        %v3019 = vmul.f32 %v2823, %v2997
        %v3020 = vmul.f32 %v2851, %v3012
        %v3021 = vld [vmem:[#allocation4] sm:$0xff]
        %v3022 = vld [vmem:[#allocation4 + $0x8] sm:$0xff]
        %v3023 = vld [vmem:[#allocation4 + $0x10] sm:$0xff]
        %v3024 = vld [vmem:[#allocation4 + $0x18] sm:$0xff]
        %v3025 = vpack.c.bf16 %v3017, %v3013
        %v3026 = vpack.c.bf16 %v3018, %v3014
        %v3027 = vpack.c.bf16 %v3019, %v3015
        %v3028 = vpack.c.bf16 %v3020, %v3016
        %v3029 = vld [vmem:[%s689] sm:$0xff]
        %v3030 = vld [vmem:[%s689 + $0x8] sm:$0xff]
        %v3031 = vld [vmem:[%s689 + $0x10] sm:$0xff]
        %v3032 = vld [vmem:[%s689 + $0x18] sm:$0xff]
        %v3033 = vld [vmem:[%s689 + $0x20] sm:$0xff]
        %v3034 = vld [vmem:[%s689 + $0x28] sm:$0xff]
        %v3035 = vld [vmem:[%s689 + $0x30] sm:$0xff]
        %v3036 = vld [vmem:[%s689 + $0x38] sm:$0xff]
        %v3037 = vld [vmem:[%s689 + $0x40] sm:$0xff]
        %v3038 = vld [vmem:[%s689 + $0x48] sm:$0xff]
        %v3039 = vld [vmem:[%s689 + $0x50] sm:$0xff]
        %v3040 = vld [vmem:[%s689 + $0x58] sm:$0xff]
        %v3041 = vld [vmem:[%s689 + $0x60] sm:$0xff]
        %v3042 = vld [vmem:[%s689 + $0x68] sm:$0xff]
        %v3043 = vld [vmem:[%s689 + $0x70] sm:$0xff]
        %v3044 = vld [vmem:[%s689 + $0x78] sm:$0xff]
        %v3045 = vld [vmem:[%s689 + $0x80] sm:$0xff]
        %v3046 = vld [vmem:[%s689 + $0x88] sm:$0xff]
        %v3047 = vld [vmem:[%s689 + $0x90] sm:$0xff]
        %v3048 = vld [vmem:[%s689 + $0x98] sm:$0xff]
        %v3049 = vld [vmem:[%s689 + $0xa0] sm:$0xff]
        %v3050 = vld [vmem:[%s689 + $0xa8] sm:$0xff]
        %v3051 = vld [vmem:[%s689 + $0xb0] sm:$0xff]
        %v3052 = vld [vmem:[%s689 + $0xb8] sm:$0xff]
        %v3053 = vld [vmem:[%s689 + $0xc0] sm:$0xff]
        %v3054 = vld [vmem:[%s689 + $0xc8] sm:$0xff]
        %v3055 = vld [vmem:[%s689 + $0xd0] sm:$0xff]
        %v3056 = vld [vmem:[%s689 + $0xd8] sm:$0xff]
        %v3057 = vld [vmem:[%s689 + $0xe0] sm:$0xff]
        %v3058 = vld [vmem:[%s689 + $0xe8] sm:$0xff]
        %v3059 = vld [vmem:[%s689 + $0xf0] sm:$0xff]
        %v3060 = vld [vmem:[%s689 + $0xf8] sm:$0xff]
        %v3061 = vld [vmem:[%s689 + $0x100] sm:$0xff]
        %v3062 = vld [vmem:[%s689 + $0x108] sm:$0xff]
        %v3063 = vld [vmem:[%s689 + $0x110] sm:$0xff]
        %v3064 = vld [vmem:[%s689 + $0x118] sm:$0xff]
        %v3065 = vld [vmem:[%s689 + $0x120] sm:$0xff]
        %v3066 = vld [vmem:[%s689 + $0x128] sm:$0xff]
        %v3067 = vld [vmem:[%s689 + $0x130] sm:$0xff]
        %v3068 = vld [vmem:[%s689 + $0x138] sm:$0xff]
        %v3069 = vld [vmem:[%s689 + $0x140] sm:$0xff]
        %v3070 = vld [vmem:[%s689 + $0x148] sm:$0xff]
        %v3071 = vld [vmem:[%s689 + $0x150] sm:$0xff]
        %v3072 = vld [vmem:[%s689 + $0x158] sm:$0xff]
        %v3073 = vld [vmem:[%s689 + $0x160] sm:$0xff]
        %v3074 = vld [vmem:[%s689 + $0x168] sm:$0xff]
        %v3075 = vld [vmem:[%s689 + $0x170] sm:$0xff]
        %v3076 = vld [vmem:[%s689 + $0x178] sm:$0xff]
        %v3077 = vld [vmem:[%s689 + $0x180] sm:$0xff]
        %v3078 = vld [vmem:[%s689 + $0x188] sm:$0xff]
        %v3079 = vld [vmem:[%s689 + $0x190] sm:$0xff]
        %v3080 = vld [vmem:[%s689 + $0x198] sm:$0xff]
        %v3081 = vld [vmem:[%s689 + $0x1a0] sm:$0xff]
        %v3082 = vld [vmem:[%s689 + $0x1a8] sm:$0xff]
        %v3083 = vld [vmem:[%s689 + $0x1b0] sm:$0xff]
        %v3084 = vld [vmem:[%s689 + $0x1b8] sm:$0xff]
        %v3085 = vld [vmem:[%s689 + $0x1c0] sm:$0xff]
        %v3086 = vld [vmem:[%s689 + $0x1c8] sm:$0xff]
        %v3087 = vld [vmem:[%s689 + $0x1d0] sm:$0xff]
        %v3088 = vld [vmem:[%s689 + $0x1d8] sm:$0xff]
        %v3089 = vld [vmem:[%s689 + $0x1e0] sm:$0xff]
        %v3090 = vld [vmem:[%s689 + $0x1e8] sm:$0xff]
        %v3091 = vld [vmem:[%s689 + $0x1f0] sm:$0xff]
        %v3092 = vld [vmem:[%s689 + $0x1f8] sm:$0xff]
        %v3157 = vunpack.c.l.b16 %v3029
        %v3158 = vunpack.c.h.b16 %v3029
        %v3159 = vunpack.c.l.b16 %v3030
        %v3160 = vunpack.c.h.b16 %v3030
        %v3161 = vunpack.c.l.b16 %v3031
        %v3162 = vunpack.c.h.b16 %v3031
        %v3163 = vunpack.c.l.b16 %v3032
        %v3164 = vunpack.c.h.b16 %v3032
        %v3165 = vunpack.c.l.b16 %v3033
        %v3166 = vunpack.c.h.b16 %v3033
        %v3167 = vunpack.c.l.b16 %v3034
        %v3168 = vunpack.c.h.b16 %v3034
        %v3169 = vunpack.c.l.b16 %v3035
        %v3170 = vunpack.c.h.b16 %v3035
        %v3171 = vunpack.c.l.b16 %v3036
        %v3172 = vunpack.c.h.b16 %v3036
        %v3173 = vunpack.c.l.b16 %v3037
        %v3174 = vunpack.c.h.b16 %v3037
        %v3175 = vunpack.c.l.b16 %v3038
        %v3176 = vunpack.c.h.b16 %v3038
        %v3177 = vunpack.c.l.b16 %v3039
        %v3178 = vunpack.c.h.b16 %v3039
        %v3179 = vunpack.c.l.b16 %v3040
        %v3180 = vunpack.c.h.b16 %v3040
        %v3181 = vunpack.c.l.b16 %v3041
        %v3182 = vunpack.c.h.b16 %v3041
        %v3183 = vunpack.c.l.b16 %v3042
        %v3184 = vunpack.c.h.b16 %v3042
        %v3185 = vunpack.c.l.b16 %v3043
        %v3186 = vunpack.c.h.b16 %v3043
        %v3187 = vunpack.c.l.b16 %v3044
        %v3188 = vunpack.c.h.b16 %v3044
        %v3189 = vunpack.c.l.b16 %v3045
        %v3190 = vunpack.c.h.b16 %v3045
        %v3191 = vunpack.c.l.b16 %v3046
        %v3192 = vunpack.c.h.b16 %v3046
        %v3193 = vunpack.c.l.b16 %v3047
        %v3194 = vunpack.c.h.b16 %v3047
        %v3195 = vunpack.c.l.b16 %v3048
        %v3196 = vunpack.c.h.b16 %v3048
        %v3197 = vunpack.c.l.b16 %v3049
        %v3198 = vunpack.c.h.b16 %v3049
        %v3199 = vunpack.c.l.b16 %v3050
        %v3200 = vunpack.c.h.b16 %v3050
        %v3201 = vunpack.c.l.b16 %v3051
        %v3202 = vunpack.c.h.b16 %v3051
        %v3203 = vunpack.c.l.b16 %v3052
        %v3204 = vunpack.c.h.b16 %v3052
        %v3205 = vunpack.c.l.b16 %v3053
        %v3206 = vunpack.c.h.b16 %v3053
        %v3207 = vunpack.c.l.b16 %v3054
        %v3208 = vunpack.c.h.b16 %v3054
        %v3209 = vunpack.c.l.b16 %v3055
        %v3210 = vunpack.c.h.b16 %v3055
        %v3211 = vunpack.c.l.b16 %v3056
        %v3212 = vunpack.c.h.b16 %v3056
        %v3213 = vunpack.c.l.b16 %v3057
        %v3214 = vunpack.c.h.b16 %v3057
        %v3215 = vunpack.c.l.b16 %v3058
        %v3216 = vunpack.c.h.b16 %v3058
        %v3217 = vunpack.c.l.b16 %v3059
        %v3218 = vunpack.c.h.b16 %v3059
        %v3219 = vunpack.c.l.b16 %v3060
        %v3220 = vunpack.c.h.b16 %v3060
        %v3221 = vunpack.c.l.b16 %v3061
        %v3222 = vunpack.c.h.b16 %v3061
        %v3223 = vunpack.c.l.b16 %v3062
        %v3224 = vunpack.c.h.b16 %v3062
        %v3225 = vunpack.c.l.b16 %v3063
        %v3226 = vunpack.c.h.b16 %v3063
        %v3227 = vunpack.c.l.b16 %v3064
        %v3228 = vunpack.c.h.b16 %v3064
        %v3229 = vunpack.c.l.b16 %v3065
        %v3230 = vunpack.c.h.b16 %v3065
        %v3231 = vunpack.c.l.b16 %v3066
        %v3232 = vunpack.c.h.b16 %v3066
        %v3233 = vunpack.c.l.b16 %v3067
        %v3234 = vunpack.c.h.b16 %v3067
        %v3235 = vunpack.c.l.b16 %v3068
        %v3236 = vunpack.c.h.b16 %v3068
        %v3237 = vunpack.c.l.b16 %v3069
        %v3238 = vunpack.c.h.b16 %v3069
        %v3239 = vunpack.c.l.b16 %v3070
        %v3240 = vunpack.c.h.b16 %v3070
        %v3241 = vunpack.c.l.b16 %v3071
        %v3242 = vunpack.c.h.b16 %v3071
        %v3243 = vunpack.c.l.b16 %v3072
        %v3244 = vunpack.c.h.b16 %v3072
        %v3245 = vunpack.c.l.b16 %v3073
        %v3246 = vunpack.c.h.b16 %v3073
        %v3247 = vunpack.c.l.b16 %v3074
        %v3248 = vunpack.c.h.b16 %v3074
        %v3249 = vunpack.c.l.b16 %v3075
        %v3250 = vunpack.c.h.b16 %v3075
        %v3251 = vunpack.c.l.b16 %v3076
        %v3252 = vunpack.c.h.b16 %v3076
        %v3253 = vunpack.c.l.b16 %v3077
        %v3254 = vunpack.c.h.b16 %v3077
        %v3255 = vunpack.c.l.b16 %v3078
        %v3256 = vunpack.c.h.b16 %v3078
        %v3257 = vunpack.c.l.b16 %v3079
        %v3258 = vunpack.c.h.b16 %v3079
        %v3259 = vunpack.c.l.b16 %v3080
        %v3260 = vunpack.c.h.b16 %v3080
        %v3261 = vunpack.c.l.b16 %v3081
        %v3262 = vunpack.c.h.b16 %v3081
        %v3263 = vunpack.c.l.b16 %v3082
        %v3264 = vunpack.c.h.b16 %v3082
        %v3265 = vunpack.c.l.b16 %v3083
        %v3266 = vunpack.c.h.b16 %v3083
        %v3267 = vunpack.c.l.b16 %v3084
        %v3268 = vunpack.c.h.b16 %v3084
        %v3269 = vunpack.c.l.b16 %v3085
        %v3270 = vunpack.c.h.b16 %v3085
        %v3271 = vunpack.c.l.b16 %v3086
        %v3272 = vunpack.c.h.b16 %v3086
        %v3273 = vunpack.c.l.b16 %v3087
        %v3274 = vunpack.c.h.b16 %v3087
        %v3275 = vunpack.c.l.b16 %v3088
        %v3276 = vunpack.c.h.b16 %v3088
        %v3277 = vunpack.c.l.b16 %v3089
        %v3278 = vunpack.c.h.b16 %v3089
        %v3279 = vunpack.c.l.b16 %v3090
        %v3280 = vunpack.c.h.b16 %v3090
        %v3281 = vunpack.c.l.b16 %v3091
        %v3282 = vunpack.c.h.b16 %v3091
        %v3283 = vunpack.c.l.b16 %v3092
        %v3284 = vunpack.c.h.b16 %v3092
        %v3285 = vpack.c.b16 %v3159, %v3157
        %v3286 = vpack.c.b16 %v3160, %v3158
        %v3287 = vpack.c.b16 %v3163, %v3161
        %v3288 = vpack.c.b16 %v3164, %v3162
        %v3289 = vpack.c.b16 %v3167, %v3165
        %v3290 = vpack.c.b16 %v3168, %v3166
        %v3291 = vpack.c.b16 %v3171, %v3169
        %v3292 = vpack.c.b16 %v3172, %v3170
        %v3293 = vpack.c.b16 %v3175, %v3173
        %v3294 = vpack.c.b16 %v3176, %v3174
        %v3295 = vpack.c.b16 %v3179, %v3177
        %v3296 = vpack.c.b16 %v3180, %v3178
        %v3297 = vpack.c.b16 %v3183, %v3181
        %v3298 = vpack.c.b16 %v3184, %v3182
        %v3299 = vpack.c.b16 %v3187, %v3185
        %v3300 = vpack.c.b16 %v3188, %v3186
        %v3301 = vpack.c.b16 %v3191, %v3189
        %v3302 = vpack.c.b16 %v3192, %v3190
        %v3303 = vpack.c.b16 %v3195, %v3193
        %v3304 = vpack.c.b16 %v3196, %v3194
        %v3305 = vpack.c.b16 %v3199, %v3197
        %v3306 = vpack.c.b16 %v3200, %v3198
        %v3307 = vpack.c.b16 %v3203, %v3201
        %v3308 = vpack.c.b16 %v3204, %v3202
        %v3309 = vpack.c.b16 %v3207, %v3205
        %v3310 = vpack.c.b16 %v3208, %v3206
        %v3311 = vpack.c.b16 %v3211, %v3209
        %v3312 = vpack.c.b16 %v3212, %v3210
        %v3313 = vpack.c.b16 %v3215, %v3213
        %v3314 = vpack.c.b16 %v3216, %v3214
        %v3315 = vpack.c.b16 %v3219, %v3217
        %v3316 = vpack.c.b16 %v3220, %v3218
        %v3317 = vpack.c.b16 %v3223, %v3221
        %v3318 = vpack.c.b16 %v3224, %v3222
        %v3319 = vpack.c.b16 %v3227, %v3225
        %v3320 = vpack.c.b16 %v3228, %v3226
        %v3321 = vpack.c.b16 %v3231, %v3229
        %v3322 = vpack.c.b16 %v3232, %v3230
        %v3323 = vpack.c.b16 %v3235, %v3233
        %v3324 = vpack.c.b16 %v3236, %v3234
        %v3325 = vpack.c.b16 %v3239, %v3237
        %v3326 = vpack.c.b16 %v3240, %v3238
        %v3327 = vpack.c.b16 %v3243, %v3241
        %v3328 = vpack.c.b16 %v3244, %v3242
        %v3329 = vpack.c.b16 %v3247, %v3245
        %v3330 = vpack.c.b16 %v3248, %v3246
        %v3331 = vpack.c.b16 %v3251, %v3249
        %v3332 = vpack.c.b16 %v3252, %v3250
        %v3333 = vpack.c.b16 %v3255, %v3253
        %v3334 = vpack.c.b16 %v3256, %v3254
        %v3335 = vpack.c.b16 %v3259, %v3257
        %v3336 = vpack.c.b16 %v3260, %v3258
        %v3337 = vpack.c.b16 %v3263, %v3261
        %v3338 = vpack.c.b16 %v3264, %v3262
        %v3339 = vpack.c.b16 %v3267, %v3265
        %v3340 = vpack.c.b16 %v3268, %v3266
        %v3341 = vpack.c.b16 %v3271, %v3269
        %v3342 = vpack.c.b16 %v3272, %v3270
        %v3343 = vpack.c.b16 %v3275, %v3273
        %v3344 = vpack.c.b16 %v3276, %v3274
        %v3345 = vpack.c.b16 %v3279, %v3277
        %v3346 = vpack.c.b16 %v3280, %v3278
        %v3347 = vpack.c.b16 %v3283, %v3281
        %v3348 = vpack.c.b16 %v3284, %v3282
        %3413 = vmatpush.bf16.msra.mxu0 %v3299
        %3414 = vmatpush.bf16.msra.mxu0 %v3297
        %3415 = vmatpush.bf16.msra.mxu0 %v3295
        %3416 = vmatpush.bf16.msra.mxu0 %v3293
        %3417 = vmatpush.bf16.msra.mxu0 %v3291
        %3418 = vmatpush.bf16.msra.mxu0 %v3289
        %3419 = vmatpush.bf16.msra.mxu0 %v3287
        %3420 = vmatpush.bf16.msra.mxu0 %v3285
        %3421 = vmatmul.bf16.gmra.mxu0 %v3025
        %v3422 = vpop.f32.mrf.mxu0
        %v3423 = vadd.f32 0.0, %v3422
        %v3424 = vpop.f32.mrf.mxu0
        %v3425 = vadd.f32 0.0, %v3424
        %3426 = vdwg.mxu0
        %3427 = vmatpush.bf16.msra.mxu0 %v3315
        %3428 = vmatpush.bf16.msra.mxu0 %v3313
        %3429 = vmatpush.bf16.msra.mxu0 %v3311
        %3430 = vmatpush.bf16.msra.mxu0 %v3309
        %3431 = vmatpush.bf16.msra.mxu0 %v3307
        %3432 = vmatpush.bf16.msra.mxu0 %v3305
        %3433 = vmatpush.bf16.msra.mxu0 %v3303
        %3434 = vmatpush.bf16.msra.mxu0 %v3301
        %3435 = vmatmul.bf16.gmra.mxu0 %v3026
        %v3436 = vpop.f32.mrf.mxu0
        %v3437 = vadd.f32 %v3423, %v3436
        %v3438 = vpop.f32.mrf.mxu0
        %v3439 = vadd.f32 %v3425, %v3438
        %3440 = vdwg.mxu0
        %3441 = vmatpush.bf16.msra.mxu0 %v3331
        %3442 = vmatpush.bf16.msra.mxu0 %v3329
        %3443 = vmatpush.bf16.msra.mxu0 %v3327
        %3444 = vmatpush.bf16.msra.mxu0 %v3325
        %3445 = vmatpush.bf16.msra.mxu0 %v3323
        %3446 = vmatpush.bf16.msra.mxu0 %v3321
        %3447 = vmatpush.bf16.msra.mxu0 %v3319
        %3448 = vmatpush.bf16.msra.mxu0 %v3317
        %3449 = vmatmul.bf16.gmra.mxu0 %v3027
        %v3450 = vpop.f32.mrf.mxu0
        %v3451 = vadd.f32 %v3437, %v3450
        %v3452 = vpop.f32.mrf.mxu0
        %v3453 = vadd.f32 %v3439, %v3452
        %3454 = vdwg.mxu0
        %3455 = vmatpush.bf16.msra.mxu0 %v3347
        %3456 = vmatpush.bf16.msra.mxu0 %v3345
        %3457 = vmatpush.bf16.msra.mxu0 %v3343
        %3458 = vmatpush.bf16.msra.mxu0 %v3341
        %3459 = vmatpush.bf16.msra.mxu0 %v3339
        %3460 = vmatpush.bf16.msra.mxu0 %v3337
        %3461 = vmatpush.bf16.msra.mxu0 %v3335
        %3462 = vmatpush.bf16.msra.mxu0 %v3333
        %3463 = vmatmul.bf16.gmra.mxu0 %v3028
        %v3464 = vpop.f32.mrf.mxu0
        %v3465 = vadd.f32 %v3451, %v3464
        %v3466 = vpop.f32.mrf.mxu0
        %v3467 = vadd.f32 %v3453, %v3466
        %3468 = vdwg.mxu0
        %3469 = vmatpush.bf16.msra.mxu0 %v3300
        %3470 = vmatpush.bf16.msra.mxu0 %v3298
        %3471 = vmatpush.bf16.msra.mxu0 %v3296
        %3472 = vmatpush.bf16.msra.mxu0 %v3294
        %3473 = vmatpush.bf16.msra.mxu0 %v3292
        %3474 = vmatpush.bf16.msra.mxu0 %v3290
        %3475 = vmatpush.bf16.msra.mxu0 %v3288
        %3476 = vmatpush.bf16.msra.mxu0 %v3286
        %3477 = vmatmul.bf16.gmra.mxu0 %v3025
        %v3478 = vpop.f32.mrf.mxu0
        %v3479 = vadd.f32 0.0, %v3478
        %v3480 = vpop.f32.mrf.mxu0
        %v3481 = vadd.f32 0.0, %v3480
        %3482 = vdwg.mxu0
        %3483 = vmatpush.bf16.msra.mxu0 %v3316
        %3484 = vmatpush.bf16.msra.mxu0 %v3314
        %3485 = vmatpush.bf16.msra.mxu0 %v3312
        %3486 = vmatpush.bf16.msra.mxu0 %v3310
        %3487 = vmatpush.bf16.msra.mxu0 %v3308
        %3488 = vmatpush.bf16.msra.mxu0 %v3306
        %3489 = vmatpush.bf16.msra.mxu0 %v3304
        %3490 = vmatpush.bf16.msra.mxu0 %v3302
        %3491 = vmatmul.bf16.gmra.mxu0 %v3026
        %v3492 = vpop.f32.mrf.mxu0
        %v3493 = vadd.f32 %v3479, %v3492
        %v3494 = vpop.f32.mrf.mxu0
        %v3495 = vadd.f32 %v3481, %v3494
        %3496 = vdwg.mxu0
        %3497 = vmatpush.bf16.msra.mxu0 %v3332
        %3498 = vmatpush.bf16.msra.mxu0 %v3330
        %3499 = vmatpush.bf16.msra.mxu0 %v3328
        %3500 = vmatpush.bf16.msra.mxu0 %v3326
        %3501 = vmatpush.bf16.msra.mxu0 %v3324
        %3502 = vmatpush.bf16.msra.mxu0 %v3322
        %3503 = vmatpush.bf16.msra.mxu0 %v3320
        %3504 = vmatpush.bf16.msra.mxu0 %v3318
        %3505 = vmatmul.bf16.gmra.mxu0 %v3027
        %v3506 = vpop.f32.mrf.mxu0
        %v3507 = vadd.f32 %v3493, %v3506
        %v3508 = vpop.f32.mrf.mxu0
        %v3509 = vadd.f32 %v3495, %v3508
        %3510 = vdwg.mxu0
        %3511 = vmatpush.bf16.msra.mxu0 %v3348
        %3512 = vmatpush.bf16.msra.mxu0 %v3346
        %3513 = vmatpush.bf16.msra.mxu0 %v3344
        %3514 = vmatpush.bf16.msra.mxu0 %v3342
        %3515 = vmatpush.bf16.msra.mxu0 %v3340
        %3516 = vmatpush.bf16.msra.mxu0 %v3338
        %3517 = vmatpush.bf16.msra.mxu0 %v3336
        %3518 = vmatpush.bf16.msra.mxu0 %v3334
        %3519 = vmatmul.bf16.gmra.mxu0 %v3028
        %v3520 = vpop.f32.mrf.mxu0
        %v3521 = vadd.f32 %v3507, %v3520
        %v3522 = vpop.f32.mrf.mxu0
        %v3523 = vadd.f32 %v3509, %v3522
        %3524 = vdwg.mxu0
        %v3525 = vadd.f32 %v3021, %v3465
        %v3526 = vadd.f32 %v3022, %v3521
        %v3527 = vadd.f32 %v3023, %v3467
        %v3528 = vadd.f32 %v3024, %v3523
        %3529 = vst [vmem:[#allocation4] sm:$0xff] %v3525
        %3530 = vst [vmem:[#allocation4 + $0x8] sm:$0xff] %v3526
        %3531 = vst [vmem:[#allocation4 + $0x10] sm:$0xff] %v3527
        %3532 = vst [vmem:[#allocation4 + $0x18] sm:$0xff] %v3528
        %p3533 = scmp.eq.s32.totalorder %s42, 1
        // Predicated region
        $region105: #{scale_encoder_forward.2} parent=79 // pred_check
          %p3534 = pneg %p3533
        $region106: #{scale_encoder_forward.2} parent=79 // pred_check_branch
          %3536 = sbr.rel (%p3534) target = $region108
        $region107: #{scale_encoder_forward.2} parent=79 // pred_region
          %v3537 = vld [vmem:[#allocation2] sm:$0xff]
          %v3538 = vld [vmem:[#allocation2 + $0x8] sm:$0xff]
          %v3539 = vld [vmem:[#allocation2 + $0x10] sm:$0xff]
          %v3540 = vld [vmem:[#allocation2 + $0x18] sm:$0xff]
          %v3541 = vld [vmem:[#allocation4] sm:$0xff]
          %v3542 = vld [vmem:[#allocation4 + $0x8] sm:$0xff]
          %v3543 = vld [vmem:[#allocation4 + $0x10] sm:$0xff]
          %v3544 = vld [vmem:[#allocation4 + $0x18] sm:$0xff]
          %v3545 = vadd.f32 %v3537, %v3541
          %v3546 = vadd.f32 %v3538, %v3542
          %v3547 = vadd.f32 %v3539, %v3543
          %v3548 = vadd.f32 %v3540, %v3544
          %v3549 = vld [vmem:[%s836] sm:$0x3]
          %v3551 = vperm.slane %v3549, 0
          %v3552 = vperm.slane %v3549, 1
          %v3555 = vadd.f32 %v3545, %v3551
          %v3556 = vadd.f32 %v3546, %v3552
          %v3557 = vadd.f32 %v3547, %v3551
          %v3558 = vadd.f32 %v3548, %v3552
          %3559 = vst [vmem:[#allocation2] sm:$0xff] %v3555
          %3560 = vst [vmem:[#allocation2 + $0x8] sm:$0xff] %v3556
          %3561 = vst [vmem:[#allocation2 + $0x10] sm:$0xff] %v3557
          %3562 = vst [vmem:[#allocation2 + $0x18] sm:$0xff] %v3558
        $region108: #{scale_encoder_forward.2} parent=79 // pred_fallthru
          _
        %p3563 = scmp.eq.s32.totalorder %s41, 1
        %p3564 = pnand %p3533, %p3563
        %p3565 = pneg %p3564
        // Predicated region
        $region109: #{scale_encoder_forward.2} parent=79 // pred_check
          _
        $region110: #{scale_encoder_forward.2} parent=79 // pred_check_branch
          %3567 = sbr.rel (%p3564) target = $region112
        $region111: #{scale_encoder_forward.2} parent=79 // pred_region
          %v3568 = vld [vmem:[#allocation2] sm:$0xff]
          %v3569 = vld [vmem:[#allocation2 + $0x8] sm:$0xff]
          %v3570 = vld [vmem:[#allocation2 + $0x10] sm:$0xff]
          %v3571 = vld [vmem:[#allocation2 + $0x18] sm:$0xff]
          %3572 = vst [vmem:[%s841] sm:$0xff] %v3568
          %3573 = vst [vmem:[%s841 + $0x8] sm:$0xff] %v3569
          %3574 = vst [vmem:[%s841 + $0x10] sm:$0xff] %v3570
          %3575 = vst [vmem:[%s841 + $0x18] sm:$0xff] %v3571
        $region112: #{scale_encoder_forward.2} parent=79 // pred_fallthru
          _
        %p3576 = scmp.lt.s32.totalorder %s40, 1
        %s3577 = scalar_select %p3576, %s40, 1
        %s3578 = smul.addr %s3577, 4
        %s3579 = smul.addr %s3578, 8
        %s3580 = scalar_lea.vmem %s15, %s3579
        // Predicated region
        $region113: #{scale_encoder_forward.2} parent=79 // pred_check
          %p3581 = pneg %p458
        $region114: #{scale_encoder_forward.2} parent=79 // pred_check_branch
          %3583 = sbr.rel (%p3581) target = $region116
        $region115: #{scale_encoder_forward.2} parent=79 // pred_region
          _
        $region116: #{scale_encoder_forward.2} parent=79 // pred_fallthru
          _
      $region80: #{scale_encoder_forward.2} parent=5 // pred_fallthru
        _
      %p3584 = scmp.le.s32.totalorder 2, %s30
      // Predicated region
      $region117: #{scale_encoder_forward.2} parent=5 // pred_check
        %p3585 = pneg %p3584
      $region118: #{scale_encoder_forward.2} parent=5 // pred_check_branch
        %3587 = sbr.rel (%p3585) target = $region120
      $region119: #{scale_encoder_forward.2} parent=5 // pred_region
        %s3588 = ssub.s32 %s30, 2
        // Predicated region
        $region121: #{scale_encoder_forward.2} parent=119 // pred_check
          %p3589 = pneg %p464
        $region122: #{scale_encoder_forward.2} parent=119 // pred_check_branch
          %3591 = sbr.rel (%p3589) target = $region124
        $region123: #{scale_encoder_forward.2} parent=119 // pred_region
          %p3592 = scmp.lt.s32.totalorder %s43, 1
          %s3593 = scalar_select %p3592, %s43, 1
          %s3594 = smul.addr %s3593, 4
          %s3595 = smul.addr %s3594, 8
          %s3596 = scalar_lea.vmem %s15, %s3595
        $region124: #{scale_encoder_forward.2} parent=119 // pred_fallthru
          _
      $region120: #{scale_encoder_forward.2} parent=5 // pred_fallthru
        _
    $region6: #{scale_encoder_forward.2} parent=1 // loop_footer
      %s34 = sadd.s32 1, %s30
    $region7: #{scale_encoder_forward.2} parent=1 // loop_footer_branch
      %29 = sbr.rel target = $region3
    $region8: #{scale_encoder_forward.2} parent=1 // loop_exit
      _
    %3597 = vsyncpa [#allocation6], 1
    %s3598 = scalar_lea.sflag [#allocation6], 1
    %3599 = vsyncpa %s3598, 1
    %3600 = vsyncpa [#allocation8], 1
    %s3601 = scalar_lea.sflag [#allocation8], 1
    %3602 = vsyncpa %s3601, 1
    %3603 = vsyncpa [#allocation11], 1
    %s3604 = scalar_lea.sflag [#allocation11], 1
    %3605 = vsyncpa %s3604, 1

</llo_original>
